<compile_context>
chip_gen: v7x
topology: tpu7x:2x2x1
jax: 0.10.0
libtpu: 0.0.40
codegen_flags: <defaults>
</compile_context>

<pallas_src>
import functools

import jax
import jax.numpy as jnp
from jax import lax
from jax.experimental import pallas as pl
from jax.experimental.pallas import tpu as pltpu

RATES = (1, 2, 4, 8)          # atrous rates of the four branches
PAD = max(RATES)              # shared spatial halo, covers the largest dilation
LANE = 128                    # TPU lane width: channel dims are padded to this


def _round_up(v, m):
    return (v + m - 1) // m * m


def _aspp_kernel(x_ref, w1_ref, w2_ref, w3_ref, w4_ref, wp_ref, o_ref, acc_ref,
                 *, tile_h, W):
    """One (batch, row-tile) grid step.

    x_ref  : (1, tile_h + 2*PAD, W + 2*PAD, Cp)  bf16 padded input slab
    w1_ref : (Cp, Pp)                            bf16 1x1 conv (rate 1)
    w2..w4 : (9*Cp, Pp)                          bf16 3x3 dilated convs, im2col layout
    wp_ref : (4, Pp, Pp)                         bf16 final 1x1 projection, split per branch
    o_ref  : (1, tile_h, W, Pp)                  f32 output tile
    acc_ref: (tile_h*W, Pp)                      f32 VMEM scratch accumulator
    """
    xs = x_ref[0]                                  # (tile_h + 2*PAD, W + 2*PAD, Cp)
    Cp = xs.shape[-1]
    Pp = o_ref.shape[-1]
    rows = tile_h * W

    # ---- branch 1: 1x1 conv (rate 1) + ReLU, projected into the accumulator -
    patch = xs[PAD:PAD + tile_h, PAD:PAD + W, :].reshape(rows, Cp)
    b = jnp.dot(patch, w1_ref[...], preferred_element_type=jnp.float32)
    b = jnp.maximum(b, 0.0).astype(jnp.bfloat16)
    acc_ref[...] = jnp.dot(b, wp_ref[0], preferred_element_type=jnp.float32)

    # ---- branches 2-4: 3x3 dilated convs as ONE im2col matmul each ----------
    # K = 9*Cp keeps the MXU contraction dimension full instead of nine K=Cin
    # pushes.  Tap order (dy-major, dx, then channel) matches the weight
    # reshape done in the wrapper.
    for bi, (w_ref, rate) in enumerate(
            ((w2_ref, RATES[1]), (w3_ref, RATES[2]), (w4_ref, RATES[3]))):
        taps = []
        for dy in range(3):
            r0 = PAD + rate * (dy - 1)             # row offset (major axis, free)
            for dx in range(3):
                c0 = PAD + rate * (dx - 1)         # col offset (sublane axis)
                taps.append(xs[r0:r0 + tile_h, c0:c0 + W, :])
        patch = jnp.concatenate(taps, axis=-1).reshape(rows, 9 * Cp)
        b = jnp.dot(patch, w_ref[...], preferred_element_type=jnp.float32)
        b = jnp.maximum(b, 0.0).astype(jnp.bfloat16)
        acc_ref[...] += jnp.dot(b, wp_ref[bi + 1],
                                preferred_element_type=jnp.float32)

    # ---- final ReLU + lane-dense store (last dim = Pp, a multiple of 128) ----
    o_ref[0] = jnp.maximum(acc_ref[...], 0.0).reshape(
        tile_h, W, Pp).astype(o_ref.dtype)


def aspp_forward(x_nchw, weights, *, tile_h=None, compute_dtype=jnp.bfloat16):
    """ASPP forward.  x_nchw: (N, Cin, H, W) f32.  weights: PyTorch-layout OIHW
    tensors (w1, w2, w3, w4, w_proj).  Returns (N, P, H, W) f32."""
    w1_t, w2_t, w3_t, w4_t, wp_t = weights
    N, Cin, H, W = x_nchw.shape
    P = w1_t.shape[0]

    Cp = _round_up(Cin, LANE)       # lane-dense input channels
    Pp = _round_up(P, LANE)         # lane-dense output channels

    # Row tile: bounds VMEM independent of image size and gives the grid a
    # second parallel axis.  Re-derive the cap against the VMEM budget for the
    # target chip (64 MiB physical on v7x, 128 MiB on v5e/v6e).
    if tile_h is None:
        cap = 64
        tile_h = max(d for d in range(1, min(H, cap) + 1) if H % d == 0)
    assert H % tile_h == 0, "tile_h must divide H"
    T = H // tile_h
    slab_h = tile_h + 2 * PAD
    Wp = W + 2 * PAD

    # ---- weights: OIHW -> kernel layouts, zero-padded to lane width, bf16 ----
    def conv3x3_im2col(w_oihw):                         # (P, Cin, 3, 3)
        w = jnp.transpose(w_oihw, (2, 3, 1, 0))          # (3, 3, Cin, P)
        w = jnp.pad(w, ((0, 0), (0, 0), (0, Cp - Cin), (0, Pp - P)))
        return w.reshape(9 * Cp, Pp).astype(compute_dtype)

    w1k = jnp.pad(jnp.transpose(w1_t[:, :, 0, 0]),       # (Cin, P) -> (Cp, Pp)
                  ((0, Cp - Cin), (0, Pp - P))).astype(compute_dtype)
    w2k, w3k, w4k = (conv3x3_im2col(w) for w in (w2_t, w3_t, w4_t))
    wp2 = jnp.transpose(wp_t[:, :, 0, 0])                # (4P, P)
    wpk = jnp.stack(
        [jnp.pad(wp2[b * P:(b + 1) * P, :], ((0, Pp - P), (0, Pp - P)))
         for b in range(4)], axis=0).astype(compute_dtype)   # (4, Pp, Pp)

    # ---- input: NCHW -> NHWC, halo + channel pad in one jnp.pad, cast bf16 ---
    x = jnp.transpose(x_nchw, (0, 2, 3, 1))
    x = jnp.pad(x, ((0, 0), (PAD, PAD), (PAD, PAD), (0, Cp - Cin)))
    x = x.astype(compute_dtype)
    # Pre-split into overlapping row slabs so each grid step gets its +/-PAD
    # halo through a plain (non-overlapping) BlockSpec.
    x_slabs = jnp.stack(
        [x[:, t * tile_h:t * tile_h + slab_h] for t in range(T)],
        axis=1).reshape(N * T, slab_h, Wp, Cp)

    kernel = functools.partial(_aspp_kernel, tile_h=tile_h, W=W)

    out = pl.pallas_call(
        kernel,
        out_shape=jax.ShapeDtypeStruct((N, H, W, Pp), jnp.float32),
        grid_spec=pltpu.PrefetchScalarGridSpec(
            num_scalar_prefetch=0,
            grid=(N, T),
            in_specs=[
                pl.BlockSpec((1, slab_h, Wp, Cp),
                             lambda n, t: (n * T + t, 0, 0, 0)),
                pl.BlockSpec((Cp, Pp), lambda n, t: (0, 0)),
                pl.BlockSpec((9 * Cp, Pp), lambda n, t: (0, 0)),
                pl.BlockSpec((9 * Cp, Pp), lambda n, t: (0, 0)),
                pl.BlockSpec((9 * Cp, Pp), lambda n, t: (0, 0)),
                pl.BlockSpec((4, Pp, Pp), lambda n, t: (0, 0, 0)),
            ],
            out_specs=pl.BlockSpec((1, tile_h, W, Pp),
                                   lambda n, t: (n, t, 0, 0)),
            scratch_shapes=[pltpu.VMEM((tile_h * W, Pp), jnp.float32)],
        ),
        compiler_params=pltpu.CompilerParams(
            # both grid axes are independent -> megacore/TC sharding
            dimension_semantics=("parallel", "parallel"),
            # explicit VMEM budget; shrink tile_h rather than this on v7x
            vmem_limit_bytes=64 * 1024 * 1024,
        ),
    )(x_slabs, w1k, w2k, w3k, w4k, wpk)

    # strip channel padding, back to NCHW
    return jnp.transpose(out[..., :P], (0, 3, 1, 2))


def init_weights(key, inplanes, planes):
    """Deterministic weights in PyTorch layout (out, in, kh, kw) with
    kaiming-normal-like std = sqrt(2 / fan_in), matching the module init."""
    ks = jax.random.split(key, 5)

    def kaiming(k, shape_oihw):
        o, i, kh, kw = shape_oihw
        std = (2.0 / (i * kh * kw)) ** 0.5
        return jax.random.normal(k, shape_oihw, jnp.float32) * std

    return (kaiming(ks[0], (planes, inplanes, 1, 1)),
            kaiming(ks[1], (planes, inplanes, 3, 3)),
            kaiming(ks[2], (planes, inplanes, 3, 3)),
            kaiming(ks[3], (planes, inplanes, 3, 3)),
            kaiming(ks[4], (planes, 4 * planes, 1, 1)))


def reference_forward(x_nchw, weights, *, match_kernel_precision=True):
    """Pure-JAX reference matching PyTorch nn.Conv2d semantics (NCHW / OIHW).
    With match_kernel_precision=True, inputs/weights/branch activations are
    rounded to bf16 (the kernel's MXU input precision) but accumulated in f32,
    so only summation-order differences remain."""
    w1_t, w2_t, w3_t, w4_t, wp_t = weights
    dn = ("NCHW", "OIHW", "NCHW")

    def q(a):
        if match_kernel_precision:
            return a.astype(jnp.bfloat16).astype(jnp.float32)
        return a

    def conv(x, w, rate, pad):
        return lax.conv_general_dilated(
            x, w, window_strides=(1, 1), padding=[(pad, pad), (pad, pad)],
            rhs_dilation=(rate, rate), dimension_numbers=dn)

    x = q(x_nchw)
    x1 = q(jax.nn.relu(conv(x, q(w1_t), 1, 0)))
    x2 = q(jax.nn.relu(conv(x, q(w2_t), 2, 2)))
    x3 = q(jax.nn.relu(conv(x, q(w3_t), 4, 4)))
    x4 = q(jax.nn.relu(conv(x, q(w4_t), 8, 8)))
    cat = jnp.concatenate([x1, x2, x3, x4], axis=1)
    return jax.nn.relu(conv(cat, q(wp_t), 1, 0))


if __name__ == "__main__":
    key = jax.random.PRNGKey(0)
    k_x, k_w = jax.random.split(key)

    N, Cin, H, W = 2, 4, 16, 16
    planes = 8

    x = jax.random.normal(k_x, (N, Cin, H, W), jnp.float32)
    weights = init_weights(k_w, Cin, planes)

    # tile_h=8 -> 2 row tiles per image, exercising the (N, T) tiled grid.
    fwd = jax.jit(functools.partial(aspp_forward, tile_h=8))
    out = jax.block_until_ready(fwd(x, weights))
    assert out.shape == (N, planes, H, W)

    ref_bf16 = reference_forward(x, weights, match_kernel_precision=True)
    ref_f32 = reference_forward(x, weights, match_kernel_precision=False)
    assert jnp.allclose(out, ref_bf16, atol=2e-2, rtol=2e-2), (
        f"max abs err vs bf16-matched ref: {jnp.max(jnp.abs(out - ref_bf16))}")
    assert jnp.allclose(out, ref_f32, atol=1e-1, rtol=1e-1), (
        f"max abs err vs f32 ref: {jnp.max(jnp.abs(out - ref_f32))}")

    print("KERNEL_OK")
</pallas_src>

<mosaic_0001>
module attributes {stable_mosaic.version = 11 : i64} {
  func.func @_aspp_kernel(%arg0: i32, %arg1: i32, %arg2: memref<1x24x32x128xbf16, #tpu.memory_space<vmem>>, %arg3: memref<128x128xbf16, #tpu.memory_space<vmem>>, %arg4: memref<1152x128xbf16, #tpu.memory_space<vmem>>, %arg5: memref<1152x128xbf16, #tpu.memory_space<vmem>>, %arg6: memref<1152x128xbf16, #tpu.memory_space<vmem>>, %arg7: memref<4x128x128xbf16, #tpu.memory_space<vmem>>, %arg8: memref<1x8x16x128xf32, #tpu.memory_space<vmem>>, %arg9: memref<128x128xf32, #tpu.memory_space<vmem>>) attributes {dimension_semantics = [#tpu.dimension_semantics<parallel>, #tpu.dimension_semantics<parallel>], iteration_bounds = array<i64: 2, 2>, scalar_prefetch = 0 : i64, scratch_operands = 1 : i64, tpu.core_type = #tpu.core_type<tc>, window_params = [{transform_indices = @transform_0, window_bounds = array<i64: 1, 24, 32, 128>}, {pipeline_mode = #tpu.pipeline_mode<synchronous>, transform_indices = @transform_1, window_bounds = array<i64: 128, 128>}, {pipeline_mode = #tpu.pipeline_mode<synchronous>, transform_indices = @transform_2, window_bounds = array<i64: 1152, 128>}, {pipeline_mode = #tpu.pipeline_mode<synchronous>, transform_indices = @transform_3, window_bounds = array<i64: 1152, 128>}, {pipeline_mode = #tpu.pipeline_mode<synchronous>, transform_indices = @transform_4, window_bounds = array<i64: 1152, 128>}, {pipeline_mode = #tpu.pipeline_mode<synchronous>, transform_indices = @transform_5, window_bounds = array<i64: 4, 128, 128>}, {transform_indices = @transform_6, window_bounds = array<i64: 1, 8, 16, 128>}]} {
    %c0 = arith.constant 0 : index
    %c0_0 = arith.constant 0 : index
    %c0_1 = arith.constant 0 : index
    %c0_2 = arith.constant 0 : index
    %0 = vector.load %arg2[%c0, %c0_0, %c0_1, %c0_2] : memref<1x24x32x128xbf16, #tpu.memory_space<vmem>>, vector<1x24x32x128xbf16>
    %1 = vector.shape_cast %0 : vector<1x24x32x128xbf16> to vector<24x32x128xbf16>
    %2 = vector.extract_strided_slice %1 {offsets = [8, 8, 0], sizes = [8, 16, 128], strides = [1, 1, 1]} : vector<24x32x128xbf16> to vector<8x16x128xbf16>
    %3 = vector.shape_cast %2 : vector<8x16x128xbf16> to vector<128x128xbf16>
    %c0_3 = arith.constant 0 : index
    %c0_4 = arith.constant 0 : index
    %4 = vector.load %arg3[%c0_3, %c0_4] : memref<128x128xbf16, #tpu.memory_space<vmem>>, vector<128x128xbf16>
    %cst = arith.constant dense<0.000000e+00> : vector<128x128xf32>
    %5 = tpu.matmul %3, %4, %cst {dimension_numbers = #tpu.dot_dimension_numbers<[1], [0], [0], [1], [0, 0, 1, 1], [], []>} : vector<128x128xbf16>, vector<128x128xbf16>, vector<128x128xf32> -> vector<128x128xf32>
    %cst_5 = arith.constant 0.000000e+00 : f32
    %6 = vector.broadcast %cst_5 : f32 to vector<128x128xf32>
    %7 = arith.maximumf %5, %6 : vector<128x128xf32>
    %8 = arith.truncf %7 : vector<128x128xf32> to vector<128x128xbf16>
    %c0_6 = arith.constant 0 : index
    %c0_7 = arith.constant 0 : index
    %c0_8 = arith.constant 0 : index
    %9 = vector.load %arg7[%c0_6, %c0_7, %c0_8] : memref<4x128x128xbf16, #tpu.memory_space<vmem>>, vector<1x128x128xbf16>
    %10 = vector.shape_cast %9 : vector<1x128x128xbf16> to vector<128x128xbf16>
    %cst_9 = arith.constant dense<0.000000e+00> : vector<128x128xf32>
    %11 = tpu.matmul %8, %10, %cst_9 {dimension_numbers = #tpu.dot_dimension_numbers<[1], [0], [0], [1], [0, 0, 1, 1], [], []>} : vector<128x128xbf16>, vector<128x128xbf16>, vector<128x128xf32> -> vector<128x128xf32>
    %c0_10 = arith.constant 0 : index
    %c0_11 = arith.constant 0 : index
    %12 = vector.load %arg9[%c0_10, %c0_11] : memref<128x128xf32, #tpu.memory_space<vmem>>, vector<128x128xf32>
    tpu.vector_store %arg9[%c0_10, %c0_11], %11 {strides = array<i32>} : memref<128x128xf32, #tpu.memory_space<vmem>>, vector<128x128xf32>,
    %13 = vector.extract_strided_slice %1 {offsets = [6, 6, 0], sizes = [8, 16, 128], strides = [1, 1, 1]} : vector<24x32x128xbf16> to vector<8x16x128xbf16>
    %14 = vector.extract_strided_slice %1 {offsets = [6, 8, 0], sizes = [8, 16, 128], strides = [1, 1, 1]} : vector<24x32x128xbf16> to vector<8x16x128xbf16>
    %15 = vector.extract_strided_slice %1 {offsets = [6, 10, 0], sizes = [8, 16, 128], strides = [1, 1, 1]} : vector<24x32x128xbf16> to vector<8x16x128xbf16>
    %16 = vector.extract_strided_slice %1 {offsets = [8, 6, 0], sizes = [8, 16, 128], strides = [1, 1, 1]} : vector<24x32x128xbf16> to vector<8x16x128xbf16>
    %17 = vector.extract_strided_slice %1 {offsets = [8, 8, 0], sizes = [8, 16, 128], strides = [1, 1, 1]} : vector<24x32x128xbf16> to vector<8x16x128xbf16>
    %18 = vector.extract_strided_slice %1 {offsets = [8, 10, 0], sizes = [8, 16, 128], strides = [1, 1, 1]} : vector<24x32x128xbf16> to vector<8x16x128xbf16>
    %19 = vector.extract_strided_slice %1 {offsets = [10, 6, 0], sizes = [8, 16, 128], strides = [1, 1, 1]} : vector<24x32x128xbf16> to vector<8x16x128xbf16>
    %20 = vector.extract_strided_slice %1 {offsets = [10, 8, 0], sizes = [8, 16, 128], strides = [1, 1, 1]} : vector<24x32x128xbf16> to vector<8x16x128xbf16>
    %21 = vector.extract_strided_slice %1 {offsets = [10, 10, 0], sizes = [8, 16, 128], strides = [1, 1, 1]} : vector<24x32x128xbf16> to vector<8x16x128xbf16>
    %22 = tpu.concatenate %13, %14, %15, %16, %17, %18, %19, %20, %21 in 2 : vector<8x16x128xbf16>, vector<8x16x128xbf16>, vector<8x16x128xbf16>, vector<8x16x128xbf16>, vector<8x16x128xbf16>, vector<8x16x128xbf16>, vector<8x16x128xbf16>, vector<8x16x128xbf16>, vector<8x16x128xbf16> -> vector<8x16x1152xbf16>
    %23 = vector.shape_cast %22 : vector<8x16x1152xbf16> to vector<128x1152xbf16>
    %c0_12 = arith.constant 0 : index
    %c0_13 = arith.constant 0 : index
    %24 = vector.load %arg4[%c0_12, %c0_13] : memref<1152x128xbf16, #tpu.memory_space<vmem>>, vector<1152x128xbf16>
    %cst_14 = arith.constant dense<0.000000e+00> : vector<128x128xf32>
    %25 = tpu.matmul %23, %24, %cst_14 {dimension_numbers = #tpu.dot_dimension_numbers<[1], [0], [0], [1], [0, 0, 1, 1], [], []>} : vector<128x1152xbf16>, vector<1152x128xbf16>, vector<128x128xf32> -> vector<128x128xf32>
    %cst_15 = arith.constant 0.000000e+00 : f32
    %26 = vector.broadcast %cst_15 : f32 to vector<128x128xf32>
    %27 = arith.maximumf %25, %26 : vector<128x128xf32>
    %28 = arith.truncf %27 : vector<128x128xf32> to vector<128x128xbf16>
    %c0_16 = arith.constant 0 : index
    %c0_17 = arith.constant 0 : index
    %29 = vector.load %arg9[%c0_16, %c0_17] : memref<128x128xf32, #tpu.memory_space<vmem>>, vector<128x128xf32>
    %c1 = arith.constant 1 : index
    %c0_18 = arith.constant 0 : index
    %c0_19 = arith.constant 0 : index
    %30 = vector.load %arg7[%c1, %c0_18, %c0_19] : memref<4x128x128xbf16, #tpu.memory_space<vmem>>, vector<1x128x128xbf16>
    %31 = vector.shape_cast %30 : vector<1x128x128xbf16> to vector<128x128xbf16>
    %cst_20 = arith.constant dense<0.000000e+00> : vector<128x128xf32>
    %32 = tpu.matmul %28, %31, %cst_20 {dimension_numbers = #tpu.dot_dimension_numbers<[1], [0], [0], [1], [0, 0, 1, 1], [], []>} : vector<128x128xbf16>, vector<128x128xbf16>, vector<128x128xf32> -> vector<128x128xf32>
    %33 = arith.addf %29, %32 : vector<128x128xf32>
    %c0_21 = arith.constant 0 : index
    %c0_22 = arith.constant 0 : index
    %34 = vector.load %arg9[%c0_21, %c0_22] : memref<128x128xf32, #tpu.memory_space<vmem>>, vector<128x128xf32>
    tpu.vector_store %arg9[%c0_21, %c0_22], %33 {strides = array<i32>} : memref<128x128xf32, #tpu.memory_space<vmem>>, vector<128x128xf32>,
    %35 = vector.extract_strided_slice %1 {offsets = [4, 4, 0], sizes = [8, 16, 128], strides = [1, 1, 1]} : vector<24x32x128xbf16> to vector<8x16x128xbf16>
    %36 = vector.extract_strided_slice %1 {offsets = [4, 8, 0], sizes = [8, 16, 128], strides = [1, 1, 1]} : vector<24x32x128xbf16> to vector<8x16x128xbf16>
    %37 = vector.extract_strided_slice %1 {offsets = [4, 12, 0], sizes = [8, 16, 128], strides = [1, 1, 1]} : vector<24x32x128xbf16> to vector<8x16x128xbf16>
    %38 = vector.extract_strided_slice %1 {offsets = [8, 4, 0], sizes = [8, 16, 128], strides = [1, 1, 1]} : vector<24x32x128xbf16> to vector<8x16x128xbf16>
    %39 = vector.extract_strided_slice %1 {offsets = [8, 8, 0], sizes = [8, 16, 128], strides = [1, 1, 1]} : vector<24x32x128xbf16> to vector<8x16x128xbf16>
    %40 = vector.extract_strided_slice %1 {offsets = [8, 12, 0], sizes = [8, 16, 128], strides = [1, 1, 1]} : vector<24x32x128xbf16> to vector<8x16x128xbf16>
    %41 = vector.extract_strided_slice %1 {offsets = [12, 4, 0], sizes = [8, 16, 128], strides = [1, 1, 1]} : vector<24x32x128xbf16> to vector<8x16x128xbf16>
    %42 = vector.extract_strided_slice %1 {offsets = [12, 8, 0], sizes = [8, 16, 128], strides = [1, 1, 1]} : vector<24x32x128xbf16> to vector<8x16x128xbf16>
    %43 = vector.extract_strided_slice %1 {offsets = [12, 12, 0], sizes = [8, 16, 128], strides = [1, 1, 1]} : vector<24x32x128xbf16> to vector<8x16x128xbf16>
    %44 = tpu.concatenate %35, %36, %37, %38, %39, %40, %41, %42, %43 in 2 : vector<8x16x128xbf16>, vector<8x16x128xbf16>, vector<8x16x128xbf16>, vector<8x16x128xbf16>, vector<8x16x128xbf16>, vector<8x16x128xbf16>, vector<8x16x128xbf16>, vector<8x16x128xbf16>, vector<8x16x128xbf16> -> vector<8x16x1152xbf16>
    %45 = vector.shape_cast %44 : vector<8x16x1152xbf16> to vector<128x1152xbf16>
    %c0_23 = arith.constant 0 : index
    %c0_24 = arith.constant 0 : index
    %46 = vector.load %arg5[%c0_23, %c0_24] : memref<1152x128xbf16, #tpu.memory_space<vmem>>, vector<1152x128xbf16>
    %cst_25 = arith.constant dense<0.000000e+00> : vector<128x128xf32>
    %47 = tpu.matmul %45, %46, %cst_25 {dimension_numbers = #tpu.dot_dimension_numbers<[1], [0], [0], [1], [0, 0, 1, 1], [], []>} : vector<128x1152xbf16>, vector<1152x128xbf16>, vector<128x128xf32> -> vector<128x128xf32>
    %cst_26 = arith.constant 0.000000e+00 : f32
    %48 = vector.broadcast %cst_26 : f32 to vector<128x128xf32>
    %49 = arith.maximumf %47, %48 : vector<128x128xf32>
    %50 = arith.truncf %49 : vector<128x128xf32> to vector<128x128xbf16>
    %c0_27 = arith.constant 0 : index
    %c0_28 = arith.constant 0 : index
    %51 = vector.load %arg9[%c0_27, %c0_28] : memref<128x128xf32, #tpu.memory_space<vmem>>, vector<128x128xf32>
    %c2 = arith.constant 2 : index
    %c0_29 = arith.constant 0 : index
    %c0_30 = arith.constant 0 : index
    %52 = vector.load %arg7[%c2, %c0_29, %c0_30] : memref<4x128x128xbf16, #tpu.memory_space<vmem>>, vector<1x128x128xbf16>
    %53 = vector.shape_cast %52 : vector<1x128x128xbf16> to vector<128x128xbf16>
    %cst_31 = arith.constant dense<0.000000e+00> : vector<128x128xf32>
    %54 = tpu.matmul %50, %53, %cst_31 {dimension_numbers = #tpu.dot_dimension_numbers<[1], [0], [0], [1], [0, 0, 1, 1], [], []>} : vector<128x128xbf16>, vector<128x128xbf16>, vector<128x128xf32> -> vector<128x128xf32>
    %55 = arith.addf %51, %54 : vector<128x128xf32>
    %c0_32 = arith.constant 0 : index
    %c0_33 = arith.constant 0 : index
    %56 = vector.load %arg9[%c0_32, %c0_33] : memref<128x128xf32, #tpu.memory_space<vmem>>, vector<128x128xf32>
    tpu.vector_store %arg9[%c0_32, %c0_33], %55 {strides = array<i32>} : memref<128x128xf32, #tpu.memory_space<vmem>>, vector<128x128xf32>,
    %57 = vector.extract_strided_slice %1 {offsets = [0, 0, 0], sizes = [8, 16, 128], strides = [1, 1, 1]} : vector<24x32x128xbf16> to vector<8x16x128xbf16>
    %58 = vector.extract_strided_slice %1 {offsets = [0, 8, 0], sizes = [8, 16, 128], strides = [1, 1, 1]} : vector<24x32x128xbf16> to vector<8x16x128xbf16>
    %59 = vector.extract_strided_slice %1 {offsets = [0, 16, 0], sizes = [8, 16, 128], strides = [1, 1, 1]} : vector<24x32x128xbf16> to vector<8x16x128xbf16>
    %60 = vector.extract_strided_slice %1 {offsets = [8, 0, 0], sizes = [8, 16, 128], strides = [1, 1, 1]} : vector<24x32x128xbf16> to vector<8x16x128xbf16>
    %61 = vector.extract_strided_slice %1 {offsets = [8, 8, 0], sizes = [8, 16, 128], strides = [1, 1, 1]} : vector<24x32x128xbf16> to vector<8x16x128xbf16>
    %62 = vector.extract_strided_slice %1 {offsets = [8, 16, 0], sizes = [8, 16, 128], strides = [1, 1, 1]} : vector<24x32x128xbf16> to vector<8x16x128xbf16>
    %63 = vector.extract_strided_slice %1 {offsets = [16, 0, 0], sizes = [8, 16, 128], strides = [1, 1, 1]} : vector<24x32x128xbf16> to vector<8x16x128xbf16>
    %64 = vector.extract_strided_slice %1 {offsets = [16, 8, 0], sizes = [8, 16, 128], strides = [1, 1, 1]} : vector<24x32x128xbf16> to vector<8x16x128xbf16>
    %65 = vector.extract_strided_slice %1 {offsets = [16, 16, 0], sizes = [8, 16, 128], strides = [1, 1, 1]} : vector<24x32x128xbf16> to vector<8x16x128xbf16>
    %66 = tpu.concatenate %57, %58, %59, %60, %61, %62, %63, %64, %65 in 2 : vector<8x16x128xbf16>, vector<8x16x128xbf16>, vector<8x16x128xbf16>, vector<8x16x128xbf16>, vector<8x16x128xbf16>, vector<8x16x128xbf16>, vector<8x16x128xbf16>, vector<8x16x128xbf16>, vector<8x16x128xbf16> -> vector<8x16x1152xbf16>
    %67 = vector.shape_cast %66 : vector<8x16x1152xbf16> to vector<128x1152xbf16>
    %c0_34 = arith.constant 0 : index
    %c0_35 = arith.constant 0 : index
    %68 = vector.load %arg6[%c0_34, %c0_35] : memref<1152x128xbf16, #tpu.memory_space<vmem>>, vector<1152x128xbf16>
    %cst_36 = arith.constant dense<0.000000e+00> : vector<128x128xf32>
    %69 = tpu.matmul %67, %68, %cst_36 {dimension_numbers = #tpu.dot_dimension_numbers<[1], [0], [0], [1], [0, 0, 1, 1], [], []>} : vector<128x1152xbf16>, vector<1152x128xbf16>, vector<128x128xf32> -> vector<128x128xf32>
    %cst_37 = arith.constant 0.000000e+00 : f32
    %70 = vector.broadcast %cst_37 : f32 to vector<128x128xf32>
    %71 = arith.maximumf %69, %70 : vector<128x128xf32>
    %72 = arith.truncf %71 : vector<128x128xf32> to vector<128x128xbf16>
    %c0_38 = arith.constant 0 : index
    %c0_39 = arith.constant 0 : index
    %73 = vector.load %arg9[%c0_38, %c0_39] : memref<128x128xf32, #tpu.memory_space<vmem>>, vector<128x128xf32>
    %c3 = arith.constant 3 : index
    %c0_40 = arith.constant 0 : index
    %c0_41 = arith.constant 0 : index
    %74 = vector.load %arg7[%c3, %c0_40, %c0_41] : memref<4x128x128xbf16, #tpu.memory_space<vmem>>, vector<1x128x128xbf16>
    %75 = vector.shape_cast %74 : vector<1x128x128xbf16> to vector<128x128xbf16>
    %cst_42 = arith.constant dense<0.000000e+00> : vector<128x128xf32>
    %76 = tpu.matmul %72, %75, %cst_42 {dimension_numbers = #tpu.dot_dimension_numbers<[1], [0], [0], [1], [0, 0, 1, 1], [], []>} : vector<128x128xbf16>, vector<128x128xbf16>, vector<128x128xf32> -> vector<128x128xf32>
    %77 = arith.addf %73, %76 : vector<128x128xf32>
    %c0_43 = arith.constant 0 : index
    %c0_44 = arith.constant 0 : index
    %78 = vector.load %arg9[%c0_43, %c0_44] : memref<128x128xf32, #tpu.memory_space<vmem>>, vector<128x128xf32>
    tpu.vector_store %arg9[%c0_43, %c0_44], %77 {strides = array<i32>} : memref<128x128xf32, #tpu.memory_space<vmem>>, vector<128x128xf32>,
    %c0_45 = arith.constant 0 : index
    %c0_46 = arith.constant 0 : index
    %79 = vector.load %arg9[%c0_45, %c0_46] : memref<128x128xf32, #tpu.memory_space<vmem>>, vector<128x128xf32>
    %cst_47 = arith.constant 0.000000e+00 : f32
    %80 = vector.broadcast %cst_47 : f32 to vector<128x128xf32>
    %81 = arith.maximumf %79, %80 : vector<128x128xf32>
    %82 = vector.shape_cast %81 : vector<128x128xf32> to vector<8x16x128xf32>
    %c0_48 = arith.constant 0 : index
    %c0_49 = arith.constant 0 : index
    %c0_50 = arith.constant 0 : index
    %c0_51 = arith.constant 0 : index
    %83 = vector.load %arg8[%c0_48, %c0_49, %c0_50, %c0_51] : memref<1x8x16x128xf32, #tpu.memory_space<vmem>>, vector<1x8x16x128xf32>
    %84 = vector.shape_cast %83 : vector<1x8x16x128xf32> to vector<8x16x128xf32>
    %85 = vector.shape_cast %82 : vector<8x16x128xf32> to vector<1x8x16x128xf32>
    tpu.vector_store %arg8[%c0_48, %c0_49, %c0_50, %c0_51], %85 {strides = array<i32>} : memref<1x8x16x128xf32, #tpu.memory_space<vmem>>, vector<1x8x16x128xf32>,
    return
  }
  func.func @transform_0(%arg0: i32, %arg1: i32) -> (i32, i32, i32, i32) {
    %c2_i32 = arith.constant 2 : i32
    %0 = arith.muli %arg0, %c2_i32 : i32
    %1 = arith.addi %0, %arg1 : i32
    %c0_i32 = arith.constant 0 : i32
    %c0_i32_0 = arith.constant 0 : i32
    %c0_i32_1 = arith.constant 0 : i32
    %c0_i32_2 = arith.constant 0 : i32
    return %1, %c0_i32, %c0_i32_0, %c0_i32_1 : i32, i32, i32, i32
  }
  func.func @transform_1(%arg0: i32, %arg1: i32) -> (i32, i32) {
    %c0_i32 = arith.constant 0 : i32
    %c0_i32_0 = arith.constant 0 : i32
    %c0_i32_1 = arith.constant 0 : i32
    return %c0_i32, %c0_i32_0 : i32, i32
  }
  func.func @transform_2(%arg0: i32, %arg1: i32) -> (i32, i32) {
    %c0_i32 = arith.constant 0 : i32
    %c0_i32_0 = arith.constant 0 : i32
    %c0_i32_1 = arith.constant 0 : i32
    return %c0_i32, %c0_i32_0 : i32, i32
  }
  func.func @transform_3(%arg0: i32, %arg1: i32) -> (i32, i32) {
    %c0_i32 = arith.constant 0 : i32
    %c0_i32_0 = arith.constant 0 : i32
    %c0_i32_1 = arith.constant 0 : i32
    return %c0_i32, %c0_i32_0 : i32, i32
  }
  func.func @transform_4(%arg0: i32, %arg1: i32) -> (i32, i32) {
    %c0_i32 = arith.constant 0 : i32
    %c0_i32_0 = arith.constant 0 : i32
    %c0_i32_1 = arith.constant 0 : i32
    return %c0_i32, %c0_i32_0 : i32, i32
  }
  func.func @transform_5(%arg0: i32, %arg1: i32) -> (i32, i32, i32) {
    %c0_i32 = arith.constant 0 : i32
    %c0_i32_0 = arith.constant 0 : i32
    %c0_i32_1 = arith.constant 0 : i32
    %c0_i32_2 = arith.constant 0 : i32
    return %c0_i32, %c0_i32_0, %c0_i32_1 : i32, i32, i32
  }
  func.func @transform_6(%arg0: i32, %arg1: i32) -> (i32, i32, i32, i32) {
    %c0_i32 = arith.constant 0 : i32
    %c0_i32_0 = arith.constant 0 : i32
    %c0_i32_1 = arith.constant 0 : i32
    return %arg0, %arg1, %c0_i32, %c0_i32_0 : i32, i32, i32, i32
  }
}

</mosaic_0001>

<llo_original>
// kernel: aspp_forward.1
$region0: #{aspp_forward.1}
  #allocation0 [shape = 'u32[]', space=smem, size = 0x4, offset = 0x4, fixed_abs, tag = 'smem constant byte address 0x4 - core index']
  #allocation1 [shape = 'u32[144,128]{1,0:T(1,128)}', space=vmem, size = 0x12000, scoped, tag = 'internal scratch']
  #allocation2 [shape = 'f32[128,128]{1,0:T(8,128)}', space=vmem, size = 0x10000, scoped, tag = 'scratch operand']
  %s0 = inlined_call_operand.hbm [shape: bf16[4,24,32,128], index: 0, kind: input, shape index: {}]
  %s1 = inlined_call_operand.hbm [shape: bf16[128,128], index: 1, kind: input, shape index: {}]
  %s2 = inlined_call_operand.hbm [shape: bf16[1152,128], index: 2, kind: input, shape index: {}]
  %s3 = inlined_call_operand.hbm [shape: bf16[1152,128], index: 3, kind: input, shape index: {}]
  %s4 = inlined_call_operand.hbm [shape: bf16[1152,128], index: 4, kind: input, shape index: {}]
  %s5 = inlined_call_operand.hbm [shape: bf16[4,128,128], index: 5, kind: input, shape index: {}]
  %s6 = inlined_call_operand.hbm [shape: f32[2,16,16,128], index: 6, kind: output, shape index: {}]
  %s7 = sld [smem:[#allocation0]]
  $region81: #{aspp_forward.1} parent=0
    _
  %s9 = ssub.s32 1, %s7
  %s10 = scalar_select 0, %s9, %s7
  $region1: #{aspp_forward.1} parent=0
    #allocation3 [shape = 'u8[393216]{0}', space=vmem, size = 0x60000, scoped, tag = 'input window, operand 0']
    #allocation4 [shape = 's32[2]{0}', space=sflag, size = 0x8, scoped, tag = 'scoped memory for aspp_forward.1']
    #allocation5 [shape = 's32[2]{0}', space=sflag, size = 0x8, scoped, tag = 'scoped memory for aspp_forward.1']
    #allocation6 [shape = 'u8[32768]{0}', space=vmem, size = 0x8000, scoped, tag = 'input window, operand 1, single buffered']
    #allocation7 [shape = 's32[1]{0}', space=sflag, size = 0x4, scoped, tag = 'scoped memory for aspp_forward.1']
    #allocation8 [shape = 'u8[294912]{0}', space=vmem, size = 0x48000, scoped, tag = 'input window, operand 2, single buffered']
    #allocation9 [shape = 'u8[294912]{0}', space=vmem, size = 0x48000, scoped, tag = 'input window, operand 3, single buffered']
    #allocation10 [shape = 's32[1]{0}', space=sflag, size = 0x4, scoped, tag = 'scoped memory for aspp_forward.1']
    #allocation11 [shape = 'u8[294912]{0}', space=vmem, size = 0x48000, scoped, tag = 'input window, operand 4, single buffered']
    #allocation12 [shape = 'u8[131072]{0}', space=vmem, size = 0x20000, scoped, tag = 'input window, operand 5, single buffered']
    #allocation13 [shape = 's32[1]{0}', space=sflag, size = 0x4, scoped, tag = 'scoped memory for aspp_forward.1']
    #allocation14 [shape = 'u8[131072]{0}', space=vmem, size = 0x20000, scoped, tag = 'output window, operand 0']
    %11 = vsyncpa [#allocation4], 0
    %s12 = scalar_lea.sflag [#allocation4], 1
    %13 = vsyncpa %s12, 0
    %14 = vsyncpa [#allocation7], 0
    %15 = vsyncpa [#allocation10], 0
    %16 = vsyncpa [#allocation13], 0
    %17 = vsyncpa [#allocation5], 0
    %s18 = scalar_lea.sflag [#allocation5], 1
    %19 = vsyncpa %s18, 0
    loop: start=0, step=1, limit=6
    $region2: #{aspp_forward.1} parent=1 // loop_pre_header
      _
    $region3: #{aspp_forward.1} parent=1 // loop_header
      %s21 = sphi 0, %s25
      %p22 = scmp.ge.s32.totalorder %s21, 6
      %s28 = sphi 0, %s40
      %s29 = sphi 0, %s36
      %s30 = sphi 0, %s28
      %s31 = sphi 0, %s29
      %s32 = sphi 0, %s30
      %s33 = sphi 0, %s31
      %s47 = sphi 0, %s49
      %s50 = sphi 0, %s47
      %s51 = sphi 0, %s50
      %s67 = sphi 0, %s51
      %s71 = sphi 0, %s71
      %s73 = sphi 0, %s71
      %s74 = sphi 0, %s73
      %s88 = sphi 0, %s74
      %s92 = sphi 0, %s92
      %s94 = sphi 0, %s92
      %s95 = sphi 0, %s94
      %s109 = sphi 0, %s95
      %s113 = sphi 0, %s113
      %s115 = sphi 0, %s113
      %s116 = sphi 0, %s115
      %s130 = sphi 0, %s116
      %s134 = sphi 0, %s134
      %s136 = sphi 0, %s134
      %s137 = sphi 0, %s136
      %s151 = sphi 0, %s137
      %s155 = sphi 0, %s155
      %s157 = sphi 0, %s155
      %s158 = sphi 0, %s157
      %s172 = sphi 0, %s158
      %s180 = sphi 0, %s182
      %s183 = sphi 0, %s180
      %s184 = sphi 0, %s183
      %s200 = sphi 0, %s184
    $region4: #{aspp_forward.1} parent=1 // loop_header_branch
      %24 = sbr.rel (%p22) target = $region8
    $region5: #{aspp_forward.1} parent=1 // loop_body
      %s26 = ssub.s32 %s21, 1
      %s27 = ssub.s32 %s21, 2
      %s34 = sadd.s32 1, %s29
      %p35 = scmp.ge.s32.totalorder %s34, 2
      %s36 = scalar_select %p35, 0, %s34
      %s37 = sadd.s32 1, %s28
      %s38 = scalar_select %p35, %s37, %s28
      %p39 = scmp.ge.s32.totalorder %s38, 2
      %s40 = scalar_select %p39, 0, %s38
      %s41 = smul.u32 %s28, 2
      %s42 = sadd.s32 %s41, %s29
      %s43 = smul.u32 %s40, 2
      %s44 = sadd.s32 %s43, %s36
      %s45 = ssub.s32 %s42, %s44
      %p46 = scmp.eq.s32.totalorder %s45, 0
      %s48 = sadd.s32 %s47, 1
      %s49 = scalar_select %p46, %s47, %s48
      %p52 = pneg %p46
      %p53 = scmp.eq.s32.totalorder %s21, 3
      %p54 = por %p52, %p53
      %p55 = scmp.ne.s32.totalorder %s47, %s50
      %p56 = scmp.eq.s32.totalorder %s21, 0
      %p57 = por %p55, %p56
      %p58 = scmp.ne.s32.totalorder %s47, %s50
      %p59 = scmp.eq.s32.totalorder %s26, 3
      %p60 = por %p58, %p59
      %p61 = scmp.ne.s32.totalorder %s50, %s51
      %p62 = scmp.eq.s32.totalorder %s26, 0
      %p63 = por %p61, %p62
      %p64 = scmp.ne.s32.totalorder %s50, %s51
      %p65 = scmp.eq.s32.totalorder %s27, 3
      %p66 = por %p64, %p65
      %p68 = scmp.ne.s32.totalorder %s51, %s67
      %p69 = scmp.eq.s32.totalorder %s27, 0
      %p70 = por %p68, %p69
      %s72 = sadd.s32 %s71, 1
      %p75 = scmp.eq.s32.totalorder %s21, 3
      %p76 = scmp.ne.s32.totalorder %s71, %s73
      %p77 = scmp.eq.s32.totalorder %s21, 0
      %p78 = por %p76, %p77
      %p79 = scmp.ne.s32.totalorder %s71, %s73
      %p80 = scmp.eq.s32.totalorder %s26, 3
      %p81 = por %p79, %p80
      %p82 = scmp.ne.s32.totalorder %s73, %s74
      %p83 = scmp.eq.s32.totalorder %s26, 0
      %p84 = por %p82, %p83
      %p85 = scmp.ne.s32.totalorder %s73, %s74
      %p86 = scmp.eq.s32.totalorder %s27, 3
      %p87 = por %p85, %p86
      %p89 = scmp.ne.s32.totalorder %s74, %s88
      %p90 = scmp.eq.s32.totalorder %s27, 0
      %p91 = por %p89, %p90
      %s93 = sadd.s32 %s92, 1
      %p96 = scmp.eq.s32.totalorder %s21, 3
      %p97 = scmp.ne.s32.totalorder %s92, %s94
      %p98 = scmp.eq.s32.totalorder %s21, 0
      %p99 = por %p97, %p98
      %p100 = scmp.ne.s32.totalorder %s92, %s94
      %p101 = scmp.eq.s32.totalorder %s26, 3
      %p102 = por %p100, %p101
      %p103 = scmp.ne.s32.totalorder %s94, %s95
      %p104 = scmp.eq.s32.totalorder %s26, 0
      %p105 = por %p103, %p104
      %p106 = scmp.ne.s32.totalorder %s94, %s95
      %p107 = scmp.eq.s32.totalorder %s27, 3
      %p108 = por %p106, %p107
      %p110 = scmp.ne.s32.totalorder %s95, %s109
      %p111 = scmp.eq.s32.totalorder %s27, 0
      %p112 = por %p110, %p111
      %s114 = sadd.s32 %s113, 1
      %p117 = scmp.eq.s32.totalorder %s21, 3
      %p118 = scmp.ne.s32.totalorder %s113, %s115
      %p119 = scmp.eq.s32.totalorder %s21, 0
      %p120 = por %p118, %p119
      %p121 = scmp.ne.s32.totalorder %s113, %s115
      %p122 = scmp.eq.s32.totalorder %s26, 3
      %p123 = por %p121, %p122
      %p124 = scmp.ne.s32.totalorder %s115, %s116
      %p125 = scmp.eq.s32.totalorder %s26, 0
      %p126 = por %p124, %p125
      %p127 = scmp.ne.s32.totalorder %s115, %s116
      %p128 = scmp.eq.s32.totalorder %s27, 3
      %p129 = por %p127, %p128
      %p131 = scmp.ne.s32.totalorder %s116, %s130
      %p132 = scmp.eq.s32.totalorder %s27, 0
      %p133 = por %p131, %p132
      %s135 = sadd.s32 %s134, 1
      %p138 = scmp.eq.s32.totalorder %s21, 3
      %p139 = scmp.ne.s32.totalorder %s134, %s136
      %p140 = scmp.eq.s32.totalorder %s21, 0
      %p141 = por %p139, %p140
      %p142 = scmp.ne.s32.totalorder %s134, %s136
      %p143 = scmp.eq.s32.totalorder %s26, 3
      %p144 = por %p142, %p143
      %p145 = scmp.ne.s32.totalorder %s136, %s137
      %p146 = scmp.eq.s32.totalorder %s26, 0
      %p147 = por %p145, %p146
      %p148 = scmp.ne.s32.totalorder %s136, %s137
      %p149 = scmp.eq.s32.totalorder %s27, 3
      %p150 = por %p148, %p149
      %p152 = scmp.ne.s32.totalorder %s137, %s151
      %p153 = scmp.eq.s32.totalorder %s27, 0
      %p154 = por %p152, %p153
      %s156 = sadd.s32 %s155, 1
      %p159 = scmp.eq.s32.totalorder %s21, 3
      %p160 = scmp.ne.s32.totalorder %s155, %s157
      %p161 = scmp.eq.s32.totalorder %s21, 0
      %p162 = por %p160, %p161
      %p163 = scmp.ne.s32.totalorder %s155, %s157
      %p164 = scmp.eq.s32.totalorder %s26, 3
      %p165 = por %p163, %p164
      %p166 = scmp.ne.s32.totalorder %s157, %s158
      %p167 = scmp.eq.s32.totalorder %s26, 0
      %p168 = por %p166, %p167
      %p169 = scmp.ne.s32.totalorder %s157, %s158
      %p170 = scmp.eq.s32.totalorder %s27, 3
      %p171 = por %p169, %p170
      %p173 = scmp.ne.s32.totalorder %s158, %s172
      %p174 = scmp.eq.s32.totalorder %s27, 0
      %p175 = por %p173, %p174
      %s176 = ssub.s32 %s28, %s40
      %s177 = ssub.s32 %s29, %s36
      %s178 = sor.u32 %s176, %s177
      %p179 = scmp.eq.s32.totalorder %s178, 0
      %s181 = sadd.s32 %s180, 1
      %s182 = scalar_select %p179, %s180, %s181
      %p185 = pneg %p179
      %p186 = scmp.eq.s32.totalorder %s21, 3
      %p187 = por %p185, %p186
      %p188 = scmp.ne.s32.totalorder %s180, %s183
      %p189 = scmp.eq.s32.totalorder %s21, 0
      %p190 = por %p188, %p189
      %p191 = scmp.ne.s32.totalorder %s180, %s183
      %p192 = scmp.eq.s32.totalorder %s26, 3
      %p193 = por %p191, %p192
      %p194 = scmp.ne.s32.totalorder %s183, %s184
      %p195 = scmp.eq.s32.totalorder %s26, 0
      %p196 = por %p194, %p195
      %p197 = scmp.ne.s32.totalorder %s183, %s184
      %p198 = scmp.eq.s32.totalorder %s27, 3
      %p199 = por %p197, %p198
      %p201 = scmp.ne.s32.totalorder %s184, %s200
      %p202 = scmp.eq.s32.totalorder %s27, 0
      %p203 = por %p201, %p202
      %p204 = scmp.le.s32.totalorder 1, %s21
      %p205 = scmp.lt.s32.totalorder %s21, 5
      %p206 = pnand %p204, %p205
      %p207 = pneg %p206
      // Predicated region
      $region9: #{aspp_forward.1} parent=5 // pred_check
        _
      $region10: #{aspp_forward.1} parent=5 // pred_check_branch
        %209 = sbr.rel (%p206) target = $region12
      $region11: #{aspp_forward.1} parent=5 // pred_region
        %s210 = ssub.s32 %s21, 1
        // Predicated region
        $region13: #{aspp_forward.1} parent=11 // pred_check
          %p211 = pneg %p84
        $region14: #{aspp_forward.1} parent=11 // pred_check_branch
          %213 = sbr.rel (%p211) target = $region16
        $region15: #{aspp_forward.1} parent=11 // pred_region
          %s215 = ssub.s32 1024, 1024
          %216 = vsyncadd [#allocation7], %s215
          %s217 = sshll.u32 [#allocation6], 4
          %s218 = int_to_ptr.vmem [resolvable:$true] %s217
          %223 = dma.hbm_to_vmem [thread:$0]  %s1, 1024, %s218, [#allocation7], 64, 64, 4
        $region16: #{aspp_forward.1} parent=11 // pred_fallthru
          _
        // Predicated region
        $region17: #{aspp_forward.1} parent=11 // pred_check
          %p224 = pneg %p105
        $region18: #{aspp_forward.1} parent=11 // pred_check_branch
          %226 = sbr.rel (%p224) target = $region20
        $region19: #{aspp_forward.1} parent=11 // pred_region
          %s228 = ssub.s32 9216, 9216
          %229 = vsyncadd [#allocation7], %s228
          %s230 = sshll.u32 [#allocation8], 4
          %s231 = int_to_ptr.vmem [resolvable:$true] %s230
          %236 = dma.hbm_to_vmem [thread:$0]  %s2, 9216, %s231, [#allocation7], 64, 64, 4
        $region20: #{aspp_forward.1} parent=11 // pred_fallthru
          _
        // Predicated region
        $region21: #{aspp_forward.1} parent=11 // pred_check
          %p237 = pneg %p126
        $region22: #{aspp_forward.1} parent=11 // pred_check_branch
          %239 = sbr.rel (%p237) target = $region24
        $region23: #{aspp_forward.1} parent=11 // pred_region
          %s241 = ssub.s32 9216, 9216
          %242 = vsyncadd [#allocation10], %s241
          %s243 = sshll.u32 [#allocation9], 4
          %s244 = int_to_ptr.vmem [resolvable:$true] %s243
          %249 = dma.hbm_to_vmem [thread:$0]  %s3, 9216, %s244, [#allocation10], 64, 64, 4
        $region24: #{aspp_forward.1} parent=11 // pred_fallthru
          _
        // Predicated region
        $region25: #{aspp_forward.1} parent=11 // pred_check
          %p250 = pneg %p147
        $region26: #{aspp_forward.1} parent=11 // pred_check_branch
          %252 = sbr.rel (%p250) target = $region28
        $region27: #{aspp_forward.1} parent=11 // pred_region
          %s254 = ssub.s32 9216, 9216
          %255 = vsyncadd [#allocation10], %s254
          %s256 = sshll.u32 [#allocation11], 4
          %s257 = int_to_ptr.vmem [resolvable:$true] %s256
          %262 = dma.hbm_to_vmem [thread:$0]  %s4, 9216, %s257, [#allocation10], 64, 64, 4
        $region28: #{aspp_forward.1} parent=11 // pred_fallthru
          _
        // Predicated region
        $region29: #{aspp_forward.1} parent=11 // pred_check
          %p263 = pneg %p168
        $region30: #{aspp_forward.1} parent=11 // pred_check_branch
          %265 = sbr.rel (%p263) target = $region32
        $region31: #{aspp_forward.1} parent=11 // pred_region
          %s267 = ssub.s32 4096, 4096
          %268 = vsyncadd [#allocation13], %s267
          %s269 = sshll.u32 [#allocation12], 4
          %s270 = int_to_ptr.vmem [resolvable:$true] %s269
          %275 = dma.hbm_to_vmem [thread:$0]  %s5, 4096, %s270, [#allocation13], 64, 64, 4
        $region32: #{aspp_forward.1} parent=11 // pred_fallthru
          _
      $region12: #{aspp_forward.1} parent=5 // pred_fallthru
        _
      %p276 = scmp.lt.s32.totalorder %s21, 4
      // Predicated region
      $region33: #{aspp_forward.1} parent=5 // pred_check
        %p277 = pneg %p276
      $region34: #{aspp_forward.1} parent=5 // pred_check_branch
        %279 = sbr.rel (%p277) target = $region36
      $region35: #{aspp_forward.1} parent=5 // pred_region
        // Predicated region
        $region37: #{aspp_forward.1} parent=35 // pred_check
          %p280 = pneg %p57
        $region38: #{aspp_forward.1} parent=35 // pred_check_branch
          %282 = sbr.rel (%p280) target = $region40
        $region39: #{aspp_forward.1} parent=35 // pred_region
          %s283 = sand.u32 %s47, 1
          %s284 = scalar_lea.sflag [#allocation4], %s283
          %s285 = sand.u32 %s47, 1
          %s286 = smul.addr %s285, 384
          %s287 = scalar_lea.vmem [#allocation3], %s286
          %s288 = smul.u32 %s28, 2
          %s289 = sadd.s32 %s288, %s29
          %s291 = ssub.s32 6144, 6144
          %292 = vsyncadd %s284, %s291
          %s293 = smul.addr %s289, 96
          %s294 = smul.addr %s293, 64
          %s295 = scalar_lea.hbm %s0, %s294
          %s296 = sshll.u32 %s287, 4
          %s297 = int_to_ptr.vmem [resolvable:$true] %s296
          %302 = dma.hbm_to_vmem [thread:$0]  %s295, 6144, %s297, %s284, 64, 64, 4
        $region40: #{aspp_forward.1} parent=35 // pred_fallthru
          _
      $region36: #{aspp_forward.1} parent=5 // pred_fallthru
        _
      %p303 = scmp.le.s32.totalorder 1, %s21
      %p304 = scmp.lt.s32.totalorder %s21, 5
      %p305 = pnand %p303, %p304
      %p306 = pneg %p305
      // Predicated region
      $region41: #{aspp_forward.1} parent=5 // pred_check
        _
      $region42: #{aspp_forward.1} parent=5 // pred_check_branch
        %308 = sbr.rel (%p305) target = $region44
      $region43: #{aspp_forward.1} parent=5 // pred_region
        %s309 = ssub.s32 %s21, 1
        %s310 = sand.u32 %s50, 1
        %s311 = scalar_lea.sflag [#allocation4], %s310
        %s312 = sand.u32 %s50, 1
        %s313 = smul.addr %s312, 384
        %s314 = scalar_lea.vmem [#allocation3], %s313
        // Predicated region
        $region45: #{aspp_forward.1} parent=43 // pred_check
          %p315 = pneg %p63
        $region46: #{aspp_forward.1} parent=43 // pred_check_branch
          %317 = sbr.rel (%p315) target = $region48
        $region47: #{aspp_forward.1} parent=43 // pred_region
          %318 = dma.done %s311, 6144
        $region48: #{aspp_forward.1} parent=43 // pred_fallthru
          _
        // Predicated region
        $region49: #{aspp_forward.1} parent=43 // pred_check
          %p319 = pneg %p84
        $region50: #{aspp_forward.1} parent=43 // pred_check_branch
          %321 = sbr.rel (%p319) target = $region52
        $region51: #{aspp_forward.1} parent=43 // pred_region
          %322 = dma.done [#allocation7], 1024
        $region52: #{aspp_forward.1} parent=43 // pred_fallthru
          _
        // Predicated region
        $region53: #{aspp_forward.1} parent=43 // pred_check
          %p323 = pneg %p105
        $region54: #{aspp_forward.1} parent=43 // pred_check_branch
          %325 = sbr.rel (%p323) target = $region56
        $region55: #{aspp_forward.1} parent=43 // pred_region
          %326 = dma.done [#allocation7], 9216
        $region56: #{aspp_forward.1} parent=43 // pred_fallthru
          _
        // Predicated region
        $region57: #{aspp_forward.1} parent=43 // pred_check
          %p327 = pneg %p126
        $region58: #{aspp_forward.1} parent=43 // pred_check_branch
          %329 = sbr.rel (%p327) target = $region60
        $region59: #{aspp_forward.1} parent=43 // pred_region
          %330 = dma.done [#allocation10], 9216
        $region60: #{aspp_forward.1} parent=43 // pred_fallthru
          _
        // Predicated region
        $region61: #{aspp_forward.1} parent=43 // pred_check
          %p331 = pneg %p147
        $region62: #{aspp_forward.1} parent=43 // pred_check_branch
          %333 = sbr.rel (%p331) target = $region64
        $region63: #{aspp_forward.1} parent=43 // pred_region
          %334 = dma.done [#allocation10], 9216
        $region64: #{aspp_forward.1} parent=43 // pred_fallthru
          _
        // Predicated region
        $region65: #{aspp_forward.1} parent=43 // pred_check
          %p335 = pneg %p168
        $region66: #{aspp_forward.1} parent=43 // pred_check_branch
          %337 = sbr.rel (%p335) target = $region68
        $region67: #{aspp_forward.1} parent=43 // pred_region
          %338 = dma.done [#allocation13], 4096
        $region68: #{aspp_forward.1} parent=43 // pred_fallthru
          _
        %s339 = sand.u32 %s50, 1
        %s340 = scalar_lea.sflag [#allocation4], %s339
        %s341 = sand.u32 %s50, 1
        %s342 = smul.addr %s341, 384
        %s343 = scalar_lea.vmem [#allocation3], %s342
        %p344 = pneg %p63
        %p345 = pneg %p60
        %p346 = pneg %p84
        %p347 = pneg %p81
        %p348 = pneg %p105
        %p349 = pneg %p102
        %p350 = pneg %p126
        %p351 = pneg %p123
        %p352 = pneg %p147
        %p353 = pneg %p144
        %p354 = pneg %p168
        %p355 = pneg %p165
        %p356 = pneg %p196
        %p357 = pneg %p193
        %s358 = sand.u32 %s183, 1
        %s359 = scalar_lea.sflag [#allocation5], %s358
        %s360 = sand.u32 %s183, 1
        %s361 = smul.addr %s360, 128
        %s362 = scalar_lea.vmem [#allocation14], %s361
        %s363 = smul.u32 %s30, 2
        %s364 = sadd.s32 %s363, %s31
        %s365 = smul.u32 8, %s31
        %v367 = vld [vmem:[%s314] sm:$0xf]
        %v368 = vld [vmem:[%s314 + $0x4] sm:$0xf]
        %v369 = vld [vmem:[%s314 + $0x8] sm:$0xf]
        %v370 = vld [vmem:[%s314 + $0xc] sm:$0xf]
        %v371 = vld [vmem:[%s314 + $0x10] sm:$0xf]
        %v372 = vld [vmem:[%s314 + $0x14] sm:$0xf]
        %v373 = vld [vmem:[%s314 + $0x18] sm:$0xf]
        %v374 = vld [vmem:[%s314 + $0x1c] sm:$0xf]
        %v375 = vld [vmem:[%s314 + $0x20] sm:$0xf]
        %v376 = vld [vmem:[%s314 + $0x24] sm:$0xf]
        %v377 = vld [vmem:[%s314 + $0x28] sm:$0xf]
        %v378 = vld [vmem:[%s314 + $0x2c] sm:$0xf]
        %v379 = vld [vmem:[%s314 + $0x30] sm:$0xf]
        %v380 = vld [vmem:[%s314 + $0x34] sm:$0xf]
        %v381 = vld [vmem:[%s314 + $0x38] sm:$0xf]
        %v382 = vld [vmem:[%s314 + $0x3c] sm:$0xf]
        %v383 = vld [vmem:[%s314 + $0x40] sm:$0xf]
        %v384 = vld [vmem:[%s314 + $0x44] sm:$0xf]
        %v385 = vld [vmem:[%s314 + $0x48] sm:$0xf]
        %v386 = vld [vmem:[%s314 + $0x4c] sm:$0xf]
        %v387 = vld [vmem:[%s314 + $0x50] sm:$0xf]
        %v388 = vld [vmem:[%s314 + $0x54] sm:$0xf]
        %v389 = vld [vmem:[%s314 + $0x58] sm:$0xf]
        %v390 = vld [vmem:[%s314 + $0x5c] sm:$0xf]
        %v391 = vld [vmem:[%s314 + $0x60] sm:$0xf]
        %v392 = vld [vmem:[%s314 + $0x64] sm:$0xf]
        %v393 = vld [vmem:[%s314 + $0x68] sm:$0xf]
        %v394 = vld [vmem:[%s314 + $0x6c] sm:$0xf]
        %v395 = vld [vmem:[%s314 + $0x70] sm:$0xf]
        %v396 = vld [vmem:[%s314 + $0x74] sm:$0xf]
        %v397 = vld [vmem:[%s314 + $0x78] sm:$0xf]
        %v398 = vld [vmem:[%s314 + $0x7c] sm:$0xf]
        %v399 = vld [vmem:[%s314 + $0x80] sm:$0xf]
        %v400 = vld [vmem:[%s314 + $0x84] sm:$0xf]
        %v401 = vld [vmem:[%s314 + $0x88] sm:$0xf]
        %v402 = vld [vmem:[%s314 + $0x8c] sm:$0xf]
        %v403 = vld [vmem:[%s314 + $0x90] sm:$0xf]
        %v404 = vld [vmem:[%s314 + $0x94] sm:$0xf]
        %v405 = vld [vmem:[%s314 + $0x98] sm:$0xf]
        %v406 = vld [vmem:[%s314 + $0x9c] sm:$0xf]
        %v407 = vld [vmem:[%s314 + $0xa0] sm:$0xf]
        %v408 = vld [vmem:[%s314 + $0xa4] sm:$0xf]
        %v409 = vld [vmem:[%s314 + $0xa8] sm:$0xf]
        %v410 = vld [vmem:[%s314 + $0xac] sm:$0xf]
        %v411 = vld [vmem:[%s314 + $0xb0] sm:$0xf]
        %v412 = vld [vmem:[%s314 + $0xb4] sm:$0xf]
        %v413 = vld [vmem:[%s314 + $0xb8] sm:$0xf]
        %v414 = vld [vmem:[%s314 + $0xbc] sm:$0xf]
        %v415 = vld [vmem:[%s314 + $0xc0] sm:$0xf]
        %v416 = vld [vmem:[%s314 + $0xc4] sm:$0xf]
        %v417 = vld [vmem:[%s314 + $0xc8] sm:$0xf]
        %v418 = vld [vmem:[%s314 + $0xcc] sm:$0xf]
        %v419 = vld [vmem:[%s314 + $0xd0] sm:$0xf]
        %v420 = vld [vmem:[%s314 + $0xd4] sm:$0xf]
        %v421 = vld [vmem:[%s314 + $0xd8] sm:$0xf]
        %v422 = vld [vmem:[%s314 + $0xdc] sm:$0xf]
        %v423 = vld [vmem:[%s314 + $0xe0] sm:$0xf]
        %v424 = vld [vmem:[%s314 + $0xe4] sm:$0xf]
        %v425 = vld [vmem:[%s314 + $0xe8] sm:$0xf]
        %v426 = vld [vmem:[%s314 + $0xec] sm:$0xf]
        %v427 = vld [vmem:[%s314 + $0xf0] sm:$0xf]
        %v428 = vld [vmem:[%s314 + $0xf4] sm:$0xf]
        %v429 = vld [vmem:[%s314 + $0xf8] sm:$0xf]
        %v430 = vld [vmem:[%s314 + $0xfc] sm:$0xf]
        %v431 = vld [vmem:[%s314 + $0x100] sm:$0xf]
        %v432 = vld [vmem:[%s314 + $0x104] sm:$0xf]
        %v433 = vld [vmem:[%s314 + $0x108] sm:$0xf]
        %v434 = vld [vmem:[%s314 + $0x10c] sm:$0xf]
        %v435 = vld [vmem:[%s314 + $0x110] sm:$0xf]
        %v436 = vld [vmem:[%s314 + $0x114] sm:$0xf]
        %v437 = vld [vmem:[%s314 + $0x118] sm:$0xf]
        %v438 = vld [vmem:[%s314 + $0x11c] sm:$0xf]
        %v439 = vld [vmem:[%s314 + $0x120] sm:$0xf]
        %v440 = vld [vmem:[%s314 + $0x124] sm:$0xf]
        %v441 = vld [vmem:[%s314 + $0x128] sm:$0xf]
        %v442 = vld [vmem:[%s314 + $0x12c] sm:$0xf]
        %v443 = vld [vmem:[%s314 + $0x130] sm:$0xf]
        %v444 = vld [vmem:[%s314 + $0x134] sm:$0xf]
        %v445 = vld [vmem:[%s314 + $0x138] sm:$0xf]
        %v446 = vld [vmem:[%s314 + $0x13c] sm:$0xf]
        %v447 = vld [vmem:[%s314 + $0x140] sm:$0xf]
        %v448 = vld [vmem:[%s314 + $0x144] sm:$0xf]
        %v449 = vld [vmem:[%s314 + $0x148] sm:$0xf]
        %v450 = vld [vmem:[%s314 + $0x14c] sm:$0xf]
        %v451 = vld [vmem:[%s314 + $0x150] sm:$0xf]
        %v452 = vld [vmem:[%s314 + $0x154] sm:$0xf]
        %v453 = vld [vmem:[%s314 + $0x158] sm:$0xf]
        %v454 = vld [vmem:[%s314 + $0x15c] sm:$0xf]
        %v455 = vld [vmem:[%s314 + $0x160] sm:$0xf]
        %v456 = vld [vmem:[%s314 + $0x164] sm:$0xf]
        %v457 = vld [vmem:[%s314 + $0x168] sm:$0xf]
        %v458 = vld [vmem:[%s314 + $0x16c] sm:$0xf]
        %v459 = vld [vmem:[%s314 + $0x170] sm:$0xf]
        %v460 = vld [vmem:[%s314 + $0x174] sm:$0xf]
        %v461 = vld [vmem:[%s314 + $0x178] sm:$0xf]
        %v462 = vld [vmem:[%s314 + $0x17c] sm:$0xf]
        %v463 = vld [vmem:[#allocation6] sm:$0xf]
        %v464 = vld [vmem:[#allocation6 + $0x4] sm:$0xf]
        %v465 = vld [vmem:[#allocation6 + $0x8] sm:$0xf]
        %v466 = vld [vmem:[#allocation6 + $0xc] sm:$0xf]
        %v467 = vld [vmem:[#allocation6 + $0x10] sm:$0xf]
        %v468 = vld [vmem:[#allocation6 + $0x14] sm:$0xf]
        %v469 = vld [vmem:[#allocation6 + $0x18] sm:$0xf]
        %v470 = vld [vmem:[#allocation6 + $0x1c] sm:$0xf]
        %v471 = vld [vmem:[#allocation6 + $0x20] sm:$0xf]
        %v472 = vld [vmem:[#allocation6 + $0x24] sm:$0xf]
        %v473 = vld [vmem:[#allocation6 + $0x28] sm:$0xf]
        %v474 = vld [vmem:[#allocation6 + $0x2c] sm:$0xf]
        %v475 = vld [vmem:[#allocation6 + $0x30] sm:$0xf]
        %v476 = vld [vmem:[#allocation6 + $0x34] sm:$0xf]
        %v477 = vld [vmem:[#allocation6 + $0x38] sm:$0xf]
        %v478 = vld [vmem:[#allocation6 + $0x3c] sm:$0xf]
        %v495 = vunpack.c.l.b16 %v400
        %v496 = vunpack.c.l.b16 %v401
        %v497 = vunpack.c.l.b16 %v404
        %v498 = vunpack.c.l.b16 %v405
        %v499 = vunpack.c.l.b16 %v408
        %v500 = vunpack.c.l.b16 %v409
        %v501 = vunpack.c.l.b16 %v412
        %v502 = vunpack.c.l.b16 %v413
        %v503 = vunpack.c.l.b16 %v416
        %v504 = vunpack.c.l.b16 %v417
        %v505 = vunpack.c.l.b16 %v420
        %v506 = vunpack.c.l.b16 %v421
        %v507 = vunpack.c.l.b16 %v424
        %v508 = vunpack.c.l.b16 %v425
        %v509 = vunpack.c.l.b16 %v428
        %v510 = vunpack.c.l.b16 %v429
        %v511 = vpack.c.b16 %v496, %v495
        %v512 = vpack.c.b16 %v498, %v497
        %v513 = vpack.c.b16 %v500, %v499
        %v514 = vpack.c.b16 %v502, %v501
        %v515 = vpack.c.b16 %v504, %v503
        %v516 = vpack.c.b16 %v506, %v505
        %v517 = vpack.c.b16 %v508, %v507
        %v518 = vpack.c.b16 %v510, %v509
        %v543 = vunpack.c.l.b16 %v463
        %v544 = vunpack.c.l.b16 %v464
        %v545 = vunpack.c.l.b16 %v465
        %v546 = vunpack.c.l.b16 %v466
        %v547 = vunpack.c.l.b16 %v467
        %v548 = vunpack.c.l.b16 %v468
        %v549 = vunpack.c.l.b16 %v469
        %v550 = vunpack.c.l.b16 %v470
        %v551 = vunpack.c.l.b16 %v471
        %v552 = vunpack.c.l.b16 %v472
        %v553 = vunpack.c.l.b16 %v473
        %v554 = vunpack.c.l.b16 %v474
        %v555 = vunpack.c.l.b16 %v475
        %v556 = vunpack.c.l.b16 %v476
        %v557 = vunpack.c.l.b16 %v477
        %v558 = vunpack.c.l.b16 %v478
        %v559 = vpack.c.b16 %v544, %v543
        %v560 = vpack.c.b16 %v546, %v545
        %v561 = vpack.c.b16 %v548, %v547
        %v562 = vpack.c.b16 %v550, %v549
        %v563 = vpack.c.b16 %v552, %v551
        %v564 = vpack.c.b16 %v554, %v553
        %v565 = vpack.c.b16 %v556, %v555
        %v566 = vpack.c.b16 %v558, %v557
        %575 = vmatprep.subr.bf16.mxu0 0
        %576 = vmatpush1.bf16.msra.mxu0 %v559
        %577 = vmatprep.subr.bf16.mxu0 0
        %578 = vmatpush1.bf16.msra.mxu0 %v560
        %579 = vmatprep.subr.bf16.mxu0 0
        %580 = vmatpush1.bf16.msra.mxu0 %v561
        %581 = vmatprep.subr.bf16.mxu0 0
        %582 = vmatpush1.bf16.msra.mxu0 %v562
        %583 = vmatprep.subr.bf16.mxu0 0
        %584 = vmatpush1.bf16.msra.mxu0 %v563
        %585 = vmatprep.subr.bf16.mxu0 0
        %586 = vmatpush1.bf16.msra.mxu0 %v564
        %587 = vmatprep.subr.bf16.mxu0 0
        %588 = vmatpush1.bf16.msra.mxu0 %v565
        %589 = vmatprep.subr.bf16.mxu0 0
        %590 = vmatpush1.bf16.msra.mxu0 %v566
        %591 = vmatprep.subr.bf16.mxu0 0
        %592 = vmatpush1.bf16.msra.mxu0 0
        %593 = vmatprep.subr.bf16.mxu0 0
        %594 = vmatpush1.bf16.msra.mxu0 0
        %595 = vmatprep.subr.bf16.mxu0 0
        %596 = vmatpush1.bf16.msra.mxu0 0
        %597 = vmatprep.subr.bf16.mxu0 0
        %598 = vmatpush1.bf16.msra.mxu0 0
        %599 = vmatprep.subr.bf16.mxu0 0
        %600 = vmatpush1.bf16.msra.mxu0 0
        %601 = vmatprep.subr.bf16.mxu0 0
        %602 = vmatpush1.bf16.msra.mxu0 0
        %603 = vmatprep.subr.bf16.mxu0 0
        %604 = vmatpush1.bf16.msra.mxu0 0
        %605 = vmatprep.subr.bf16.mxu0 0
        %606 = vmatpush1.bf16.msra.mxu0 0
        %607 = vmatprep.mubr.bf16.mxu0 0
        %608 = vmatmul.mubr.bf16.gmra.mrb[0].mxu0 %v511
        %v609 = vpop.f32.mrb[0].mxu0
        %v610 = vadd.f32 0.0, %v609
        %v611 = vpop.f32.mrb[0].mxu0
        %v612 = vpop.f32.mrb[0].mxu0
        %v613 = vadd.f32 0.0, %v612
        %v614 = vpop.f32.mrb[0].mxu0
        %615 = vmatprep.mubr.bf16.mxu0 0
        %616 = vmatmul.mubr.bf16.gmra.mrb[0].mxu0 %v512
        %v617 = vpop.f32.mrb[0].mxu0
        %v618 = vadd.f32 0.0, %v617
        %v619 = vpop.f32.mrb[0].mxu0
        %v620 = vpop.f32.mrb[0].mxu0
        %v621 = vadd.f32 0.0, %v620
        %v622 = vpop.f32.mrb[0].mxu0
        %623 = vmatprep.mubr.bf16.mxu0 0
        %624 = vmatmul.mubr.bf16.gmra.mrb[0].mxu0 %v513
        %v625 = vpop.f32.mrb[0].mxu0
        %v626 = vadd.f32 0.0, %v625
        %v627 = vpop.f32.mrb[0].mxu0
        %v628 = vpop.f32.mrb[0].mxu0
        %v629 = vadd.f32 0.0, %v628
        %v630 = vpop.f32.mrb[0].mxu0
        %631 = vmatprep.mubr.bf16.mxu0 0
        %632 = vmatmul.mubr.bf16.gmra.mrb[0].mxu0 %v514
        %v633 = vpop.f32.mrb[0].mxu0
        %v634 = vadd.f32 0.0, %v633
        %v635 = vpop.f32.mrb[0].mxu0
        %v636 = vpop.f32.mrb[0].mxu0
        %v637 = vadd.f32 0.0, %v636
        %v638 = vpop.f32.mrb[0].mxu0
        %639 = vmatprep.mubr.bf16.mxu0 0
        %640 = vmatmul.mubr.bf16.gmra.mrb[0].mxu0 %v515
        %v641 = vpop.f32.mrb[0].mxu0
        %v642 = vadd.f32 0.0, %v641
        %v643 = vpop.f32.mrb[0].mxu0
        %v644 = vpop.f32.mrb[0].mxu0
        %v645 = vadd.f32 0.0, %v644
        %v646 = vpop.f32.mrb[0].mxu0
        %647 = vmatprep.mubr.bf16.mxu0 0
        %648 = vmatmul.mubr.bf16.gmra.mrb[0].mxu0 %v516
        %v649 = vpop.f32.mrb[0].mxu0
        %v650 = vadd.f32 0.0, %v649
        %v651 = vpop.f32.mrb[0].mxu0
        %v652 = vpop.f32.mrb[0].mxu0
        %v653 = vadd.f32 0.0, %v652
        %v654 = vpop.f32.mrb[0].mxu0
        %655 = vmatprep.mubr.bf16.mxu0 0
        %656 = vmatmul.mubr.bf16.gmra.mrb[0].mxu0 %v517
        %v657 = vpop.f32.mrb[0].mxu0
        %v658 = vadd.f32 0.0, %v657
        %v659 = vpop.f32.mrb[0].mxu0
        %v660 = vpop.f32.mrb[0].mxu0
        %v661 = vadd.f32 0.0, %v660
        %v662 = vpop.f32.mrb[0].mxu0
        %663 = vmatprep.mubr.bf16.mxu0 0
        %664 = vmatmul.mubr.bf16.gmra.mrb[0].mxu0 %v518
        %v665 = vpop.f32.mrb[0].mxu0
        %v666 = vadd.f32 0.0, %v665
        %v667 = vpop.f32.mrb[0].mxu0
        %v668 = vpop.f32.mrb[0].mxu0
        %v669 = vadd.f32 0.0, %v668
        %v670 = vpop.f32.mrb[0].mxu0
        %671 = vdwg.mxu0
        %v672 = vmax.f32 %v610, 0.0
        %v673 = vmax.f32 %v613, 0.0
        %v674 = vmax.f32 %v618, 0.0
        %v675 = vmax.f32 %v621, 0.0
        %v676 = vmax.f32 %v626, 0.0
        %v677 = vmax.f32 %v629, 0.0
        %v678 = vmax.f32 %v634, 0.0
        %v679 = vmax.f32 %v637, 0.0
        %v680 = vmax.f32 %v642, 0.0
        %v681 = vmax.f32 %v645, 0.0
        %v682 = vmax.f32 %v650, 0.0
        %v683 = vmax.f32 %v653, 0.0
        %v684 = vmax.f32 %v658, 0.0
        %v685 = vmax.f32 %v661, 0.0
        %v686 = vmax.f32 %v666, 0.0
        %v687 = vmax.f32 %v669, 0.0
        %v688 = vpack.c.bf16 %v673, %v672
        %v689 = vpack.c.bf16 %v675, %v674
        %v690 = vpack.c.bf16 %v677, %v676
        %v691 = vpack.c.bf16 %v679, %v678
        %v692 = vpack.c.bf16 %v681, %v680
        %v693 = vpack.c.bf16 %v683, %v682
        %v694 = vpack.c.bf16 %v685, %v684
        %v695 = vpack.c.bf16 %v687, %v686
        %v696 = vld [vmem:[#allocation12] sm:$0xf]
        %v697 = vld [vmem:[#allocation12 + $0x4] sm:$0xf]
        %v698 = vld [vmem:[#allocation12 + $0x8] sm:$0xf]
        %v699 = vld [vmem:[#allocation12 + $0xc] sm:$0xf]
        %v700 = vld [vmem:[#allocation12 + $0x10] sm:$0xf]
        %v701 = vld [vmem:[#allocation12 + $0x14] sm:$0xf]
        %v702 = vld [vmem:[#allocation12 + $0x18] sm:$0xf]
        %v703 = vld [vmem:[#allocation12 + $0x1c] sm:$0xf]
        %v704 = vld [vmem:[#allocation12 + $0x20] sm:$0xf]
        %v705 = vld [vmem:[#allocation12 + $0x24] sm:$0xf]
        %v706 = vld [vmem:[#allocation12 + $0x28] sm:$0xf]
        %v707 = vld [vmem:[#allocation12 + $0x2c] sm:$0xf]
        %v708 = vld [vmem:[#allocation12 + $0x30] sm:$0xf]
        %v709 = vld [vmem:[#allocation12 + $0x34] sm:$0xf]
        %v710 = vld [vmem:[#allocation12 + $0x38] sm:$0xf]
        %v711 = vld [vmem:[#allocation12 + $0x3c] sm:$0xf]
        %v728 = vunpack.c.l.b16 %v696
        %v729 = vunpack.c.l.b16 %v697
        %v730 = vunpack.c.l.b16 %v698
        %v731 = vunpack.c.l.b16 %v699
        %v732 = vunpack.c.l.b16 %v700
        %v733 = vunpack.c.l.b16 %v701
        %v734 = vunpack.c.l.b16 %v702
        %v735 = vunpack.c.l.b16 %v703
        %v736 = vunpack.c.l.b16 %v704
        %v737 = vunpack.c.l.b16 %v705
        %v738 = vunpack.c.l.b16 %v706
        %v739 = vunpack.c.l.b16 %v707
        %v740 = vunpack.c.l.b16 %v708
        %v741 = vunpack.c.l.b16 %v709
        %v742 = vunpack.c.l.b16 %v710
        %v743 = vunpack.c.l.b16 %v711
        %v744 = vpack.c.b16 %v729, %v728
        %v745 = vpack.c.b16 %v731, %v730
        %v746 = vpack.c.b16 %v733, %v732
        %v747 = vpack.c.b16 %v735, %v734
        %v748 = vpack.c.b16 %v737, %v736
        %v749 = vpack.c.b16 %v739, %v738
        %v750 = vpack.c.b16 %v741, %v740
        %v751 = vpack.c.b16 %v743, %v742
        %760 = vmatprep.subr.bf16.mxu0 0
        %761 = vmatpush1.bf16.msra.mxu0 %v744
        %762 = vmatprep.subr.bf16.mxu0 0
        %763 = vmatpush1.bf16.msra.mxu0 %v745
        %764 = vmatprep.subr.bf16.mxu0 0
        %765 = vmatpush1.bf16.msra.mxu0 %v746
        %766 = vmatprep.subr.bf16.mxu0 0
        %767 = vmatpush1.bf16.msra.mxu0 %v747
        %768 = vmatprep.subr.bf16.mxu0 0
        %769 = vmatpush1.bf16.msra.mxu0 %v748
        %770 = vmatprep.subr.bf16.mxu0 0
        %771 = vmatpush1.bf16.msra.mxu0 %v749
        %772 = vmatprep.subr.bf16.mxu0 0
        %773 = vmatpush1.bf16.msra.mxu0 %v750
        %774 = vmatprep.subr.bf16.mxu0 0
        %775 = vmatpush1.bf16.msra.mxu0 %v751
        %776 = vmatprep.subr.bf16.mxu0 0
        %777 = vmatpush1.bf16.msra.mxu0 0
        %778 = vmatprep.subr.bf16.mxu0 0
        %779 = vmatpush1.bf16.msra.mxu0 0
        %780 = vmatprep.subr.bf16.mxu0 0
        %781 = vmatpush1.bf16.msra.mxu0 0
        %782 = vmatprep.subr.bf16.mxu0 0
        %783 = vmatpush1.bf16.msra.mxu0 0
        %784 = vmatprep.subr.bf16.mxu0 0
        %785 = vmatpush1.bf16.msra.mxu0 0
        %786 = vmatprep.subr.bf16.mxu0 0
        %787 = vmatpush1.bf16.msra.mxu0 0
        %788 = vmatprep.subr.bf16.mxu0 0
        %789 = vmatpush1.bf16.msra.mxu0 0
        %790 = vmatprep.subr.bf16.mxu0 0
        %791 = vmatpush1.bf16.msra.mxu0 0
        %792 = vmatprep.mubr.bf16.mxu0 0
        %793 = vmatmul.mubr.bf16.gmra.mrb[0].mxu0 %v688
        %v794 = vpop.f32.mrb[0].mxu0
        %v795 = vadd.f32 0.0, %v794
        %v796 = vpop.f32.mrb[0].mxu0
        %v797 = vpop.f32.mrb[0].mxu0
        %v798 = vadd.f32 0.0, %v797
        %v799 = vpop.f32.mrb[0].mxu0
        %800 = vmatprep.mubr.bf16.mxu0 0
        %801 = vmatmul.mubr.bf16.gmra.mrb[0].mxu0 %v689
        %v802 = vpop.f32.mrb[0].mxu0
        %v803 = vadd.f32 0.0, %v802
        %v804 = vpop.f32.mrb[0].mxu0
        %v805 = vpop.f32.mrb[0].mxu0
        %v806 = vadd.f32 0.0, %v805
        %v807 = vpop.f32.mrb[0].mxu0
        %808 = vmatprep.mubr.bf16.mxu0 0
        %809 = vmatmul.mubr.bf16.gmra.mrb[0].mxu0 %v690
        %v810 = vpop.f32.mrb[0].mxu0
        %v811 = vadd.f32 0.0, %v810
        %v812 = vpop.f32.mrb[0].mxu0
        %v813 = vpop.f32.mrb[0].mxu0
        %v814 = vadd.f32 0.0, %v813
        %v815 = vpop.f32.mrb[0].mxu0
        %816 = vmatprep.mubr.bf16.mxu0 0
        %817 = vmatmul.mubr.bf16.gmra.mrb[0].mxu0 %v691
        %v818 = vpop.f32.mrb[0].mxu0
        %v819 = vadd.f32 0.0, %v818
        %v820 = vpop.f32.mrb[0].mxu0
        %v821 = vpop.f32.mrb[0].mxu0
        %v822 = vadd.f32 0.0, %v821
        %v823 = vpop.f32.mrb[0].mxu0
        %824 = vmatprep.mubr.bf16.mxu0 0
        %825 = vmatmul.mubr.bf16.gmra.mrb[0].mxu0 %v692
        %v826 = vpop.f32.mrb[0].mxu0
        %v827 = vadd.f32 0.0, %v826
        %v828 = vpop.f32.mrb[0].mxu0
        %v829 = vpop.f32.mrb[0].mxu0
        %v830 = vadd.f32 0.0, %v829
        %v831 = vpop.f32.mrb[0].mxu0
        %832 = vmatprep.mubr.bf16.mxu0 0
        %833 = vmatmul.mubr.bf16.gmra.mrb[0].mxu0 %v693
        %v834 = vpop.f32.mrb[0].mxu0
        %v835 = vadd.f32 0.0, %v834
        %v836 = vpop.f32.mrb[0].mxu0
        %v837 = vpop.f32.mrb[0].mxu0
        %v838 = vadd.f32 0.0, %v837
        %v839 = vpop.f32.mrb[0].mxu0
        %840 = vmatprep.mubr.bf16.mxu0 0
        %841 = vmatmul.mubr.bf16.gmra.mrb[0].mxu0 %v694
        %v842 = vpop.f32.mrb[0].mxu0
        %v843 = vadd.f32 0.0, %v842
        %v844 = vpop.f32.mrb[0].mxu0
        %v845 = vpop.f32.mrb[0].mxu0
        %v846 = vadd.f32 0.0, %v845
        %v847 = vpop.f32.mrb[0].mxu0
        %848 = vmatprep.mubr.bf16.mxu0 0
        %849 = vmatmul.mubr.bf16.gmra.mrb[0].mxu0 %v695
        %v850 = vpop.f32.mrb[0].mxu0
        %v851 = vadd.f32 0.0, %v850
        %v852 = vpop.f32.mrb[0].mxu0
        %v853 = vpop.f32.mrb[0].mxu0
        %v854 = vadd.f32 0.0, %v853
        %v855 = vpop.f32.mrb[0].mxu0
        %856 = vdwg.mxu0
        %857 = vst [vmem:[#allocation2] sm:$0xff] %v795
        %858 = vst [vmem:[#allocation2 + $0x8] sm:$0xff] %v798
        %859 = vst [vmem:[#allocation2 + $0x10] sm:$0xff] %v803
        %860 = vst [vmem:[#allocation2 + $0x18] sm:$0xff] %v806
        %861 = vst [vmem:[#allocation2 + $0x20] sm:$0xff] %v811
        %862 = vst [vmem:[#allocation2 + $0x28] sm:$0xff] %v814
        %863 = vst [vmem:[#allocation2 + $0x30] sm:$0xff] %v819
        %864 = vst [vmem:[#allocation2 + $0x38] sm:$0xff] %v822
        %865 = vst [vmem:[#allocation2 + $0x40] sm:$0xff] %v827
        %866 = vst [vmem:[#allocation2 + $0x48] sm:$0xff] %v830
        %867 = vst [vmem:[#allocation2 + $0x50] sm:$0xff] %v835
        %868 = vst [vmem:[#allocation2 + $0x58] sm:$0xff] %v838
        %869 = vst [vmem:[#allocation2 + $0x60] sm:$0xff] %v843
        %870 = vst [vmem:[#allocation2 + $0x68] sm:$0xff] %v846
        %871 = vst [vmem:[#allocation2 + $0x70] sm:$0xff] %v851
        %872 = vst [vmem:[#allocation2 + $0x78] sm:$0xff] %v854
        %v885 = vunpack.c.l.b16 %v391
        %v886 = vunpack.c.l.b16 %v392
        %v887 = vunpack.c.l.b16 %v393
        %v888 = vunpack.c.l.b16 %v395
        %v889 = vunpack.c.l.b16 %v396
        %v890 = vunpack.c.l.b16 %v397
        %v891 = vunpack.c.l.b16 %v399
        %v892 = vunpack.c.l.b16 %v403
        %v893 = vunpack.c.l.b16 %v407
        %v894 = vunpack.c.l.b16 %v411
        %v895 = vunpack.c.l.b16 %v415
        %v896 = vunpack.c.l.b16 %v419
        %v897 = vpack.c.b16 %v886, %v885
        %v898 = vpack.c.b16 %v887, %v887
        %v899 = vpack.c.b16 %v889, %v888
        %v900 = vpack.c.b16 %v890, %v890
        %v901 = vpack.c.b16 %v495, %v891
        %v902 = vpack.c.b16 %v496, %v496
        %v903 = vpack.c.b16 %v497, %v892
        %v904 = vpack.c.b16 %v498, %v498
        %v905 = vpack.c.b16 %v499, %v893
        %v906 = vpack.c.b16 %v500, %v500
        %v907 = vpack.c.b16 %v501, %v894
        %v908 = vpack.c.b16 %v502, %v502
        %v909 = vpack.c.b16 %v503, %v895
        %v910 = vpack.c.b16 %v504, %v504
        %v911 = vpack.c.b16 %v505, %v896
        %v912 = vpack.c.b16 %v506, %v506
        %v913 = vpack.c.b16 %v887, %v886
        %v914 = vpack.c.b16 %v890, %v889
        %v915 = vrot.slane %v913, 5
        %v916 = vrot.slane %v914, 5
        %v917 = vrot.slane %v511, 5
        %v918 = vrot.slane %v512, 5
        %v919 = vrot.slane %v513, 5
        %v920 = vrot.slane %v514, 5
        %v921 = vrot.slane %v515, 5
        %v922 = vrot.slane %v516, 5
        %v931 = vunpack.c.l.b16 %v394
        %v932 = vunpack.c.l.b16 %v398
        %v933 = vunpack.c.l.b16 %v402
        %v934 = vunpack.c.l.b16 %v406
        %v935 = vunpack.c.l.b16 %v410
        %v936 = vunpack.c.l.b16 %v414
        %v937 = vunpack.c.l.b16 %v418
        %v938 = vunpack.c.l.b16 %v422
        %v939 = vpack.c.b16 %v931, %v931
        %v940 = vpack.c.b16 %v932, %v932
        %v941 = vpack.c.b16 %v933, %v933
        %v942 = vpack.c.b16 %v934, %v934
        %v943 = vpack.c.b16 %v935, %v935
        %v944 = vpack.c.b16 %v936, %v936
        %v945 = vpack.c.b16 %v937, %v937
        %v946 = vpack.c.b16 %v938, %v938
        %vm947 = vcmask 1041408
        %v948 = vrot.slane %v913, 6
        %v949 = vrot.slane %v939, 6
        %v950 = vsel %vm947, %v948, %v949
        %v951 = vrot.slane %v914, 6
        %v952 = vrot.slane %v940, 6
        %v953 = vsel %vm947, %v951, %v952
        %v954 = vrot.slane %v511, 6
        %v955 = vrot.slane %v941, 6
        %v956 = vsel %vm947, %v954, %v955
        %v957 = vrot.slane %v512, 6
        %v958 = vrot.slane %v942, 6
        %v959 = vsel %vm947, %v957, %v958
        %v960 = vrot.slane %v513, 6
        %v961 = vrot.slane %v943, 6
        %v962 = vsel %vm947, %v960, %v961
        %v963 = vrot.slane %v514, 6
        %v964 = vrot.slane %v944, 6
        %v965 = vsel %vm947, %v963, %v964
        %v966 = vrot.slane %v515, 6
        %v967 = vrot.slane %v945, 6
        %v968 = vsel %vm947, %v966, %v967
        %v969 = vrot.slane %v516, 6
        %v970 = vrot.slane %v946, 6
        %v971 = vsel %vm947, %v969, %v970
        %v974 = vunpack.c.l.b16 %v423
        %v975 = vunpack.c.l.b16 %v427
        %v976 = vpack.c.b16 %v507, %v974
        %v977 = vpack.c.b16 %v508, %v508
        %v978 = vpack.c.b16 %v509, %v975
        %v979 = vpack.c.b16 %v510, %v510
        %v980 = vrot.slane %v517, 5
        %v981 = vrot.slane %v518, 5
        %v984 = vunpack.c.l.b16 %v426
        %v985 = vunpack.c.l.b16 %v430
        %v986 = vpack.c.b16 %v984, %v984
        %v987 = vpack.c.b16 %v985, %v985
        %v988 = vrot.slane %v517, 6
        %v989 = vrot.slane %v986, 6
        %v990 = vsel %vm947, %v988, %v989
        %v991 = vrot.slane %v518, 6
        %v992 = vrot.slane %v987, 6
        %v993 = vsel %vm947, %v991, %v992
        %v1000 = vunpack.c.l.b16 %v431
        %v1001 = vunpack.c.l.b16 %v432
        %v1002 = vunpack.c.l.b16 %v433
        %v1003 = vunpack.c.l.b16 %v435
        %v1004 = vunpack.c.l.b16 %v436
        %v1005 = vunpack.c.l.b16 %v437
        %v1006 = vpack.c.b16 %v1001, %v1000
        %v1007 = vpack.c.b16 %v1002, %v1002
        %v1008 = vpack.c.b16 %v1004, %v1003
        %v1009 = vpack.c.b16 %v1005, %v1005
        %v1010 = vpack.c.b16 %v1002, %v1001
        %v1011 = vpack.c.b16 %v1005, %v1004
        %v1012 = vrot.slane %v1010, 5
        %v1013 = vrot.slane %v1011, 5
        %v1016 = vunpack.c.l.b16 %v434
        %v1017 = vunpack.c.l.b16 %v438
        %v1018 = vpack.c.b16 %v1016, %v1016
        %v1019 = vpack.c.b16 %v1017, %v1017
        %v1020 = vrot.slane %v1010, 6
        %v1021 = vrot.slane %v1018, 6
        %v1022 = vsel %vm947, %v1020, %v1021
        %v1023 = vrot.slane %v1011, 6
        %v1024 = vrot.slane %v1019, 6
        %v1025 = vsel %vm947, %v1023, %v1024
        %vm1026 = vcmask 1044480
        %v1027 = vrot.slane %v897, 3
        %v1028 = vrot.slane %v898, 3
        %v1029 = vsel %vm1026, %v1027, %v1028
        %v1030 = vrot.slane %v915, 3
        %v1031 = vsel %vm1026, %v1030, %v1030
        %v1032 = vrot.slane %v948, 3
        %v1033 = vrot.slane %v950, 3
        %v1034 = vsel %vm1026, %v1032, %v1033
        %v1035 = vrot.slane %v901, 3
        %v1036 = vrot.slane %v902, 3
        %v1037 = vsel %vm1026, %v1035, %v1036
        %v1038 = vrot.slane %v917, 3
        %v1039 = vsel %vm1026, %v1038, %v1038
        %v1040 = vrot.slane %v954, 3
        %v1041 = vrot.slane %v956, 3
        %v1042 = vsel %vm1026, %v1040, %v1041
        %v1043 = vrot.slane %v905, 3
        %v1044 = vrot.slane %v906, 3
        %v1045 = vsel %vm1026, %v1043, %v1044
        %v1046 = vrot.slane %v919, 3
        %v1047 = vsel %vm1026, %v1046, %v1046
        %v1048 = vrot.slane %v960, 3
        %v1049 = vrot.slane %v962, 3
        %v1050 = vsel %vm1026, %v1048, %v1049
        %v1051 = vrot.slane %v899, 3
        %v1052 = vrot.slane %v900, 3
        %v1053 = vsel %vm1026, %v1051, %v1052
        %v1054 = vrot.slane %v916, 3
        %v1055 = vsel %vm1026, %v1054, %v1054
        %v1056 = vrot.slane %v951, 3
        %v1057 = vrot.slane %v953, 3
        %v1058 = vsel %vm1026, %v1056, %v1057
        %v1059 = vrot.slane %v903, 3
        %v1060 = vrot.slane %v904, 3
        %v1061 = vsel %vm1026, %v1059, %v1060
        %v1062 = vrot.slane %v918, 3
        %v1063 = vsel %vm1026, %v1062, %v1062
        %v1064 = vrot.slane %v957, 3
        %v1065 = vrot.slane %v959, 3
        %v1066 = vsel %vm1026, %v1064, %v1065
        %v1067 = vrot.slane %v907, 3
        %v1068 = vrot.slane %v908, 3
        %v1069 = vsel %vm1026, %v1067, %v1068
        %v1070 = vrot.slane %v920, 3
        %v1071 = vsel %vm1026, %v1070, %v1070
        %v1072 = vrot.slane %v963, 3
        %v1073 = vrot.slane %v965, 3
        %v1074 = vsel %vm1026, %v1072, %v1073
        %v1075 = vrot.slane %v909, 3
        %v1076 = vrot.slane %v910, 3
        %v1077 = vsel %vm1026, %v1075, %v1076
        %v1078 = vrot.slane %v921, 3
        %v1079 = vsel %vm1026, %v1078, %v1078
        %v1080 = vrot.slane %v966, 3
        %v1081 = vrot.slane %v968, 3
        %v1082 = vsel %vm1026, %v1080, %v1081
        %v1083 = vrot.slane %v911, 3
        %v1084 = vrot.slane %v912, 3
        %v1085 = vsel %vm1026, %v1083, %v1084
        %v1086 = vrot.slane %v922, 3
        %v1087 = vsel %vm1026, %v1086, %v1086
        %v1088 = vrot.slane %v969, 3
        %v1089 = vrot.slane %v971, 3
        %v1090 = vsel %vm1026, %v1088, %v1089
        %v1091 = vrot.slane %v976, 3
        %v1092 = vrot.slane %v977, 3
        %v1093 = vsel %vm1026, %v1091, %v1092
        %v1094 = vrot.slane %v980, 3
        %v1095 = vsel %vm1026, %v1094, %v1094
        %v1096 = vrot.slane %v988, 3
        %v1097 = vrot.slane %v990, 3
        %v1098 = vsel %vm1026, %v1096, %v1097
        %v1099 = vrot.slane %v978, 3
        %v1100 = vrot.slane %v979, 3
        %v1101 = vsel %vm1026, %v1099, %v1100
        %v1102 = vrot.slane %v981, 3
        %v1103 = vsel %vm1026, %v1102, %v1102
        %v1104 = vrot.slane %v991, 3
        %v1105 = vrot.slane %v993, 3
        %v1106 = vsel %vm1026, %v1104, %v1105
        %v1107 = vrot.slane %v1006, 3
        %v1108 = vrot.slane %v1007, 3
        %v1109 = vsel %vm1026, %v1107, %v1108
        %v1110 = vrot.slane %v1012, 3
        %v1111 = vsel %vm1026, %v1110, %v1110
        %v1112 = vrot.slane %v1020, 3
        %v1113 = vrot.slane %v1022, 3
        %v1114 = vsel %vm1026, %v1112, %v1113
        %v1115 = vrot.slane %v1008, 3
        %v1116 = vrot.slane %v1009, 3
        %v1117 = vsel %vm1026, %v1115, %v1116
        %v1118 = vrot.slane %v1013, 3
        %v1119 = vsel %vm1026, %v1118, %v1118
        %v1120 = vrot.slane %v1023, 3
        %v1121 = vrot.slane %v1025, 3
        %v1122 = vsel %vm1026, %v1120, %v1121
        %v1159 = vld [vmem:[#allocation8] sm:$0xf]
        %v1160 = vld [vmem:[#allocation8 + $0x4] sm:$0xf]
        %v1161 = vld [vmem:[#allocation8 + $0x8] sm:$0xf]
        %v1162 = vld [vmem:[#allocation8 + $0xc] sm:$0xf]
        %v1163 = vld [vmem:[#allocation8 + $0x10] sm:$0xf]
        %v1164 = vld [vmem:[#allocation8 + $0x14] sm:$0xf]
        %v1165 = vld [vmem:[#allocation8 + $0x18] sm:$0xf]
        %v1166 = vld [vmem:[#allocation8 + $0x1c] sm:$0xf]
        %v1167 = vld [vmem:[#allocation8 + $0x20] sm:$0xf]
        %v1168 = vld [vmem:[#allocation8 + $0x24] sm:$0xf]
        %v1169 = vld [vmem:[#allocation8 + $0x28] sm:$0xf]
        %v1170 = vld [vmem:[#allocation8 + $0x2c] sm:$0xf]
        %v1171 = vld [vmem:[#allocation8 + $0x30] sm:$0xf]
        %v1172 = vld [vmem:[#allocation8 + $0x34] sm:$0xf]
        %v1173 = vld [vmem:[#allocation8 + $0x38] sm:$0xf]
        %v1174 = vld [vmem:[#allocation8 + $0x3c] sm:$0xf]
        %v1175 = vld [vmem:[#allocation8 + $0x40] sm:$0xf]
        %v1176 = vld [vmem:[#allocation8 + $0x44] sm:$0xf]
        %v1177 = vld [vmem:[#allocation8 + $0x48] sm:$0xf]
        %v1178 = vld [vmem:[#allocation8 + $0x4c] sm:$0xf]
        %v1179 = vld [vmem:[#allocation8 + $0x50] sm:$0xf]
        %v1180 = vld [vmem:[#allocation8 + $0x54] sm:$0xf]
        %v1181 = vld [vmem:[#allocation8 + $0x58] sm:$0xf]
        %v1182 = vld [vmem:[#allocation8 + $0x5c] sm:$0xf]
        %v1183 = vld [vmem:[#allocation8 + $0x60] sm:$0xf]
        %v1184 = vld [vmem:[#allocation8 + $0x64] sm:$0xf]
        %v1185 = vld [vmem:[#allocation8 + $0x68] sm:$0xf]
        %v1186 = vld [vmem:[#allocation8 + $0x6c] sm:$0xf]
        %v1187 = vld [vmem:[#allocation8 + $0x70] sm:$0xf]
        %v1188 = vld [vmem:[#allocation8 + $0x74] sm:$0xf]
        %v1189 = vld [vmem:[#allocation8 + $0x78] sm:$0xf]
        %v1190 = vld [vmem:[#allocation8 + $0x7c] sm:$0xf]
        %v1191 = vld [vmem:[#allocation8 + $0x80] sm:$0xf]
        %v1192 = vld [vmem:[#allocation8 + $0x84] sm:$0xf]
        %v1193 = vld [vmem:[#allocation8 + $0x88] sm:$0xf]
        %v1194 = vld [vmem:[#allocation8 + $0x8c] sm:$0xf]
        %v1195 = vld [vmem:[#allocation8 + $0x90] sm:$0xf]
        %v1196 = vld [vmem:[#allocation8 + $0x94] sm:$0xf]
        %v1197 = vld [vmem:[#allocation8 + $0x98] sm:$0xf]
        %v1198 = vld [vmem:[#allocation8 + $0x9c] sm:$0xf]
        %v1199 = vld [vmem:[#allocation8 + $0xa0] sm:$0xf]
        %v1200 = vld [vmem:[#allocation8 + $0xa4] sm:$0xf]
        %v1201 = vld [vmem:[#allocation8 + $0xa8] sm:$0xf]
        %v1202 = vld [vmem:[#allocation8 + $0xac] sm:$0xf]
        %v1203 = vld [vmem:[#allocation8 + $0xb0] sm:$0xf]
        %v1204 = vld [vmem:[#allocation8 + $0xb4] sm:$0xf]
        %v1205 = vld [vmem:[#allocation8 + $0xb8] sm:$0xf]
        %v1206 = vld [vmem:[#allocation8 + $0xbc] sm:$0xf]
        %v1207 = vld [vmem:[#allocation8 + $0xc0] sm:$0xf]
        %v1208 = vld [vmem:[#allocation8 + $0xc4] sm:$0xf]
        %v1209 = vld [vmem:[#allocation8 + $0xc8] sm:$0xf]
        %v1210 = vld [vmem:[#allocation8 + $0xcc] sm:$0xf]
        %v1211 = vld [vmem:[#allocation8 + $0xd0] sm:$0xf]
        %v1212 = vld [vmem:[#allocation8 + $0xd4] sm:$0xf]
        %v1213 = vld [vmem:[#allocation8 + $0xd8] sm:$0xf]
        %v1214 = vld [vmem:[#allocation8 + $0xdc] sm:$0xf]
        %v1215 = vld [vmem:[#allocation8 + $0xe0] sm:$0xf]
        %v1216 = vld [vmem:[#allocation8 + $0xe4] sm:$0xf]
        %v1217 = vld [vmem:[#allocation8 + $0xe8] sm:$0xf]
        %v1218 = vld [vmem:[#allocation8 + $0xec] sm:$0xf]
        %v1219 = vld [vmem:[#allocation8 + $0xf0] sm:$0xf]
        %v1220 = vld [vmem:[#allocation8 + $0xf4] sm:$0xf]
        %v1221 = vld [vmem:[#allocation8 + $0xf8] sm:$0xf]
        %v1222 = vld [vmem:[#allocation8 + $0xfc] sm:$0xf]
        %v1223 = vld [vmem:[#allocation8 + $0x100] sm:$0xf]
        %v1224 = vld [vmem:[#allocation8 + $0x104] sm:$0xf]
        %v1225 = vld [vmem:[#allocation8 + $0x108] sm:$0xf]
        %v1226 = vld [vmem:[#allocation8 + $0x10c] sm:$0xf]
        %v1227 = vld [vmem:[#allocation8 + $0x110] sm:$0xf]
        %v1228 = vld [vmem:[#allocation8 + $0x114] sm:$0xf]
        %v1229 = vld [vmem:[#allocation8 + $0x118] sm:$0xf]
        %v1230 = vld [vmem:[#allocation8 + $0x11c] sm:$0xf]
        %v1231 = vld [vmem:[#allocation8 + $0x120] sm:$0xf]
        %v1232 = vld [vmem:[#allocation8 + $0x124] sm:$0xf]
        %v1233 = vld [vmem:[#allocation8 + $0x128] sm:$0xf]
        %v1234 = vld [vmem:[#allocation8 + $0x12c] sm:$0xf]
        %v1235 = vld [vmem:[#allocation8 + $0x130] sm:$0xf]
        %v1236 = vld [vmem:[#allocation8 + $0x134] sm:$0xf]
        %v1237 = vld [vmem:[#allocation8 + $0x138] sm:$0xf]
        %v1238 = vld [vmem:[#allocation8 + $0x13c] sm:$0xf]
        %v1239 = vld [vmem:[#allocation8 + $0x140] sm:$0xf]
        %v1240 = vld [vmem:[#allocation8 + $0x144] sm:$0xf]
        %v1241 = vld [vmem:[#allocation8 + $0x148] sm:$0xf]
        %v1242 = vld [vmem:[#allocation8 + $0x14c] sm:$0xf]
        %v1243 = vld [vmem:[#allocation8 + $0x150] sm:$0xf]
        %v1244 = vld [vmem:[#allocation8 + $0x154] sm:$0xf]
        %v1245 = vld [vmem:[#allocation8 + $0x158] sm:$0xf]
        %v1246 = vld [vmem:[#allocation8 + $0x15c] sm:$0xf]
        %v1247 = vld [vmem:[#allocation8 + $0x160] sm:$0xf]
        %v1248 = vld [vmem:[#allocation8 + $0x164] sm:$0xf]
        %v1249 = vld [vmem:[#allocation8 + $0x168] sm:$0xf]
        %v1250 = vld [vmem:[#allocation8 + $0x16c] sm:$0xf]
        %v1251 = vld [vmem:[#allocation8 + $0x170] sm:$0xf]
        %v1252 = vld [vmem:[#allocation8 + $0x174] sm:$0xf]
        %v1253 = vld [vmem:[#allocation8 + $0x178] sm:$0xf]
        %v1254 = vld [vmem:[#allocation8 + $0x17c] sm:$0xf]
        %v1255 = vld [vmem:[#allocation8 + $0x180] sm:$0xf]
        %v1256 = vld [vmem:[#allocation8 + $0x184] sm:$0xf]
        %v1257 = vld [vmem:[#allocation8 + $0x188] sm:$0xf]
        %v1258 = vld [vmem:[#allocation8 + $0x18c] sm:$0xf]
        %v1259 = vld [vmem:[#allocation8 + $0x190] sm:$0xf]
        %v1260 = vld [vmem:[#allocation8 + $0x194] sm:$0xf]
        %v1261 = vld [vmem:[#allocation8 + $0x198] sm:$0xf]
        %v1262 = vld [vmem:[#allocation8 + $0x19c] sm:$0xf]
        %v1263 = vld [vmem:[#allocation8 + $0x1a0] sm:$0xf]
        %v1264 = vld [vmem:[#allocation8 + $0x1a4] sm:$0xf]
        %v1265 = vld [vmem:[#allocation8 + $0x1a8] sm:$0xf]
        %v1266 = vld [vmem:[#allocation8 + $0x1ac] sm:$0xf]
        %v1267 = vld [vmem:[#allocation8 + $0x1b0] sm:$0xf]
        %v1268 = vld [vmem:[#allocation8 + $0x1b4] sm:$0xf]
        %v1269 = vld [vmem:[#allocation8 + $0x1b8] sm:$0xf]
        %v1270 = vld [vmem:[#allocation8 + $0x1bc] sm:$0xf]
        %v1271 = vld [vmem:[#allocation8 + $0x1c0] sm:$0xf]
        %v1272 = vld [vmem:[#allocation8 + $0x1c4] sm:$0xf]
        %v1273 = vld [vmem:[#allocation8 + $0x1c8] sm:$0xf]
        %v1274 = vld [vmem:[#allocation8 + $0x1cc] sm:$0xf]
        %v1275 = vld [vmem:[#allocation8 + $0x1d0] sm:$0xf]
        %v1276 = vld [vmem:[#allocation8 + $0x1d4] sm:$0xf]
        %v1277 = vld [vmem:[#allocation8 + $0x1d8] sm:$0xf]
        %v1278 = vld [vmem:[#allocation8 + $0x1dc] sm:$0xf]
        %v1279 = vld [vmem:[#allocation8 + $0x1e0] sm:$0xf]
        %v1280 = vld [vmem:[#allocation8 + $0x1e4] sm:$0xf]
        %v1281 = vld [vmem:[#allocation8 + $0x1e8] sm:$0xf]
        %v1282 = vld [vmem:[#allocation8 + $0x1ec] sm:$0xf]
        %v1283 = vld [vmem:[#allocation8 + $0x1f0] sm:$0xf]
        %v1284 = vld [vmem:[#allocation8 + $0x1f4] sm:$0xf]
        %v1285 = vld [vmem:[#allocation8 + $0x1f8] sm:$0xf]
        %v1286 = vld [vmem:[#allocation8 + $0x1fc] sm:$0xf]
        %v1287 = vld [vmem:[#allocation8 + $0x200] sm:$0xf]
        %v1288 = vld [vmem:[#allocation8 + $0x204] sm:$0xf]
        %v1289 = vld [vmem:[#allocation8 + $0x208] sm:$0xf]
        %v1290 = vld [vmem:[#allocation8 + $0x20c] sm:$0xf]
        %v1291 = vld [vmem:[#allocation8 + $0x210] sm:$0xf]
        %v1292 = vld [vmem:[#allocation8 + $0x214] sm:$0xf]
        %v1293 = vld [vmem:[#allocation8 + $0x218] sm:$0xf]
        %v1294 = vld [vmem:[#allocation8 + $0x21c] sm:$0xf]
        %v1295 = vld [vmem:[#allocation8 + $0x220] sm:$0xf]
        %v1296 = vld [vmem:[#allocation8 + $0x224] sm:$0xf]
        %v1297 = vld [vmem:[#allocation8 + $0x228] sm:$0xf]
        %v1298 = vld [vmem:[#allocation8 + $0x22c] sm:$0xf]
        %v1299 = vld [vmem:[#allocation8 + $0x230] sm:$0xf]
        %v1300 = vld [vmem:[#allocation8 + $0x234] sm:$0xf]
        %v1301 = vld [vmem:[#allocation8 + $0x238] sm:$0xf]
        %v1302 = vld [vmem:[#allocation8 + $0x23c] sm:$0xf]
        %v1447 = vunpack.c.l.b16 %v1159
        %v1448 = vunpack.c.l.b16 %v1160
        %v1449 = vunpack.c.l.b16 %v1161
        %v1450 = vunpack.c.l.b16 %v1162
        %v1451 = vunpack.c.l.b16 %v1163
        %v1452 = vunpack.c.l.b16 %v1164
        %v1453 = vunpack.c.l.b16 %v1165
        %v1454 = vunpack.c.l.b16 %v1166
        %v1455 = vunpack.c.l.b16 %v1167
        %v1456 = vunpack.c.l.b16 %v1168
        %v1457 = vunpack.c.l.b16 %v1169
        %v1458 = vunpack.c.l.b16 %v1170
        %v1459 = vunpack.c.l.b16 %v1171
        %v1460 = vunpack.c.l.b16 %v1172
        %v1461 = vunpack.c.l.b16 %v1173
        %v1462 = vunpack.c.l.b16 %v1174
        %v1463 = vunpack.c.l.b16 %v1175
        %v1464 = vunpack.c.l.b16 %v1176
        %v1465 = vunpack.c.l.b16 %v1177
        %v1466 = vunpack.c.l.b16 %v1178
        %v1467 = vunpack.c.l.b16 %v1179
        %v1468 = vunpack.c.l.b16 %v1180
        %v1469 = vunpack.c.l.b16 %v1181
        %v1470 = vunpack.c.l.b16 %v1182
        %v1471 = vunpack.c.l.b16 %v1183
        %v1472 = vunpack.c.l.b16 %v1184
        %v1473 = vunpack.c.l.b16 %v1185
        %v1474 = vunpack.c.l.b16 %v1186
        %v1475 = vunpack.c.l.b16 %v1187
        %v1476 = vunpack.c.l.b16 %v1188
        %v1477 = vunpack.c.l.b16 %v1189
        %v1478 = vunpack.c.l.b16 %v1190
        %v1479 = vunpack.c.l.b16 %v1191
        %v1480 = vunpack.c.l.b16 %v1192
        %v1481 = vunpack.c.l.b16 %v1193
        %v1482 = vunpack.c.l.b16 %v1194
        %v1483 = vunpack.c.l.b16 %v1195
        %v1484 = vunpack.c.l.b16 %v1196
        %v1485 = vunpack.c.l.b16 %v1197
        %v1486 = vunpack.c.l.b16 %v1198
        %v1487 = vunpack.c.l.b16 %v1199
        %v1488 = vunpack.c.l.b16 %v1200
        %v1489 = vunpack.c.l.b16 %v1201
        %v1490 = vunpack.c.l.b16 %v1202
        %v1491 = vunpack.c.l.b16 %v1203
        %v1492 = vunpack.c.l.b16 %v1204
        %v1493 = vunpack.c.l.b16 %v1205
        %v1494 = vunpack.c.l.b16 %v1206
        %v1495 = vunpack.c.l.b16 %v1207
        %v1496 = vunpack.c.l.b16 %v1208
        %v1497 = vunpack.c.l.b16 %v1209
        %v1498 = vunpack.c.l.b16 %v1210
        %v1499 = vunpack.c.l.b16 %v1211
        %v1500 = vunpack.c.l.b16 %v1212
        %v1501 = vunpack.c.l.b16 %v1213
        %v1502 = vunpack.c.l.b16 %v1214
        %v1503 = vunpack.c.l.b16 %v1215
        %v1504 = vunpack.c.l.b16 %v1216
        %v1505 = vunpack.c.l.b16 %v1217
        %v1506 = vunpack.c.l.b16 %v1218
        %v1507 = vunpack.c.l.b16 %v1219
        %v1508 = vunpack.c.l.b16 %v1220
        %v1509 = vunpack.c.l.b16 %v1221
        %v1510 = vunpack.c.l.b16 %v1222
        %v1511 = vunpack.c.l.b16 %v1223
        %v1512 = vunpack.c.l.b16 %v1224
        %v1513 = vunpack.c.l.b16 %v1225
        %v1514 = vunpack.c.l.b16 %v1226
        %v1515 = vunpack.c.l.b16 %v1227
        %v1516 = vunpack.c.l.b16 %v1228
        %v1517 = vunpack.c.l.b16 %v1229
        %v1518 = vunpack.c.l.b16 %v1230
        %v1519 = vunpack.c.l.b16 %v1231
        %v1520 = vunpack.c.l.b16 %v1232
        %v1521 = vunpack.c.l.b16 %v1233
        %v1522 = vunpack.c.l.b16 %v1234
        %v1523 = vunpack.c.l.b16 %v1235
        %v1524 = vunpack.c.l.b16 %v1236
        %v1525 = vunpack.c.l.b16 %v1237
        %v1526 = vunpack.c.l.b16 %v1238
        %v1527 = vunpack.c.l.b16 %v1239
        %v1528 = vunpack.c.l.b16 %v1240
        %v1529 = vunpack.c.l.b16 %v1241
        %v1530 = vunpack.c.l.b16 %v1242
        %v1531 = vunpack.c.l.b16 %v1243
        %v1532 = vunpack.c.l.b16 %v1244
        %v1533 = vunpack.c.l.b16 %v1245
        %v1534 = vunpack.c.l.b16 %v1246
        %v1535 = vunpack.c.l.b16 %v1247
        %v1536 = vunpack.c.l.b16 %v1248
        %v1537 = vunpack.c.l.b16 %v1249
        %v1538 = vunpack.c.l.b16 %v1250
        %v1539 = vunpack.c.l.b16 %v1251
        %v1540 = vunpack.c.l.b16 %v1252
        %v1541 = vunpack.c.l.b16 %v1253
        %v1542 = vunpack.c.l.b16 %v1254
        %v1543 = vunpack.c.l.b16 %v1255
        %v1544 = vunpack.c.l.b16 %v1256
        %v1545 = vunpack.c.l.b16 %v1257
        %v1546 = vunpack.c.l.b16 %v1258
        %v1547 = vunpack.c.l.b16 %v1259
        %v1548 = vunpack.c.l.b16 %v1260
        %v1549 = vunpack.c.l.b16 %v1261
        %v1550 = vunpack.c.l.b16 %v1262
        %v1551 = vunpack.c.l.b16 %v1263
        %v1552 = vunpack.c.l.b16 %v1264
        %v1553 = vunpack.c.l.b16 %v1265
        %v1554 = vunpack.c.l.b16 %v1266
        %v1555 = vunpack.c.l.b16 %v1267
        %v1556 = vunpack.c.l.b16 %v1268
        %v1557 = vunpack.c.l.b16 %v1269
        %v1558 = vunpack.c.l.b16 %v1270
        %v1559 = vunpack.c.l.b16 %v1271
        %v1560 = vunpack.c.l.b16 %v1272
        %v1561 = vunpack.c.l.b16 %v1273
        %v1562 = vunpack.c.l.b16 %v1274
        %v1563 = vunpack.c.l.b16 %v1275
        %v1564 = vunpack.c.l.b16 %v1276
        %v1565 = vunpack.c.l.b16 %v1277
        %v1566 = vunpack.c.l.b16 %v1278
        %v1567 = vunpack.c.l.b16 %v1279
        %v1568 = vunpack.c.l.b16 %v1280
        %v1569 = vunpack.c.l.b16 %v1281
        %v1570 = vunpack.c.l.b16 %v1282
        %v1571 = vunpack.c.l.b16 %v1283
        %v1572 = vunpack.c.l.b16 %v1284
        %v1573 = vunpack.c.l.b16 %v1285
        %v1574 = vunpack.c.l.b16 %v1286
        %v1575 = vunpack.c.l.b16 %v1287
        %v1576 = vunpack.c.l.b16 %v1288
        %v1577 = vunpack.c.l.b16 %v1289
        %v1578 = vunpack.c.l.b16 %v1290
        %v1579 = vunpack.c.l.b16 %v1291
        %v1580 = vunpack.c.l.b16 %v1292
        %v1581 = vunpack.c.l.b16 %v1293
        %v1582 = vunpack.c.l.b16 %v1294
        %v1583 = vunpack.c.l.b16 %v1295
        %v1584 = vunpack.c.l.b16 %v1296
        %v1585 = vunpack.c.l.b16 %v1297
        %v1586 = vunpack.c.l.b16 %v1298
        %v1587 = vunpack.c.l.b16 %v1299
        %v1588 = vunpack.c.l.b16 %v1300
        %v1589 = vunpack.c.l.b16 %v1301
        %v1590 = vunpack.c.l.b16 %v1302
        %v1591 = vpack.c.b16 %v1448, %v1447
        %v1592 = vpack.c.b16 %v1450, %v1449
        %v1593 = vpack.c.b16 %v1452, %v1451
        %v1594 = vpack.c.b16 %v1454, %v1453
        %v1595 = vpack.c.b16 %v1456, %v1455
        %v1596 = vpack.c.b16 %v1458, %v1457
        %v1597 = vpack.c.b16 %v1460, %v1459
        %v1598 = vpack.c.b16 %v1462, %v1461
        %v1599 = vpack.c.b16 %v1464, %v1463
        %v1600 = vpack.c.b16 %v1466, %v1465
        %v1601 = vpack.c.b16 %v1468, %v1467
        %v1602 = vpack.c.b16 %v1470, %v1469
        %v1603 = vpack.c.b16 %v1472, %v1471
        %v1604 = vpack.c.b16 %v1474, %v1473
        %v1605 = vpack.c.b16 %v1476, %v1475
        %v1606 = vpack.c.b16 %v1478, %v1477
        %v1607 = vpack.c.b16 %v1480, %v1479
        %v1608 = vpack.c.b16 %v1482, %v1481
        %v1609 = vpack.c.b16 %v1484, %v1483
        %v1610 = vpack.c.b16 %v1486, %v1485
        %v1611 = vpack.c.b16 %v1488, %v1487
        %v1612 = vpack.c.b16 %v1490, %v1489
        %v1613 = vpack.c.b16 %v1492, %v1491
        %v1614 = vpack.c.b16 %v1494, %v1493
        %v1615 = vpack.c.b16 %v1496, %v1495
        %v1616 = vpack.c.b16 %v1498, %v1497
        %v1617 = vpack.c.b16 %v1500, %v1499
        %v1618 = vpack.c.b16 %v1502, %v1501
        %v1619 = vpack.c.b16 %v1504, %v1503
        %v1620 = vpack.c.b16 %v1506, %v1505
        %v1621 = vpack.c.b16 %v1508, %v1507
        %v1622 = vpack.c.b16 %v1510, %v1509
        %v1623 = vpack.c.b16 %v1512, %v1511
        %v1624 = vpack.c.b16 %v1514, %v1513
        %v1625 = vpack.c.b16 %v1516, %v1515
        %v1626 = vpack.c.b16 %v1518, %v1517
        %v1627 = vpack.c.b16 %v1520, %v1519
        %v1628 = vpack.c.b16 %v1522, %v1521
        %v1629 = vpack.c.b16 %v1524, %v1523
        %v1630 = vpack.c.b16 %v1526, %v1525
        %v1631 = vpack.c.b16 %v1528, %v1527
        %v1632 = vpack.c.b16 %v1530, %v1529
        %v1633 = vpack.c.b16 %v1532, %v1531
        %v1634 = vpack.c.b16 %v1534, %v1533
        %v1635 = vpack.c.b16 %v1536, %v1535
        %v1636 = vpack.c.b16 %v1538, %v1537
        %v1637 = vpack.c.b16 %v1540, %v1539
        %v1638 = vpack.c.b16 %v1542, %v1541
        %v1639 = vpack.c.b16 %v1544, %v1543
        %v1640 = vpack.c.b16 %v1546, %v1545
        %v1641 = vpack.c.b16 %v1548, %v1547
        %v1642 = vpack.c.b16 %v1550, %v1549
        %v1643 = vpack.c.b16 %v1552, %v1551
        %v1644 = vpack.c.b16 %v1554, %v1553
        %v1645 = vpack.c.b16 %v1556, %v1555
        %v1646 = vpack.c.b16 %v1558, %v1557
        %v1647 = vpack.c.b16 %v1560, %v1559
        %v1648 = vpack.c.b16 %v1562, %v1561
        %v1649 = vpack.c.b16 %v1564, %v1563
        %v1650 = vpack.c.b16 %v1566, %v1565
        %v1651 = vpack.c.b16 %v1568, %v1567
        %v1652 = vpack.c.b16 %v1570, %v1569
        %v1653 = vpack.c.b16 %v1572, %v1571
        %v1654 = vpack.c.b16 %v1574, %v1573
        %v1655 = vpack.c.b16 %v1576, %v1575
        %v1656 = vpack.c.b16 %v1578, %v1577
        %v1657 = vpack.c.b16 %v1580, %v1579
        %v1658 = vpack.c.b16 %v1582, %v1581
        %v1659 = vpack.c.b16 %v1584, %v1583
        %v1660 = vpack.c.b16 %v1586, %v1585
        %v1661 = vpack.c.b16 %v1588, %v1587
        %v1662 = vpack.c.b16 %v1590, %v1589
        %1735 = vmatprep.subr.bf16.mxu0 0
        %1736 = vmatpush1.bf16.msra.mxu0 %v1591
        %1737 = vmatprep.subr.bf16.mxu0 0
        %1738 = vmatpush1.bf16.msra.mxu0 %v1592
        %1739 = vmatprep.subr.bf16.mxu0 0
        %1740 = vmatpush1.bf16.msra.mxu0 %v1593
        %1741 = vmatprep.subr.bf16.mxu0 0
        %1742 = vmatpush1.bf16.msra.mxu0 %v1594
        %1743 = vmatprep.subr.bf16.mxu0 0
        %1744 = vmatpush1.bf16.msra.mxu0 %v1595
        %1745 = vmatprep.subr.bf16.mxu0 0
        %1746 = vmatpush1.bf16.msra.mxu0 %v1596
        %1747 = vmatprep.subr.bf16.mxu0 0
        %1748 = vmatpush1.bf16.msra.mxu0 %v1597
        %1749 = vmatprep.subr.bf16.mxu0 0
        %1750 = vmatpush1.bf16.msra.mxu0 %v1598
        %1751 = vmatprep.subr.bf16.mxu0 0
        %1752 = vmatpush1.bf16.msra.mxu0 %v1599
        %1753 = vmatprep.subr.bf16.mxu0 0
        %1754 = vmatpush1.bf16.msra.mxu0 %v1600
        %1755 = vmatprep.subr.bf16.mxu0 0
        %1756 = vmatpush1.bf16.msra.mxu0 %v1601
        %1757 = vmatprep.subr.bf16.mxu0 0
        %1758 = vmatpush1.bf16.msra.mxu0 %v1602
        %1759 = vmatprep.subr.bf16.mxu0 0
        %1760 = vmatpush1.bf16.msra.mxu0 %v1603
        %1761 = vmatprep.subr.bf16.mxu0 0
        %1762 = vmatpush1.bf16.msra.mxu0 %v1604
        %1763 = vmatprep.subr.bf16.mxu0 0
        %1764 = vmatpush1.bf16.msra.mxu0 %v1605
        %1765 = vmatprep.subr.bf16.mxu0 0
        %1766 = vmatpush1.bf16.msra.mxu0 %v1606
        %1767 = vmatprep.mubr.bf16.mxu0 %v1031
        %1768 = vmatmul.mubr.bf16.gmra.mrb[0].mxu0 %v1029
        %v1769 = vpop.f32.mrb[0].mxu0
        %v1770 = vadd.f32 0.0, %v1769
        %v1771 = vpop.f32.mrb[0].mxu0
        %v1772 = vpop.f32.mrb[0].mxu0
        %v1773 = vadd.f32 0.0, %v1772
        %v1774 = vpop.f32.mrb[0].mxu0
        %1775 = vmatprep.mubr.bf16.mxu0 %v1055
        %1776 = vmatmul.mubr.bf16.gmra.mrb[0].mxu0 %v1053
        %v1777 = vpop.f32.mrb[0].mxu0
        %v1778 = vadd.f32 0.0, %v1777
        %v1779 = vpop.f32.mrb[0].mxu0
        %v1780 = vpop.f32.mrb[0].mxu0
        %v1781 = vadd.f32 0.0, %v1780
        %v1782 = vpop.f32.mrb[0].mxu0
        %1783 = vmatprep.mubr.bf16.mxu0 %v1039
        %1784 = vmatmul.mubr.bf16.gmra.mrb[0].mxu0 %v1037
        %v1785 = vpop.f32.mrb[0].mxu0
        %v1786 = vadd.f32 0.0, %v1785
        %v1787 = vpop.f32.mrb[0].mxu0
        %v1788 = vpop.f32.mrb[0].mxu0
        %v1789 = vadd.f32 0.0, %v1788
        %v1790 = vpop.f32.mrb[0].mxu0
        %1791 = vmatprep.mubr.bf16.mxu0 %v1063
        %1792 = vmatmul.mubr.bf16.gmra.mrb[0].mxu0 %v1061
        %v1793 = vpop.f32.mrb[0].mxu0
        %v1794 = vadd.f32 0.0, %v1793
        %v1795 = vpop.f32.mrb[0].mxu0
        %v1796 = vpop.f32.mrb[0].mxu0
        %v1797 = vadd.f32 0.0, %v1796
        %v1798 = vpop.f32.mrb[0].mxu0
        %1799 = vmatprep.mubr.bf16.mxu0 %v1047
        %1800 = vmatmul.mubr.bf16.gmra.mrb[0].mxu0 %v1045
        %v1801 = vpop.f32.mrb[0].mxu0
        %v1802 = vadd.f32 0.0, %v1801
        %v1803 = vpop.f32.mrb[0].mxu0
        %v1804 = vpop.f32.mrb[0].mxu0
        %v1805 = vadd.f32 0.0, %v1804
        %v1806 = vpop.f32.mrb[0].mxu0
        %1807 = vmatprep.mubr.bf16.mxu0 %v1071
        %1808 = vmatmul.mubr.bf16.gmra.mrb[0].mxu0 %v1069
        %v1809 = vpop.f32.mrb[0].mxu0
        %v1810 = vadd.f32 0.0, %v1809
        %v1811 = vpop.f32.mrb[0].mxu0
        %v1812 = vpop.f32.mrb[0].mxu0
        %v1813 = vadd.f32 0.0, %v1812
        %v1814 = vpop.f32.mrb[0].mxu0
        %1815 = vmatprep.mubr.bf16.mxu0 %v1079
        %1816 = vmatmul.mubr.bf16.gmra.mrb[0].mxu0 %v1077
        %v1817 = vpop.f32.mrb[0].mxu0
        %v1818 = vadd.f32 0.0, %v1817
        %v1819 = vpop.f32.mrb[0].mxu0
        %v1820 = vpop.f32.mrb[0].mxu0
        %v1821 = vadd.f32 0.0, %v1820
        %v1822 = vpop.f32.mrb[0].mxu0
        %1823 = vmatprep.mubr.bf16.mxu0 %v1087
        %1824 = vmatmul.mubr.bf16.gmra.mrb[0].mxu0 %v1085
        %v1825 = vpop.f32.mrb[0].mxu0
        %v1826 = vadd.f32 0.0, %v1825
        %v1827 = vpop.f32.mrb[0].mxu0
        %v1828 = vpop.f32.mrb[0].mxu0
        %v1829 = vadd.f32 0.0, %v1828
        %v1830 = vpop.f32.mrb[0].mxu0
        %1831 = vdwg.mxu0
        %1832 = vmatprep.subr.bf16.mxu0 0
        %1833 = vmatpush1.bf16.msra.mxu0 %v1607
        %1834 = vmatprep.subr.bf16.mxu0 0
        %1835 = vmatpush1.bf16.msra.mxu0 %v1608
        %1836 = vmatprep.subr.bf16.mxu0 0
        %1837 = vmatpush1.bf16.msra.mxu0 %v1609
        %1838 = vmatprep.subr.bf16.mxu0 0
        %1839 = vmatpush1.bf16.msra.mxu0 %v1610
        %1840 = vmatprep.subr.bf16.mxu0 0
        %1841 = vmatpush1.bf16.msra.mxu0 %v1611
        %1842 = vmatprep.subr.bf16.mxu0 0
        %1843 = vmatpush1.bf16.msra.mxu0 %v1612
        %1844 = vmatprep.subr.bf16.mxu0 0
        %1845 = vmatpush1.bf16.msra.mxu0 %v1613
        %1846 = vmatprep.subr.bf16.mxu0 0
        %1847 = vmatpush1.bf16.msra.mxu0 %v1614
        %1848 = vmatprep.subr.bf16.mxu0 0
        %1849 = vmatpush1.bf16.msra.mxu0 %v1615
        %1850 = vmatprep.subr.bf16.mxu0 0
        %1851 = vmatpush1.bf16.msra.mxu0 %v1616
        %1852 = vmatprep.subr.bf16.mxu0 0
        %1853 = vmatpush1.bf16.msra.mxu0 %v1617
        %1854 = vmatprep.subr.bf16.mxu0 0
        %1855 = vmatpush1.bf16.msra.mxu0 %v1618
        %1856 = vmatprep.subr.bf16.mxu0 0
        %1857 = vmatpush1.bf16.msra.mxu0 %v1619
        %1858 = vmatprep.subr.bf16.mxu0 0
        %1859 = vmatpush1.bf16.msra.mxu0 %v1620
        %1860 = vmatprep.subr.bf16.mxu0 0
        %1861 = vmatpush1.bf16.msra.mxu0 %v1621
        %1862 = vmatprep.subr.bf16.mxu0 0
        %1863 = vmatpush1.bf16.msra.mxu0 %v1622
        %1864 = vmatprep.mubr.bf16.mxu0 %v1037
        %1865 = vmatmul.mubr.bf16.gmra.mrb[0].mxu0 %v1034
        %v1866 = vpop.f32.mrb[0].mxu0
        %v1867 = vadd.f32 %v1770, %v1866
        %v1868 = vpop.f32.mrb[0].mxu0
        %v1869 = vpop.f32.mrb[0].mxu0
        %v1870 = vadd.f32 %v1773, %v1869
        %v1871 = vpop.f32.mrb[0].mxu0
        %1872 = vmatprep.mubr.bf16.mxu0 %v1061
        %1873 = vmatmul.mubr.bf16.gmra.mrb[0].mxu0 %v1058
        %v1874 = vpop.f32.mrb[0].mxu0
        %v1875 = vadd.f32 %v1778, %v1874
        %v1876 = vpop.f32.mrb[0].mxu0
        %v1877 = vpop.f32.mrb[0].mxu0
        %v1878 = vadd.f32 %v1781, %v1877
        %v1879 = vpop.f32.mrb[0].mxu0
        %1880 = vmatprep.mubr.bf16.mxu0 %v1045
        %1881 = vmatmul.mubr.bf16.gmra.mrb[0].mxu0 %v1042
        %v1882 = vpop.f32.mrb[0].mxu0
        %v1883 = vadd.f32 %v1786, %v1882
        %v1884 = vpop.f32.mrb[0].mxu0
        %v1885 = vpop.f32.mrb[0].mxu0
        %v1886 = vadd.f32 %v1789, %v1885
        %v1887 = vpop.f32.mrb[0].mxu0
        %1888 = vmatprep.mubr.bf16.mxu0 %v1069
        %1889 = vmatmul.mubr.bf16.gmra.mrb[0].mxu0 %v1066
        %v1890 = vpop.f32.mrb[0].mxu0
        %v1891 = vadd.f32 %v1794, %v1890
        %v1892 = vpop.f32.mrb[0].mxu0
        %v1893 = vpop.f32.mrb[0].mxu0
        %v1894 = vadd.f32 %v1797, %v1893
        %v1895 = vpop.f32.mrb[0].mxu0
        %1896 = vmatprep.mubr.bf16.mxu0 %v1077
        %1897 = vmatmul.mubr.bf16.gmra.mrb[0].mxu0 %v1050
        %v1898 = vpop.f32.mrb[0].mxu0
        %v1899 = vadd.f32 %v1802, %v1898
        %v1900 = vpop.f32.mrb[0].mxu0
        %v1901 = vpop.f32.mrb[0].mxu0
        %v1902 = vadd.f32 %v1805, %v1901
        %v1903 = vpop.f32.mrb[0].mxu0
        %1904 = vmatprep.mubr.bf16.mxu0 %v1085
        %1905 = vmatmul.mubr.bf16.gmra.mrb[0].mxu0 %v1074
        %v1906 = vpop.f32.mrb[0].mxu0
        %v1907 = vadd.f32 %v1810, %v1906
        %v1908 = vpop.f32.mrb[0].mxu0
        %v1909 = vpop.f32.mrb[0].mxu0
        %v1910 = vadd.f32 %v1813, %v1909
        %v1911 = vpop.f32.mrb[0].mxu0
        %1912 = vmatprep.mubr.bf16.mxu0 %v1093
        %1913 = vmatmul.mubr.bf16.gmra.mrb[0].mxu0 %v1082
        %v1914 = vpop.f32.mrb[0].mxu0
        %v1915 = vadd.f32 %v1818, %v1914
        %v1916 = vpop.f32.mrb[0].mxu0
        %v1917 = vpop.f32.mrb[0].mxu0
        %v1918 = vadd.f32 %v1821, %v1917
        %v1919 = vpop.f32.mrb[0].mxu0
        %1920 = vmatprep.mubr.bf16.mxu0 %v1101
        %1921 = vmatmul.mubr.bf16.gmra.mrb[0].mxu0 %v1090
        %v1922 = vpop.f32.mrb[0].mxu0
        %v1923 = vadd.f32 %v1826, %v1922
        %v1924 = vpop.f32.mrb[0].mxu0
        %v1925 = vpop.f32.mrb[0].mxu0
        %v1926 = vadd.f32 %v1829, %v1925
        %v1927 = vpop.f32.mrb[0].mxu0
        %1928 = vdwg.mxu0
        %1929 = vmatprep.subr.bf16.mxu0 0
        %1930 = vmatpush1.bf16.msra.mxu0 %v1623
        %1931 = vmatprep.subr.bf16.mxu0 0
        %1932 = vmatpush1.bf16.msra.mxu0 %v1624
        %1933 = vmatprep.subr.bf16.mxu0 0
        %1934 = vmatpush1.bf16.msra.mxu0 %v1625
        %1935 = vmatprep.subr.bf16.mxu0 0
        %1936 = vmatpush1.bf16.msra.mxu0 %v1626
        %1937 = vmatprep.subr.bf16.mxu0 0
        %1938 = vmatpush1.bf16.msra.mxu0 %v1627
        %1939 = vmatprep.subr.bf16.mxu0 0
        %1940 = vmatpush1.bf16.msra.mxu0 %v1628
        %1941 = vmatprep.subr.bf16.mxu0 0
        %1942 = vmatpush1.bf16.msra.mxu0 %v1629
        %1943 = vmatprep.subr.bf16.mxu0 0
        %1944 = vmatpush1.bf16.msra.mxu0 %v1630
        %1945 = vmatprep.subr.bf16.mxu0 0
        %1946 = vmatpush1.bf16.msra.mxu0 %v1631
        %1947 = vmatprep.subr.bf16.mxu0 0
        %1948 = vmatpush1.bf16.msra.mxu0 %v1632
        %1949 = vmatprep.subr.bf16.mxu0 0
        %1950 = vmatpush1.bf16.msra.mxu0 %v1633
        %1951 = vmatprep.subr.bf16.mxu0 0
        %1952 = vmatpush1.bf16.msra.mxu0 %v1634
        %1953 = vmatprep.subr.bf16.mxu0 0
        %1954 = vmatpush1.bf16.msra.mxu0 %v1635
        %1955 = vmatprep.subr.bf16.mxu0 0
        %1956 = vmatpush1.bf16.msra.mxu0 %v1636
        %1957 = vmatprep.subr.bf16.mxu0 0
        %1958 = vmatpush1.bf16.msra.mxu0 %v1637
        %1959 = vmatprep.subr.bf16.mxu0 0
        %1960 = vmatpush1.bf16.msra.mxu0 %v1638
        %1961 = vmatprep.mubr.bf16.mxu0 %v1042
        %1962 = vmatmul.mubr.bf16.gmra.mrb[0].mxu0 %v1039
        %v1963 = vpop.f32.mrb[0].mxu0
        %v1964 = vadd.f32 %v1867, %v1963
        %v1965 = vpop.f32.mrb[0].mxu0
        %v1966 = vpop.f32.mrb[0].mxu0
        %v1967 = vadd.f32 %v1870, %v1966
        %v1968 = vpop.f32.mrb[0].mxu0
        %1969 = vmatprep.mubr.bf16.mxu0 %v1066
        %1970 = vmatmul.mubr.bf16.gmra.mrb[0].mxu0 %v1063
        %v1971 = vpop.f32.mrb[0].mxu0
        %v1972 = vadd.f32 %v1875, %v1971
        %v1973 = vpop.f32.mrb[0].mxu0
        %v1974 = vpop.f32.mrb[0].mxu0
        %v1975 = vadd.f32 %v1878, %v1974
        %v1976 = vpop.f32.mrb[0].mxu0
        %1977 = vmatprep.mubr.bf16.mxu0 %v1050
        %1978 = vmatmul.mubr.bf16.gmra.mrb[0].mxu0 %v1047
        %v1979 = vpop.f32.mrb[0].mxu0
        %v1980 = vadd.f32 %v1883, %v1979
        %v1981 = vpop.f32.mrb[0].mxu0
        %v1982 = vpop.f32.mrb[0].mxu0
        %v1983 = vadd.f32 %v1886, %v1982
        %v1984 = vpop.f32.mrb[0].mxu0
        %1985 = vmatprep.mubr.bf16.mxu0 %v1074
        %1986 = vmatmul.mubr.bf16.gmra.mrb[0].mxu0 %v1071
        %v1987 = vpop.f32.mrb[0].mxu0
        %v1988 = vadd.f32 %v1891, %v1987
        %v1989 = vpop.f32.mrb[0].mxu0
        %v1990 = vpop.f32.mrb[0].mxu0
        %v1991 = vadd.f32 %v1894, %v1990
        %v1992 = vpop.f32.mrb[0].mxu0
        %1993 = vmatprep.mubr.bf16.mxu0 %v1082
        %1994 = vmatmul.mubr.bf16.gmra.mrb[0].mxu0 %v1079
        %v1995 = vpop.f32.mrb[0].mxu0
        %v1996 = vadd.f32 %v1899, %v1995
        %v1997 = vpop.f32.mrb[0].mxu0
        %v1998 = vpop.f32.mrb[0].mxu0
        %v1999 = vadd.f32 %v1902, %v1998
        %v2000 = vpop.f32.mrb[0].mxu0
        %2001 = vmatprep.mubr.bf16.mxu0 %v1090
        %2002 = vmatmul.mubr.bf16.gmra.mrb[0].mxu0 %v1087
        %v2003 = vpop.f32.mrb[0].mxu0
        %v2004 = vadd.f32 %v1907, %v2003
        %v2005 = vpop.f32.mrb[0].mxu0
        %v2006 = vpop.f32.mrb[0].mxu0
        %v2007 = vadd.f32 %v1910, %v2006
        %v2008 = vpop.f32.mrb[0].mxu0
        %2009 = vmatprep.mubr.bf16.mxu0 %v1098
        %2010 = vmatmul.mubr.bf16.gmra.mrb[0].mxu0 %v1095
        %v2011 = vpop.f32.mrb[0].mxu0
        %v2012 = vadd.f32 %v1915, %v2011
        %v2013 = vpop.f32.mrb[0].mxu0
        %v2014 = vpop.f32.mrb[0].mxu0
        %v2015 = vadd.f32 %v1918, %v2014
        %v2016 = vpop.f32.mrb[0].mxu0
        %2017 = vmatprep.mubr.bf16.mxu0 %v1106
        %2018 = vmatmul.mubr.bf16.gmra.mrb[0].mxu0 %v1103
        %v2019 = vpop.f32.mrb[0].mxu0
        %v2020 = vadd.f32 %v1923, %v2019
        %v2021 = vpop.f32.mrb[0].mxu0
        %v2022 = vpop.f32.mrb[0].mxu0
        %v2023 = vadd.f32 %v1926, %v2022
        %v2024 = vpop.f32.mrb[0].mxu0
        %2025 = vdwg.mxu0
        %2026 = vmatprep.subr.bf16.mxu0 0
        %2027 = vmatpush1.bf16.msra.mxu0 %v1639
        %2028 = vmatprep.subr.bf16.mxu0 0
        %2029 = vmatpush1.bf16.msra.mxu0 %v1640
        %2030 = vmatprep.subr.bf16.mxu0 0
        %2031 = vmatpush1.bf16.msra.mxu0 %v1641
        %2032 = vmatprep.subr.bf16.mxu0 0
        %2033 = vmatpush1.bf16.msra.mxu0 %v1642
        %2034 = vmatprep.subr.bf16.mxu0 0
        %2035 = vmatpush1.bf16.msra.mxu0 %v1643
        %2036 = vmatprep.subr.bf16.mxu0 0
        %2037 = vmatpush1.bf16.msra.mxu0 %v1644
        %2038 = vmatprep.subr.bf16.mxu0 0
        %2039 = vmatpush1.bf16.msra.mxu0 %v1645
        %2040 = vmatprep.subr.bf16.mxu0 0
        %2041 = vmatpush1.bf16.msra.mxu0 %v1646
        %2042 = vmatprep.subr.bf16.mxu0 0
        %2043 = vmatpush1.bf16.msra.mxu0 %v1647
        %2044 = vmatprep.subr.bf16.mxu0 0
        %2045 = vmatpush1.bf16.msra.mxu0 %v1648
        %2046 = vmatprep.subr.bf16.mxu0 0
        %2047 = vmatpush1.bf16.msra.mxu0 %v1649
        %2048 = vmatprep.subr.bf16.mxu0 0
        %2049 = vmatpush1.bf16.msra.mxu0 %v1650
        %2050 = vmatprep.subr.bf16.mxu0 0
        %2051 = vmatpush1.bf16.msra.mxu0 %v1651
        %2052 = vmatprep.subr.bf16.mxu0 0
        %2053 = vmatpush1.bf16.msra.mxu0 %v1652
        %2054 = vmatprep.subr.bf16.mxu0 0
        %2055 = vmatpush1.bf16.msra.mxu0 %v1653
        %2056 = vmatprep.subr.bf16.mxu0 0
        %2057 = vmatpush1.bf16.msra.mxu0 %v1654
        %2058 = vmatprep.mubr.bf16.mxu0 %v1047
        %2059 = vmatmul.mubr.bf16.gmra.mrb[0].mxu0 %v1045
        %v2060 = vpop.f32.mrb[0].mxu0
        %v2061 = vadd.f32 %v1964, %v2060
        %v2062 = vpop.f32.mrb[0].mxu0
        %v2063 = vpop.f32.mrb[0].mxu0
        %v2064 = vadd.f32 %v1967, %v2063
        %v2065 = vpop.f32.mrb[0].mxu0
        %2066 = vmatprep.mubr.bf16.mxu0 %v1071
        %2067 = vmatmul.mubr.bf16.gmra.mrb[0].mxu0 %v1069
        %v2068 = vpop.f32.mrb[0].mxu0
        %v2069 = vadd.f32 %v1972, %v2068
        %v2070 = vpop.f32.mrb[0].mxu0
        %v2071 = vpop.f32.mrb[0].mxu0
        %v2072 = vadd.f32 %v1975, %v2071
        %v2073 = vpop.f32.mrb[0].mxu0
        %2074 = vmatprep.mubr.bf16.mxu0 %v1079
        %2075 = vmatmul.mubr.bf16.gmra.mrb[0].mxu0 %v1077
        %v2076 = vpop.f32.mrb[0].mxu0
        %v2077 = vadd.f32 %v1980, %v2076
        %v2078 = vpop.f32.mrb[0].mxu0
        %v2079 = vpop.f32.mrb[0].mxu0
        %v2080 = vadd.f32 %v1983, %v2079
        %v2081 = vpop.f32.mrb[0].mxu0
        %2082 = vmatprep.mubr.bf16.mxu0 %v1087
        %2083 = vmatmul.mubr.bf16.gmra.mrb[0].mxu0 %v1085
        %v2084 = vpop.f32.mrb[0].mxu0
        %v2085 = vadd.f32 %v1988, %v2084
        %v2086 = vpop.f32.mrb[0].mxu0
        %v2087 = vpop.f32.mrb[0].mxu0
        %v2088 = vadd.f32 %v1991, %v2087
        %v2089 = vpop.f32.mrb[0].mxu0
        %2090 = vmatprep.mubr.bf16.mxu0 %v1095
        %2091 = vmatmul.mubr.bf16.gmra.mrb[0].mxu0 %v1093
        %v2092 = vpop.f32.mrb[0].mxu0
        %v2093 = vadd.f32 %v1996, %v2092
        %v2094 = vpop.f32.mrb[0].mxu0
        %v2095 = vpop.f32.mrb[0].mxu0
        %v2096 = vadd.f32 %v1999, %v2095
        %v2097 = vpop.f32.mrb[0].mxu0
        %2098 = vmatprep.mubr.bf16.mxu0 %v1103
        %2099 = vmatmul.mubr.bf16.gmra.mrb[0].mxu0 %v1101
        %v2100 = vpop.f32.mrb[0].mxu0
        %v2101 = vadd.f32 %v2004, %v2100
        %v2102 = vpop.f32.mrb[0].mxu0
        %v2103 = vpop.f32.mrb[0].mxu0
        %v2104 = vadd.f32 %v2007, %v2103
        %v2105 = vpop.f32.mrb[0].mxu0
        %2106 = vmatprep.mubr.bf16.mxu0 %v1111
        %2107 = vmatmul.mubr.bf16.gmra.mrb[0].mxu0 %v1109
        %v2108 = vpop.f32.mrb[0].mxu0
        %v2109 = vadd.f32 %v2012, %v2108
        %v2110 = vpop.f32.mrb[0].mxu0
        %v2111 = vpop.f32.mrb[0].mxu0
        %v2112 = vadd.f32 %v2015, %v2111
        %v2113 = vpop.f32.mrb[0].mxu0
        %2114 = vmatprep.mubr.bf16.mxu0 %v1119
        %2115 = vmatmul.mubr.bf16.gmra.mrb[0].mxu0 %v1117
        %v2116 = vpop.f32.mrb[0].mxu0
        %v2117 = vadd.f32 %v2020, %v2116
        %v2118 = vpop.f32.mrb[0].mxu0
        %v2119 = vpop.f32.mrb[0].mxu0
        %v2120 = vadd.f32 %v2023, %v2119
        %v2121 = vpop.f32.mrb[0].mxu0
        %2122 = vdwg.mxu0
        %2123 = vmatprep.subr.bf16.mxu0 0
        %2124 = vmatpush1.bf16.msra.mxu0 %v1655
        %2125 = vmatprep.subr.bf16.mxu0 0
        %2126 = vmatpush1.bf16.msra.mxu0 %v1656
        %2127 = vmatprep.subr.bf16.mxu0 0
        %2128 = vmatpush1.bf16.msra.mxu0 %v1657
        %2129 = vmatprep.subr.bf16.mxu0 0
        %2130 = vmatpush1.bf16.msra.mxu0 %v1658
        %2131 = vmatprep.subr.bf16.mxu0 0
        %2132 = vmatpush1.bf16.msra.mxu0 %v1659
        %2133 = vmatprep.subr.bf16.mxu0 0
        %2134 = vmatpush1.bf16.msra.mxu0 %v1660
        %2135 = vmatprep.subr.bf16.mxu0 0
        %2136 = vmatpush1.bf16.msra.mxu0 %v1661
        %2137 = vmatprep.subr.bf16.mxu0 0
        %2138 = vmatpush1.bf16.msra.mxu0 %v1662
        %2139 = vmatprep.subr.bf16.mxu0 0
        %2140 = vmatpush1.bf16.msra.mxu0 0
        %2141 = vmatprep.subr.bf16.mxu0 0
        %2142 = vmatpush1.bf16.msra.mxu0 0
        %2143 = vmatprep.subr.bf16.mxu0 0
        %2144 = vmatpush1.bf16.msra.mxu0 0
        %2145 = vmatprep.subr.bf16.mxu0 0
        %2146 = vmatpush1.bf16.msra.mxu0 0
        %2147 = vmatprep.subr.bf16.mxu0 0
        %2148 = vmatpush1.bf16.msra.mxu0 0
        %2149 = vmatprep.subr.bf16.mxu0 0
        %2150 = vmatpush1.bf16.msra.mxu0 0
        %2151 = vmatprep.subr.bf16.mxu0 0
        %2152 = vmatpush1.bf16.msra.mxu0 0
        %2153 = vmatprep.subr.bf16.mxu0 0
        %2154 = vmatpush1.bf16.msra.mxu0 0
        %2155 = vmatprep.mubr.bf16.mxu0 0
        %2156 = vmatmul.mubr.bf16.gmra.mrb[0].mxu0 %v1050
        %v2157 = vpop.f32.mrb[0].mxu0
        %v2158 = vadd.f32 %v2061, %v2157
        %v2159 = vpop.f32.mrb[0].mxu0
        %v2160 = vpop.f32.mrb[0].mxu0
        %v2161 = vadd.f32 %v2064, %v2160
        %v2162 = vpop.f32.mrb[0].mxu0
        %2163 = vmatprep.mubr.bf16.mxu0 0
        %2164 = vmatmul.mubr.bf16.gmra.mrb[0].mxu0 %v1074
        %v2165 = vpop.f32.mrb[0].mxu0
        %v2166 = vadd.f32 %v2069, %v2165
        %v2167 = vpop.f32.mrb[0].mxu0
        %v2168 = vpop.f32.mrb[0].mxu0
        %v2169 = vadd.f32 %v2072, %v2168
        %v2170 = vpop.f32.mrb[0].mxu0
        %2171 = vmatprep.mubr.bf16.mxu0 0
        %2172 = vmatmul.mubr.bf16.gmra.mrb[0].mxu0 %v1082
        %v2173 = vpop.f32.mrb[0].mxu0
        %v2174 = vadd.f32 %v2077, %v2173
        %v2175 = vpop.f32.mrb[0].mxu0
        %v2176 = vpop.f32.mrb[0].mxu0
        %v2177 = vadd.f32 %v2080, %v2176
        %v2178 = vpop.f32.mrb[0].mxu0
        %2179 = vmatprep.mubr.bf16.mxu0 0
        %2180 = vmatmul.mubr.bf16.gmra.mrb[0].mxu0 %v1090
        %v2181 = vpop.f32.mrb[0].mxu0
        %v2182 = vadd.f32 %v2085, %v2181
        %v2183 = vpop.f32.mrb[0].mxu0
        %v2184 = vpop.f32.mrb[0].mxu0
        %v2185 = vadd.f32 %v2088, %v2184
        %v2186 = vpop.f32.mrb[0].mxu0
        %2187 = vmatprep.mubr.bf16.mxu0 0
        %2188 = vmatmul.mubr.bf16.gmra.mrb[0].mxu0 %v1098
        %v2189 = vpop.f32.mrb[0].mxu0
        %v2190 = vadd.f32 %v2093, %v2189
        %v2191 = vpop.f32.mrb[0].mxu0
        %v2192 = vpop.f32.mrb[0].mxu0
        %v2193 = vadd.f32 %v2096, %v2192
        %v2194 = vpop.f32.mrb[0].mxu0
        %2195 = vmatprep.mubr.bf16.mxu0 0
        %2196 = vmatmul.mubr.bf16.gmra.mrb[0].mxu0 %v1106
        %v2197 = vpop.f32.mrb[0].mxu0
        %v2198 = vadd.f32 %v2101, %v2197
        %v2199 = vpop.f32.mrb[0].mxu0
        %v2200 = vpop.f32.mrb[0].mxu0
        %v2201 = vadd.f32 %v2104, %v2200
        %v2202 = vpop.f32.mrb[0].mxu0
        %2203 = vmatprep.mubr.bf16.mxu0 0
        %2204 = vmatmul.mubr.bf16.gmra.mrb[0].mxu0 %v1114
        %v2205 = vpop.f32.mrb[0].mxu0
        %v2206 = vadd.f32 %v2109, %v2205
        %v2207 = vpop.f32.mrb[0].mxu0
        %v2208 = vpop.f32.mrb[0].mxu0
        %v2209 = vadd.f32 %v2112, %v2208
        %v2210 = vpop.f32.mrb[0].mxu0
        %2211 = vmatprep.mubr.bf16.mxu0 0
        %2212 = vmatmul.mubr.bf16.gmra.mrb[0].mxu0 %v1122
        %v2213 = vpop.f32.mrb[0].mxu0
        %v2214 = vadd.f32 %v2117, %v2213
        %v2215 = vpop.f32.mrb[0].mxu0
        %v2216 = vpop.f32.mrb[0].mxu0
        %v2217 = vadd.f32 %v2120, %v2216
        %v2218 = vpop.f32.mrb[0].mxu0
        %2219 = vdwg.mxu0
        %v2220 = vmax.f32 %v2158, 0.0
        %v2221 = vmax.f32 %v2161, 0.0
        %v2222 = vmax.f32 %v2166, 0.0
        %v2223 = vmax.f32 %v2169, 0.0
        %v2224 = vmax.f32 %v2174, 0.0
        %v2225 = vmax.f32 %v2177, 0.0
        %v2226 = vmax.f32 %v2182, 0.0
        %v2227 = vmax.f32 %v2185, 0.0
        %v2228 = vmax.f32 %v2190, 0.0
        %v2229 = vmax.f32 %v2193, 0.0
        %v2230 = vmax.f32 %v2198, 0.0
        %v2231 = vmax.f32 %v2201, 0.0
        %v2232 = vmax.f32 %v2206, 0.0
        %v2233 = vmax.f32 %v2209, 0.0
        %v2234 = vmax.f32 %v2214, 0.0
        %v2235 = vmax.f32 %v2217, 0.0
        %v2236 = vpack.c.bf16 %v2221, %v2220
        %v2237 = vpack.c.bf16 %v2223, %v2222
        %v2238 = vpack.c.bf16 %v2225, %v2224
        %v2239 = vpack.c.bf16 %v2227, %v2226
        %v2240 = vpack.c.bf16 %v2229, %v2228
        %v2241 = vpack.c.bf16 %v2231, %v2230
        %v2242 = vpack.c.bf16 %v2233, %v2232
        %v2243 = vpack.c.bf16 %v2235, %v2234
        %v2244 = vld [vmem:[#allocation2] sm:$0xff]
        %v2245 = vld [vmem:[#allocation2 + $0x8] sm:$0xff]
        %v2246 = vld [vmem:[#allocation2 + $0x10] sm:$0xff]
        %v2247 = vld [vmem:[#allocation2 + $0x18] sm:$0xff]
        %v2248 = vld [vmem:[#allocation2 + $0x20] sm:$0xff]
        %v2249 = vld [vmem:[#allocation2 + $0x28] sm:$0xff]
        %v2250 = vld [vmem:[#allocation2 + $0x30] sm:$0xff]
        %v2251 = vld [vmem:[#allocation2 + $0x38] sm:$0xff]
        %v2252 = vld [vmem:[#allocation2 + $0x40] sm:$0xff]
        %v2253 = vld [vmem:[#allocation2 + $0x48] sm:$0xff]
        %v2254 = vld [vmem:[#allocation2 + $0x50] sm:$0xff]
        %v2255 = vld [vmem:[#allocation2 + $0x58] sm:$0xff]
        %v2256 = vld [vmem:[#allocation2 + $0x60] sm:$0xff]
        %v2257 = vld [vmem:[#allocation2 + $0x68] sm:$0xff]
        %v2258 = vld [vmem:[#allocation2 + $0x70] sm:$0xff]
        %v2259 = vld [vmem:[#allocation2 + $0x78] sm:$0xff]
        %s2260 = scalar_lea.vmem [#allocation12], 64
        %v2261 = vld [vmem:[%s2260] sm:$0xf]
        %v2262 = vld [vmem:[%s2260 + $0x4] sm:$0xf]
        %v2263 = vld [vmem:[%s2260 + $0x8] sm:$0xf]
        %v2264 = vld [vmem:[%s2260 + $0xc] sm:$0xf]
        %v2265 = vld [vmem:[%s2260 + $0x10] sm:$0xf]
        %v2266 = vld [vmem:[%s2260 + $0x14] sm:$0xf]
        %v2267 = vld [vmem:[%s2260 + $0x18] sm:$0xf]
        %v2268 = vld [vmem:[%s2260 + $0x1c] sm:$0xf]
        %v2269 = vld [vmem:[%s2260 + $0x20] sm:$0xf]
        %v2270 = vld [vmem:[%s2260 + $0x24] sm:$0xf]
        %v2271 = vld [vmem:[%s2260 + $0x28] sm:$0xf]
        %v2272 = vld [vmem:[%s2260 + $0x2c] sm:$0xf]
        %v2273 = vld [vmem:[%s2260 + $0x30] sm:$0xf]
        %v2274 = vld [vmem:[%s2260 + $0x34] sm:$0xf]
        %v2275 = vld [vmem:[%s2260 + $0x38] sm:$0xf]
        %v2276 = vld [vmem:[%s2260 + $0x3c] sm:$0xf]
        %v2293 = vunpack.c.l.b16 %v2261
        %v2294 = vunpack.c.l.b16 %v2262
        %v2295 = vunpack.c.l.b16 %v2263
        %v2296 = vunpack.c.l.b16 %v2264
        %v2297 = vunpack.c.l.b16 %v2265
        %v2298 = vunpack.c.l.b16 %v2266
        %v2299 = vunpack.c.l.b16 %v2267
        %v2300 = vunpack.c.l.b16 %v2268
        %v2301 = vunpack.c.l.b16 %v2269
        %v2302 = vunpack.c.l.b16 %v2270
        %v2303 = vunpack.c.l.b16 %v2271
        %v2304 = vunpack.c.l.b16 %v2272
        %v2305 = vunpack.c.l.b16 %v2273
        %v2306 = vunpack.c.l.b16 %v2274
        %v2307 = vunpack.c.l.b16 %v2275
        %v2308 = vunpack.c.l.b16 %v2276
        %v2309 = vpack.c.b16 %v2294, %v2293
        %v2310 = vpack.c.b16 %v2296, %v2295
        %v2311 = vpack.c.b16 %v2298, %v2297
        %v2312 = vpack.c.b16 %v2300, %v2299
        %v2313 = vpack.c.b16 %v2302, %v2301
        %v2314 = vpack.c.b16 %v2304, %v2303
        %v2315 = vpack.c.b16 %v2306, %v2305
        %v2316 = vpack.c.b16 %v2308, %v2307
        %2325 = vmatprep.subr.bf16.mxu0 0
        %2326 = vmatpush1.bf16.msra.mxu0 %v2309
        %2327 = vmatprep.subr.bf16.mxu0 0
        %2328 = vmatpush1.bf16.msra.mxu0 %v2310
        %2329 = vmatprep.subr.bf16.mxu0 0
        %2330 = vmatpush1.bf16.msra.mxu0 %v2311
        %2331 = vmatprep.subr.bf16.mxu0 0
        %2332 = vmatpush1.bf16.msra.mxu0 %v2312
        %2333 = vmatprep.subr.bf16.mxu0 0
        %2334 = vmatpush1.bf16.msra.mxu0 %v2313
        %2335 = vmatprep.subr.bf16.mxu0 0
        %2336 = vmatpush1.bf16.msra.mxu0 %v2314
        %2337 = vmatprep.subr.bf16.mxu0 0
        %2338 = vmatpush1.bf16.msra.mxu0 %v2315
        %2339 = vmatprep.subr.bf16.mxu0 0
        %2340 = vmatpush1.bf16.msra.mxu0 %v2316
        %2341 = vmatprep.subr.bf16.mxu0 0
        %2342 = vmatpush1.bf16.msra.mxu0 0
        %2343 = vmatprep.subr.bf16.mxu0 0
        %2344 = vmatpush1.bf16.msra.mxu0 0
        %2345 = vmatprep.subr.bf16.mxu0 0
        %2346 = vmatpush1.bf16.msra.mxu0 0
        %2347 = vmatprep.subr.bf16.mxu0 0
        %2348 = vmatpush1.bf16.msra.mxu0 0
        %2349 = vmatprep.subr.bf16.mxu0 0
        %2350 = vmatpush1.bf16.msra.mxu0 0
        %2351 = vmatprep.subr.bf16.mxu0 0
        %2352 = vmatpush1.bf16.msra.mxu0 0
        %2353 = vmatprep.subr.bf16.mxu0 0
        %2354 = vmatpush1.bf16.msra.mxu0 0
        %2355 = vmatprep.subr.bf16.mxu0 0
        %2356 = vmatpush1.bf16.msra.mxu0 0
        %2357 = vmatprep.mubr.bf16.mxu0 0
        %2358 = vmatmul.mubr.bf16.gmra.mrb[0].mxu0 %v2236
        %v2359 = vpop.f32.mrb[0].mxu0
        %v2360 = vadd.f32 0.0, %v2359
        %v2361 = vpop.f32.mrb[0].mxu0
        %v2362 = vpop.f32.mrb[0].mxu0
        %v2363 = vadd.f32 0.0, %v2362
        %v2364 = vpop.f32.mrb[0].mxu0
        %2365 = vmatprep.mubr.bf16.mxu0 0
        %2366 = vmatmul.mubr.bf16.gmra.mrb[0].mxu0 %v2237
        %v2367 = vpop.f32.mrb[0].mxu0
        %v2368 = vadd.f32 0.0, %v2367
        %v2369 = vpop.f32.mrb[0].mxu0
        %v2370 = vpop.f32.mrb[0].mxu0
        %v2371 = vadd.f32 0.0, %v2370
        %v2372 = vpop.f32.mrb[0].mxu0
        %2373 = vmatprep.mubr.bf16.mxu0 0
        %2374 = vmatmul.mubr.bf16.gmra.mrb[0].mxu0 %v2238
        %v2375 = vpop.f32.mrb[0].mxu0
        %v2376 = vadd.f32 0.0, %v2375
        %v2377 = vpop.f32.mrb[0].mxu0
        %v2378 = vpop.f32.mrb[0].mxu0
        %v2379 = vadd.f32 0.0, %v2378
        %v2380 = vpop.f32.mrb[0].mxu0
        %2381 = vmatprep.mubr.bf16.mxu0 0
        %2382 = vmatmul.mubr.bf16.gmra.mrb[0].mxu0 %v2239
        %v2383 = vpop.f32.mrb[0].mxu0
        %v2384 = vadd.f32 0.0, %v2383
        %v2385 = vpop.f32.mrb[0].mxu0
        %v2386 = vpop.f32.mrb[0].mxu0
        %v2387 = vadd.f32 0.0, %v2386
        %v2388 = vpop.f32.mrb[0].mxu0
        %2389 = vmatprep.mubr.bf16.mxu0 0
        %2390 = vmatmul.mubr.bf16.gmra.mrb[0].mxu0 %v2240
        %v2391 = vpop.f32.mrb[0].mxu0
        %v2392 = vadd.f32 0.0, %v2391
        %v2393 = vpop.f32.mrb[0].mxu0
        %v2394 = vpop.f32.mrb[0].mxu0
        %v2395 = vadd.f32 0.0, %v2394
        %v2396 = vpop.f32.mrb[0].mxu0
        %2397 = vmatprep.mubr.bf16.mxu0 0
        %2398 = vmatmul.mubr.bf16.gmra.mrb[0].mxu0 %v2241
        %v2399 = vpop.f32.mrb[0].mxu0
        %v2400 = vadd.f32 0.0, %v2399
        %v2401 = vpop.f32.mrb[0].mxu0
        %v2402 = vpop.f32.mrb[0].mxu0
        %v2403 = vadd.f32 0.0, %v2402
        %v2404 = vpop.f32.mrb[0].mxu0
        %2405 = vmatprep.mubr.bf16.mxu0 0
        %2406 = vmatmul.mubr.bf16.gmra.mrb[0].mxu0 %v2242
        %v2407 = vpop.f32.mrb[0].mxu0
        %v2408 = vadd.f32 0.0, %v2407
        %v2409 = vpop.f32.mrb[0].mxu0
        %v2410 = vpop.f32.mrb[0].mxu0
        %v2411 = vadd.f32 0.0, %v2410
        %v2412 = vpop.f32.mrb[0].mxu0
        %2413 = vmatprep.mubr.bf16.mxu0 0
        %2414 = vmatmul.mubr.bf16.gmra.mrb[0].mxu0 %v2243
        %v2415 = vpop.f32.mrb[0].mxu0
        %v2416 = vadd.f32 0.0, %v2415
        %v2417 = vpop.f32.mrb[0].mxu0
        %v2418 = vpop.f32.mrb[0].mxu0
        %v2419 = vadd.f32 0.0, %v2418
        %v2420 = vpop.f32.mrb[0].mxu0
        %2421 = vdwg.mxu0
        %v2422 = vadd.f32 %v2244, %v2360
        %v2423 = vadd.f32 %v2245, %v2363
        %v2424 = vadd.f32 %v2246, %v2368
        %v2425 = vadd.f32 %v2247, %v2371
        %v2426 = vadd.f32 %v2248, %v2376
        %v2427 = vadd.f32 %v2249, %v2379
        %v2428 = vadd.f32 %v2250, %v2384
        %v2429 = vadd.f32 %v2251, %v2387
        %v2430 = vadd.f32 %v2252, %v2392
        %v2431 = vadd.f32 %v2253, %v2395
        %v2432 = vadd.f32 %v2254, %v2400
        %v2433 = vadd.f32 %v2255, %v2403
        %v2434 = vadd.f32 %v2256, %v2408
        %v2435 = vadd.f32 %v2257, %v2411
        %v2436 = vadd.f32 %v2258, %v2416
        %v2437 = vadd.f32 %v2259, %v2419
        %2438 = vst [vmem:[#allocation2] sm:$0xff] %v2422
        %2439 = vst [vmem:[#allocation2 + $0x8] sm:$0xff] %v2423
        %2440 = vst [vmem:[#allocation2 + $0x10] sm:$0xff] %v2424
        %2441 = vst [vmem:[#allocation2 + $0x18] sm:$0xff] %v2425
        %2442 = vst [vmem:[#allocation2 + $0x20] sm:$0xff] %v2426
        %2443 = vst [vmem:[#allocation2 + $0x28] sm:$0xff] %v2427
        %2444 = vst [vmem:[#allocation2 + $0x30] sm:$0xff] %v2428
        %2445 = vst [vmem:[#allocation2 + $0x38] sm:$0xff] %v2429
        %2446 = vst [vmem:[#allocation2 + $0x40] sm:$0xff] %v2430
        %2447 = vst [vmem:[#allocation2 + $0x48] sm:$0xff] %v2431
        %2448 = vst [vmem:[#allocation2 + $0x50] sm:$0xff] %v2432
        %2449 = vst [vmem:[#allocation2 + $0x58] sm:$0xff] %v2433
        %2450 = vst [vmem:[#allocation2 + $0x60] sm:$0xff] %v2434
        %2451 = vst [vmem:[#allocation2 + $0x68] sm:$0xff] %v2435
        %2452 = vst [vmem:[#allocation2 + $0x70] sm:$0xff] %v2436
        %2453 = vst [vmem:[#allocation2 + $0x78] sm:$0xff] %v2437
        %v2460 = vunpack.c.l.b16 %v383
        %v2461 = vunpack.c.l.b16 %v384
        %v2462 = vunpack.c.l.b16 %v385
        %v2463 = vunpack.c.l.b16 %v387
        %v2464 = vunpack.c.l.b16 %v388
        %v2465 = vunpack.c.l.b16 %v389
        %v2466 = vpack.c.b16 %v2461, %v2460
        %v2467 = vpack.c.b16 %v2462, %v2462
        %v2468 = vpack.c.b16 %v2464, %v2463
        %v2469 = vpack.c.b16 %v2465, %v2465
        %v2470 = vpack.c.b16 %v2462, %v2461
        %v2471 = vpack.c.b16 %v2465, %v2464
        %v2472 = vrot.slane %v2470, 6
        %v2473 = vrot.slane %v2471, 6
        %v2476 = vunpack.c.l.b16 %v386
        %v2477 = vunpack.c.l.b16 %v390
        %v2478 = vpack.c.b16 %v2476, %v2476
        %v2479 = vpack.c.b16 %v2477, %v2477
        %v2486 = vunpack.c.l.b16 %v439
        %v2487 = vunpack.c.l.b16 %v440
        %v2488 = vunpack.c.l.b16 %v441
        %v2489 = vunpack.c.l.b16 %v443
        %v2490 = vunpack.c.l.b16 %v444
        %v2491 = vunpack.c.l.b16 %v445
        %v2492 = vpack.c.b16 %v2487, %v2486
        %v2493 = vpack.c.b16 %v2488, %v2488
        %v2494 = vpack.c.b16 %v2490, %v2489
        %v2495 = vpack.c.b16 %v2491, %v2491
        %v2496 = vpack.c.b16 %v2488, %v2487
        %v2497 = vpack.c.b16 %v2491, %v2490
        %v2498 = vrot.slane %v2496, 6
        %v2499 = vrot.slane %v2497, 6
        %v2502 = vunpack.c.l.b16 %v442
        %v2503 = vunpack.c.l.b16 %v446
        %v2504 = vpack.c.b16 %v2502, %v2502
        %v2505 = vpack.c.b16 %v2503, %v2503
        %vm2506 = vcmask 1045504
        %v2507 = vrot.slane %v2466, 2
        %v2508 = vrot.slane %v2467, 2
        %v2509 = vsel %vm2506, %v2507, %v2508
        %v2510 = vrot.slane %v2472, 2
        %v2511 = vsel %vm2506, %v2510, %v2510
        %v2512 = vrot.slane %v2470, 2
        %v2513 = vrot.slane %v2478, 2
        %v2514 = vsel %vm2506, %v2512, %v2513
        %v2515 = vrot.slane %v901, 2
        %v2516 = vrot.slane %v902, 2
        %v2517 = vsel %vm2506, %v2515, %v2516
        %v2518 = vrot.slane %v954, 2
        %v2519 = vsel %vm2506, %v2518, %v2518
        %v2520 = vrot.slane %v511, 2
        %v2521 = vrot.slane %v941, 2
        %v2522 = vsel %vm2506, %v2520, %v2521
        %v2523 = vrot.slane %v909, 2
        %v2524 = vrot.slane %v910, 2
        %v2525 = vsel %vm2506, %v2523, %v2524
        %v2526 = vrot.slane %v966, 2
        %v2527 = vsel %vm2506, %v2526, %v2526
        %v2528 = vrot.slane %v515, 2
        %v2529 = vrot.slane %v945, 2
        %v2530 = vsel %vm2506, %v2528, %v2529
        %v2531 = vrot.slane %v2468, 2
        %v2532 = vrot.slane %v2469, 2
        %v2533 = vsel %vm2506, %v2531, %v2532
        %v2534 = vrot.slane %v2473, 2
        %v2535 = vsel %vm2506, %v2534, %v2534
        %v2536 = vrot.slane %v2471, 2
        %v2537 = vrot.slane %v2479, 2
        %v2538 = vsel %vm2506, %v2536, %v2537
        %v2539 = vrot.slane %v903, 2
        %v2540 = vrot.slane %v904, 2
        %v2541 = vsel %vm2506, %v2539, %v2540
        %v2542 = vrot.slane %v957, 2
        %v2543 = vsel %vm2506, %v2542, %v2542
        %v2544 = vrot.slane %v512, 2
        %v2545 = vrot.slane %v942, 2
        %v2546 = vsel %vm2506, %v2544, %v2545
        %v2547 = vrot.slane %v911, 2
        %v2548 = vrot.slane %v912, 2
        %v2549 = vsel %vm2506, %v2547, %v2548
        %v2550 = vrot.slane %v969, 2
        %v2551 = vsel %vm2506, %v2550, %v2550
        %v2552 = vrot.slane %v516, 2
        %v2553 = vrot.slane %v946, 2
        %v2554 = vsel %vm2506, %v2552, %v2553
        %v2555 = vrot.slane %v897, 2
        %v2556 = vrot.slane %v898, 2
        %v2557 = vsel %vm2506, %v2555, %v2556
        %v2558 = vrot.slane %v948, 2
        %v2559 = vsel %vm2506, %v2558, %v2558
        %v2560 = vrot.slane %v913, 2
        %v2561 = vrot.slane %v939, 2
        %v2562 = vsel %vm2506, %v2560, %v2561
        %v2563 = vrot.slane %v905, 2
        %v2564 = vrot.slane %v906, 2
        %v2565 = vsel %vm2506, %v2563, %v2564
        %v2566 = vrot.slane %v960, 2
        %v2567 = vsel %vm2506, %v2566, %v2566
        %v2568 = vrot.slane %v513, 2
        %v2569 = vrot.slane %v943, 2
        %v2570 = vsel %vm2506, %v2568, %v2569
        %v2571 = vrot.slane %v976, 2
        %v2572 = vrot.slane %v977, 2
        %v2573 = vsel %vm2506, %v2571, %v2572
        %v2574 = vrot.slane %v988, 2
        %v2575 = vsel %vm2506, %v2574, %v2574
        %v2576 = vrot.slane %v517, 2
        %v2577 = vrot.slane %v986, 2
        %v2578 = vsel %vm2506, %v2576, %v2577
        %v2579 = vrot.slane %v899, 2
        %v2580 = vrot.slane %v900, 2
        %v2581 = vsel %vm2506, %v2579, %v2580
        %v2582 = vrot.slane %v951, 2
        %v2583 = vsel %vm2506, %v2582, %v2582
        %v2584 = vrot.slane %v914, 2
        %v2585 = vrot.slane %v940, 2
        %v2586 = vsel %vm2506, %v2584, %v2585
        %v2587 = vrot.slane %v907, 2
        %v2588 = vrot.slane %v908, 2
        %v2589 = vsel %vm2506, %v2587, %v2588
        %v2590 = vrot.slane %v963, 2
        %v2591 = vsel %vm2506, %v2590, %v2590
        %v2592 = vrot.slane %v514, 2
        %v2593 = vrot.slane %v944, 2
        %v2594 = vsel %vm2506, %v2592, %v2593
        %v2595 = vrot.slane %v978, 2
        %v2596 = vrot.slane %v979, 2
        %v2597 = vsel %vm2506, %v2595, %v2596
        %v2598 = vrot.slane %v991, 2
        %v2599 = vsel %vm2506, %v2598, %v2598
        %v2600 = vrot.slane %v518, 2
        %v2601 = vrot.slane %v987, 2
        %v2602 = vsel %vm2506, %v2600, %v2601
        %v2603 = vrot.slane %v1006, 2
        %v2604 = vrot.slane %v1007, 2
        %v2605 = vsel %vm2506, %v2603, %v2604
        %v2606 = vrot.slane %v1020, 2
        %v2607 = vsel %vm2506, %v2606, %v2606
        %v2608 = vrot.slane %v1010, 2
        %v2609 = vrot.slane %v1018, 2
        %v2610 = vsel %vm2506, %v2608, %v2609
        %v2611 = vrot.slane %v1008, 2
        %v2612 = vrot.slane %v1009, 2
        %v2613 = vsel %vm2506, %v2611, %v2612
        %v2614 = vrot.slane %v1023, 2
        %v2615 = vsel %vm2506, %v2614, %v2614
        %v2616 = vrot.slane %v1011, 2
        %v2617 = vrot.slane %v1019, 2
        %v2618 = vsel %vm2506, %v2616, %v2617
        %v2619 = vrot.slane %v2492, 2
        %v2620 = vrot.slane %v2493, 2
        %v2621 = vsel %vm2506, %v2619, %v2620
        %v2622 = vrot.slane %v2498, 2
        %v2623 = vsel %vm2506, %v2622, %v2622
        %v2624 = vrot.slane %v2496, 2
        %v2625 = vrot.slane %v2504, 2
        %v2626 = vsel %vm2506, %v2624, %v2625
        %v2627 = vrot.slane %v2494, 2
        %v2628 = vrot.slane %v2495, 2
        %v2629 = vsel %vm2506, %v2627, %v2628
        %v2630 = vrot.slane %v2499, 2
        %v2631 = vsel %vm2506, %v2630, %v2630
        %v2632 = vrot.slane %v2497, 2
        %v2633 = vrot.slane %v2505, 2
        %v2634 = vsel %vm2506, %v2632, %v2633
        %v2683 = vld [vmem:[#allocation9] sm:$0xf]
        %v2684 = vld [vmem:[#allocation9 + $0x4] sm:$0xf]
        %v2685 = vld [vmem:[#allocation9 + $0x8] sm:$0xf]
        %v2686 = vld [vmem:[#allocation9 + $0xc] sm:$0xf]
        %v2687 = vld [vmem:[#allocation9 + $0x10] sm:$0xf]
        %v2688 = vld [vmem:[#allocation9 + $0x14] sm:$0xf]
        %v2689 = vld [vmem:[#allocation9 + $0x18] sm:$0xf]
        %v2690 = vld [vmem:[#allocation9 + $0x1c] sm:$0xf]
        %v2691 = vld [vmem:[#allocation9 + $0x20] sm:$0xf]
        %v2692 = vld [vmem:[#allocation9 + $0x24] sm:$0xf]
        %v2693 = vld [vmem:[#allocation9 + $0x28] sm:$0xf]
        %v2694 = vld [vmem:[#allocation9 + $0x2c] sm:$0xf]
        %v2695 = vld [vmem:[#allocation9 + $0x30] sm:$0xf]
        %v2696 = vld [vmem:[#allocation9 + $0x34] sm:$0xf]
        %v2697 = vld [vmem:[#allocation9 + $0x38] sm:$0xf]
        %v2698 = vld [vmem:[#allocation9 + $0x3c] sm:$0xf]
        %v2699 = vld [vmem:[#allocation9 + $0x40] sm:$0xf]
        %v2700 = vld [vmem:[#allocation9 + $0x44] sm:$0xf]
        %v2701 = vld [vmem:[#allocation9 + $0x48] sm:$0xf]
        %v2702 = vld [vmem:[#allocation9 + $0x4c] sm:$0xf]
        %v2703 = vld [vmem:[#allocation9 + $0x50] sm:$0xf]
        %v2704 = vld [vmem:[#allocation9 + $0x54] sm:$0xf]
        %v2705 = vld [vmem:[#allocation9 + $0x58] sm:$0xf]
        %v2706 = vld [vmem:[#allocation9 + $0x5c] sm:$0xf]
        %v2707 = vld [vmem:[#allocation9 + $0x60] sm:$0xf]
        %v2708 = vld [vmem:[#allocation9 + $0x64] sm:$0xf]
        %v2709 = vld [vmem:[#allocation9 + $0x68] sm:$0xf]
        %v2710 = vld [vmem:[#allocation9 + $0x6c] sm:$0xf]
        %v2711 = vld [vmem:[#allocation9 + $0x70] sm:$0xf]
        %v2712 = vld [vmem:[#allocation9 + $0x74] sm:$0xf]
        %v2713 = vld [vmem:[#allocation9 + $0x78] sm:$0xf]
        %v2714 = vld [vmem:[#allocation9 + $0x7c] sm:$0xf]
        %v2715 = vld [vmem:[#allocation9 + $0x80] sm:$0xf]
        %v2716 = vld [vmem:[#allocation9 + $0x84] sm:$0xf]
        %v2717 = vld [vmem:[#allocation9 + $0x88] sm:$0xf]
        %v2718 = vld [vmem:[#allocation9 + $0x8c] sm:$0xf]
        %v2719 = vld [vmem:[#allocation9 + $0x90] sm:$0xf]
        %v2720 = vld [vmem:[#allocation9 + $0x94] sm:$0xf]
        %v2721 = vld [vmem:[#allocation9 + $0x98] sm:$0xf]
        %v2722 = vld [vmem:[#allocation9 + $0x9c] sm:$0xf]
        %v2723 = vld [vmem:[#allocation9 + $0xa0] sm:$0xf]
        %v2724 = vld [vmem:[#allocation9 + $0xa4] sm:$0xf]
        %v2725 = vld [vmem:[#allocation9 + $0xa8] sm:$0xf]
        %v2726 = vld [vmem:[#allocation9 + $0xac] sm:$0xf]
        %v2727 = vld [vmem:[#allocation9 + $0xb0] sm:$0xf]
        %v2728 = vld [vmem:[#allocation9 + $0xb4] sm:$0xf]
        %v2729 = vld [vmem:[#allocation9 + $0xb8] sm:$0xf]
        %v2730 = vld [vmem:[#allocation9 + $0xbc] sm:$0xf]
        %v2731 = vld [vmem:[#allocation9 + $0xc0] sm:$0xf]
        %v2732 = vld [vmem:[#allocation9 + $0xc4] sm:$0xf]
        %v2733 = vld [vmem:[#allocation9 + $0xc8] sm:$0xf]
        %v2734 = vld [vmem:[#allocation9 + $0xcc] sm:$0xf]
        %v2735 = vld [vmem:[#allocation9 + $0xd0] sm:$0xf]
        %v2736 = vld [vmem:[#allocation9 + $0xd4] sm:$0xf]
        %v2737 = vld [vmem:[#allocation9 + $0xd8] sm:$0xf]
        %v2738 = vld [vmem:[#allocation9 + $0xdc] sm:$0xf]
        %v2739 = vld [vmem:[#allocation9 + $0xe0] sm:$0xf]
        %v2740 = vld [vmem:[#allocation9 + $0xe4] sm:$0xf]
        %v2741 = vld [vmem:[#allocation9 + $0xe8] sm:$0xf]
        %v2742 = vld [vmem:[#allocation9 + $0xec] sm:$0xf]
        %v2743 = vld [vmem:[#allocation9 + $0xf0] sm:$0xf]
        %v2744 = vld [vmem:[#allocation9 + $0xf4] sm:$0xf]
        %v2745 = vld [vmem:[#allocation9 + $0xf8] sm:$0xf]
        %v2746 = vld [vmem:[#allocation9 + $0xfc] sm:$0xf]
        %v2747 = vld [vmem:[#allocation9 + $0x100] sm:$0xf]
        %v2748 = vld [vmem:[#allocation9 + $0x104] sm:$0xf]
        %v2749 = vld [vmem:[#allocation9 + $0x108] sm:$0xf]
        %v2750 = vld [vmem:[#allocation9 + $0x10c] sm:$0xf]
        %v2751 = vld [vmem:[#allocation9 + $0x110] sm:$0xf]
        %v2752 = vld [vmem:[#allocation9 + $0x114] sm:$0xf]
        %v2753 = vld [vmem:[#allocation9 + $0x118] sm:$0xf]
        %v2754 = vld [vmem:[#allocation9 + $0x11c] sm:$0xf]
        %v2755 = vld [vmem:[#allocation9 + $0x120] sm:$0xf]
        %v2756 = vld [vmem:[#allocation9 + $0x124] sm:$0xf]
        %v2757 = vld [vmem:[#allocation9 + $0x128] sm:$0xf]
        %v2758 = vld [vmem:[#allocation9 + $0x12c] sm:$0xf]
        %v2759 = vld [vmem:[#allocation9 + $0x130] sm:$0xf]
        %v2760 = vld [vmem:[#allocation9 + $0x134] sm:$0xf]
        %v2761 = vld [vmem:[#allocation9 + $0x138] sm:$0xf]
        %v2762 = vld [vmem:[#allocation9 + $0x13c] sm:$0xf]
        %v2763 = vld [vmem:[#allocation9 + $0x140] sm:$0xf]
        %v2764 = vld [vmem:[#allocation9 + $0x144] sm:$0xf]
        %v2765 = vld [vmem:[#allocation9 + $0x148] sm:$0xf]
        %v2766 = vld [vmem:[#allocation9 + $0x14c] sm:$0xf]
        %v2767 = vld [vmem:[#allocation9 + $0x150] sm:$0xf]
        %v2768 = vld [vmem:[#allocation9 + $0x154] sm:$0xf]
        %v2769 = vld [vmem:[#allocation9 + $0x158] sm:$0xf]
        %v2770 = vld [vmem:[#allocation9 + $0x15c] sm:$0xf]
        %v2771 = vld [vmem:[#allocation9 + $0x160] sm:$0xf]
        %v2772 = vld [vmem:[#allocation9 + $0x164] sm:$0xf]
        %v2773 = vld [vmem:[#allocation9 + $0x168] sm:$0xf]
        %v2774 = vld [vmem:[#allocation9 + $0x16c] sm:$0xf]
        %v2775 = vld [vmem:[#allocation9 + $0x170] sm:$0xf]
        %v2776 = vld [vmem:[#allocation9 + $0x174] sm:$0xf]
        %v2777 = vld [vmem:[#allocation9 + $0x178] sm:$0xf]
        %v2778 = vld [vmem:[#allocation9 + $0x17c] sm:$0xf]
        %v2779 = vld [vmem:[#allocation9 + $0x180] sm:$0xf]
        %v2780 = vld [vmem:[#allocation9 + $0x184] sm:$0xf]
        %v2781 = vld [vmem:[#allocation9 + $0x188] sm:$0xf]
        %v2782 = vld [vmem:[#allocation9 + $0x18c] sm:$0xf]
        %v2783 = vld [vmem:[#allocation9 + $0x190] sm:$0xf]
        %v2784 = vld [vmem:[#allocation9 + $0x194] sm:$0xf]
        %v2785 = vld [vmem:[#allocation9 + $0x198] sm:$0xf]
        %v2786 = vld [vmem:[#allocation9 + $0x19c] sm:$0xf]
        %v2787 = vld [vmem:[#allocation9 + $0x1a0] sm:$0xf]
        %v2788 = vld [vmem:[#allocation9 + $0x1a4] sm:$0xf]
        %v2789 = vld [vmem:[#allocation9 + $0x1a8] sm:$0xf]
        %v2790 = vld [vmem:[#allocation9 + $0x1ac] sm:$0xf]
        %v2791 = vld [vmem:[#allocation9 + $0x1b0] sm:$0xf]
        %v2792 = vld [vmem:[#allocation9 + $0x1b4] sm:$0xf]
        %v2793 = vld [vmem:[#allocation9 + $0x1b8] sm:$0xf]
        %v2794 = vld [vmem:[#allocation9 + $0x1bc] sm:$0xf]
        %v2795 = vld [vmem:[#allocation9 + $0x1c0] sm:$0xf]
        %v2796 = vld [vmem:[#allocation9 + $0x1c4] sm:$0xf]
        %v2797 = vld [vmem:[#allocation9 + $0x1c8] sm:$0xf]
        %v2798 = vld [vmem:[#allocation9 + $0x1cc] sm:$0xf]
        %v2799 = vld [vmem:[#allocation9 + $0x1d0] sm:$0xf]
        %v2800 = vld [vmem:[#allocation9 + $0x1d4] sm:$0xf]
        %v2801 = vld [vmem:[#allocation9 + $0x1d8] sm:$0xf]
        %v2802 = vld [vmem:[#allocation9 + $0x1dc] sm:$0xf]
        %v2803 = vld [vmem:[#allocation9 + $0x1e0] sm:$0xf]
        %v2804 = vld [vmem:[#allocation9 + $0x1e4] sm:$0xf]
        %v2805 = vld [vmem:[#allocation9 + $0x1e8] sm:$0xf]
        %v2806 = vld [vmem:[#allocation9 + $0x1ec] sm:$0xf]
        %v2807 = vld [vmem:[#allocation9 + $0x1f0] sm:$0xf]
        %v2808 = vld [vmem:[#allocation9 + $0x1f4] sm:$0xf]
        %v2809 = vld [vmem:[#allocation9 + $0x1f8] sm:$0xf]
        %v2810 = vld [vmem:[#allocation9 + $0x1fc] sm:$0xf]
        %v2811 = vld [vmem:[#allocation9 + $0x200] sm:$0xf]
        %v2812 = vld [vmem:[#allocation9 + $0x204] sm:$0xf]
        %v2813 = vld [vmem:[#allocation9 + $0x208] sm:$0xf]
        %v2814 = vld [vmem:[#allocation9 + $0x20c] sm:$0xf]
        %v2815 = vld [vmem:[#allocation9 + $0x210] sm:$0xf]
        %v2816 = vld [vmem:[#allocation9 + $0x214] sm:$0xf]
        %v2817 = vld [vmem:[#allocation9 + $0x218] sm:$0xf]
        %v2818 = vld [vmem:[#allocation9 + $0x21c] sm:$0xf]
        %v2819 = vld [vmem:[#allocation9 + $0x220] sm:$0xf]
        %v2820 = vld [vmem:[#allocation9 + $0x224] sm:$0xf]
        %v2821 = vld [vmem:[#allocation9 + $0x228] sm:$0xf]
        %v2822 = vld [vmem:[#allocation9 + $0x22c] sm:$0xf]
        %v2823 = vld [vmem:[#allocation9 + $0x230] sm:$0xf]
        %v2824 = vld [vmem:[#allocation9 + $0x234] sm:$0xf]
        %v2825 = vld [vmem:[#allocation9 + $0x238] sm:$0xf]
        %v2826 = vld [vmem:[#allocation9 + $0x23c] sm:$0xf]
        %v2971 = vunpack.c.l.b16 %v2683
        %v2972 = vunpack.c.l.b16 %v2684
        %v2973 = vunpack.c.l.b16 %v2685
        %v2974 = vunpack.c.l.b16 %v2686
        %v2975 = vunpack.c.l.b16 %v2687
        %v2976 = vunpack.c.l.b16 %v2688
        %v2977 = vunpack.c.l.b16 %v2689
        %v2978 = vunpack.c.l.b16 %v2690
        %v2979 = vunpack.c.l.b16 %v2691
        %v2980 = vunpack.c.l.b16 %v2692
        %v2981 = vunpack.c.l.b16 %v2693
        %v2982 = vunpack.c.l.b16 %v2694
        %v2983 = vunpack.c.l.b16 %v2695
        %v2984 = vunpack.c.l.b16 %v2696
        %v2985 = vunpack.c.l.b16 %v2697
        %v2986 = vunpack.c.l.b16 %v2698
        %v2987 = vunpack.c.l.b16 %v2699
        %v2988 = vunpack.c.l.b16 %v2700
        %v2989 = vunpack.c.l.b16 %v2701
        %v2990 = vunpack.c.l.b16 %v2702
        %v2991 = vunpack.c.l.b16 %v2703
        %v2992 = vunpack.c.l.b16 %v2704
        %v2993 = vunpack.c.l.b16 %v2705
        %v2994 = vunpack.c.l.b16 %v2706
        %v2995 = vunpack.c.l.b16 %v2707
        %v2996 = vunpack.c.l.b16 %v2708
        %v2997 = vunpack.c.l.b16 %v2709
        %v2998 = vunpack.c.l.b16 %v2710
        %v2999 = vunpack.c.l.b16 %v2711
        %v3000 = vunpack.c.l.b16 %v2712
        %v3001 = vunpack.c.l.b16 %v2713
        %v3002 = vunpack.c.l.b16 %v2714
        %v3003 = vunpack.c.l.b16 %v2715
        %v3004 = vunpack.c.l.b16 %v2716
        %v3005 = vunpack.c.l.b16 %v2717
        %v3006 = vunpack.c.l.b16 %v2718
        %v3007 = vunpack.c.l.b16 %v2719
        %v3008 = vunpack.c.l.b16 %v2720
        %v3009 = vunpack.c.l.b16 %v2721
        %v3010 = vunpack.c.l.b16 %v2722
        %v3011 = vunpack.c.l.b16 %v2723
        %v3012 = vunpack.c.l.b16 %v2724
        %v3013 = vunpack.c.l.b16 %v2725
        %v3014 = vunpack.c.l.b16 %v2726
        %v3015 = vunpack.c.l.b16 %v2727
        %v3016 = vunpack.c.l.b16 %v2728
        %v3017 = vunpack.c.l.b16 %v2729
        %v3018 = vunpack.c.l.b16 %v2730
        %v3019 = vunpack.c.l.b16 %v2731
        %v3020 = vunpack.c.l.b16 %v2732
        %v3021 = vunpack.c.l.b16 %v2733
        %v3022 = vunpack.c.l.b16 %v2734
        %v3023 = vunpack.c.l.b16 %v2735
        %v3024 = vunpack.c.l.b16 %v2736
        %v3025 = vunpack.c.l.b16 %v2737
        %v3026 = vunpack.c.l.b16 %v2738
        %v3027 = vunpack.c.l.b16 %v2739
        %v3028 = vunpack.c.l.b16 %v2740
        %v3029 = vunpack.c.l.b16 %v2741
        %v3030 = vunpack.c.l.b16 %v2742
        %v3031 = vunpack.c.l.b16 %v2743
        %v3032 = vunpack.c.l.b16 %v2744
        %v3033 = vunpack.c.l.b16 %v2745
        %v3034 = vunpack.c.l.b16 %v2746
        %v3035 = vunpack.c.l.b16 %v2747
        %v3036 = vunpack.c.l.b16 %v2748
        %v3037 = vunpack.c.l.b16 %v2749
        %v3038 = vunpack.c.l.b16 %v2750
        %v3039 = vunpack.c.l.b16 %v2751
        %v3040 = vunpack.c.l.b16 %v2752
        %v3041 = vunpack.c.l.b16 %v2753
        %v3042 = vunpack.c.l.b16 %v2754
        %v3043 = vunpack.c.l.b16 %v2755
        %v3044 = vunpack.c.l.b16 %v2756
        %v3045 = vunpack.c.l.b16 %v2757
        %v3046 = vunpack.c.l.b16 %v2758
        %v3047 = vunpack.c.l.b16 %v2759
        %v3048 = vunpack.c.l.b16 %v2760
        %v3049 = vunpack.c.l.b16 %v2761
        %v3050 = vunpack.c.l.b16 %v2762
        %v3051 = vunpack.c.l.b16 %v2763
        %v3052 = vunpack.c.l.b16 %v2764
        %v3053 = vunpack.c.l.b16 %v2765
        %v3054 = vunpack.c.l.b16 %v2766
        %v3055 = vunpack.c.l.b16 %v2767
        %v3056 = vunpack.c.l.b16 %v2768
        %v3057 = vunpack.c.l.b16 %v2769
        %v3058 = vunpack.c.l.b16 %v2770
        %v3059 = vunpack.c.l.b16 %v2771
        %v3060 = vunpack.c.l.b16 %v2772
        %v3061 = vunpack.c.l.b16 %v2773
        %v3062 = vunpack.c.l.b16 %v2774
        %v3063 = vunpack.c.l.b16 %v2775
        %v3064 = vunpack.c.l.b16 %v2776
        %v3065 = vunpack.c.l.b16 %v2777
        %v3066 = vunpack.c.l.b16 %v2778
        %v3067 = vunpack.c.l.b16 %v2779
        %v3068 = vunpack.c.l.b16 %v2780
        %v3069 = vunpack.c.l.b16 %v2781
        %v3070 = vunpack.c.l.b16 %v2782
        %v3071 = vunpack.c.l.b16 %v2783
        %v3072 = vunpack.c.l.b16 %v2784
        %v3073 = vunpack.c.l.b16 %v2785
        %v3074 = vunpack.c.l.b16 %v2786
        %v3075 = vunpack.c.l.b16 %v2787
        %v3076 = vunpack.c.l.b16 %v2788
        %v3077 = vunpack.c.l.b16 %v2789
        %v3078 = vunpack.c.l.b16 %v2790
        %v3079 = vunpack.c.l.b16 %v2791
        %v3080 = vunpack.c.l.b16 %v2792
        %v3081 = vunpack.c.l.b16 %v2793
        %v3082 = vunpack.c.l.b16 %v2794
        %v3083 = vunpack.c.l.b16 %v2795
        %v3084 = vunpack.c.l.b16 %v2796
        %v3085 = vunpack.c.l.b16 %v2797
        %v3086 = vunpack.c.l.b16 %v2798
        %v3087 = vunpack.c.l.b16 %v2799
        %v3088 = vunpack.c.l.b16 %v2800
        %v3089 = vunpack.c.l.b16 %v2801
        %v3090 = vunpack.c.l.b16 %v2802
        %v3091 = vunpack.c.l.b16 %v2803
        %v3092 = vunpack.c.l.b16 %v2804
        %v3093 = vunpack.c.l.b16 %v2805
        %v3094 = vunpack.c.l.b16 %v2806
        %v3095 = vunpack.c.l.b16 %v2807
        %v3096 = vunpack.c.l.b16 %v2808
        %v3097 = vunpack.c.l.b16 %v2809
        %v3098 = vunpack.c.l.b16 %v2810
        %v3099 = vunpack.c.l.b16 %v2811
        %v3100 = vunpack.c.l.b16 %v2812
        %v3101 = vunpack.c.l.b16 %v2813
        %v3102 = vunpack.c.l.b16 %v2814
        %v3103 = vunpack.c.l.b16 %v2815
        %v3104 = vunpack.c.l.b16 %v2816
        %v3105 = vunpack.c.l.b16 %v2817
        %v3106 = vunpack.c.l.b16 %v2818
        %v3107 = vunpack.c.l.b16 %v2819
        %v3108 = vunpack.c.l.b16 %v2820
        %v3109 = vunpack.c.l.b16 %v2821
        %v3110 = vunpack.c.l.b16 %v2822
        %v3111 = vunpack.c.l.b16 %v2823
        %v3112 = vunpack.c.l.b16 %v2824
        %v3113 = vunpack.c.l.b16 %v2825
        %v3114 = vunpack.c.l.b16 %v2826
        %v3115 = vpack.c.b16 %v2972, %v2971
        %v3116 = vpack.c.b16 %v2974, %v2973
        %v3117 = vpack.c.b16 %v2976, %v2975
        %v3118 = vpack.c.b16 %v2978, %v2977
        %v3119 = vpack.c.b16 %v2980, %v2979
        %v3120 = vpack.c.b16 %v2982, %v2981
        %v3121 = vpack.c.b16 %v2984, %v2983
        %v3122 = vpack.c.b16 %v2986, %v2985
        %v3123 = vpack.c.b16 %v2988, %v2987
        %v3124 = vpack.c.b16 %v2990, %v2989
        %v3125 = vpack.c.b16 %v2992, %v2991
        %v3126 = vpack.c.b16 %v2994, %v2993
        %v3127 = vpack.c.b16 %v2996, %v2995
        %v3128 = vpack.c.b16 %v2998, %v2997
        %v3129 = vpack.c.b16 %v3000, %v2999
        %v3130 = vpack.c.b16 %v3002, %v3001
        %v3131 = vpack.c.b16 %v3004, %v3003
        %v3132 = vpack.c.b16 %v3006, %v3005
        %v3133 = vpack.c.b16 %v3008, %v3007
        %v3134 = vpack.c.b16 %v3010, %v3009
        %v3135 = vpack.c.b16 %v3012, %v3011
        %v3136 = vpack.c.b16 %v3014, %v3013
        %v3137 = vpack.c.b16 %v3016, %v3015
        %v3138 = vpack.c.b16 %v3018, %v3017
        %v3139 = vpack.c.b16 %v3020, %v3019
        %v3140 = vpack.c.b16 %v3022, %v3021
        %v3141 = vpack.c.b16 %v3024, %v3023
        %v3142 = vpack.c.b16 %v3026, %v3025
        %v3143 = vpack.c.b16 %v3028, %v3027
        %v3144 = vpack.c.b16 %v3030, %v3029
        %v3145 = vpack.c.b16 %v3032, %v3031
        %v3146 = vpack.c.b16 %v3034, %v3033
        %v3147 = vpack.c.b16 %v3036, %v3035
        %v3148 = vpack.c.b16 %v3038, %v3037
        %v3149 = vpack.c.b16 %v3040, %v3039
        %v3150 = vpack.c.b16 %v3042, %v3041
        %v3151 = vpack.c.b16 %v3044, %v3043
        %v3152 = vpack.c.b16 %v3046, %v3045
        %v3153 = vpack.c.b16 %v3048, %v3047
        %v3154 = vpack.c.b16 %v3050, %v3049
        %v3155 = vpack.c.b16 %v3052, %v3051
        %v3156 = vpack.c.b16 %v3054, %v3053
        %v3157 = vpack.c.b16 %v3056, %v3055
        %v3158 = vpack.c.b16 %v3058, %v3057
        %v3159 = vpack.c.b16 %v3060, %v3059
        %v3160 = vpack.c.b16 %v3062, %v3061
        %v3161 = vpack.c.b16 %v3064, %v3063
        %v3162 = vpack.c.b16 %v3066, %v3065
        %v3163 = vpack.c.b16 %v3068, %v3067
        %v3164 = vpack.c.b16 %v3070, %v3069
        %v3165 = vpack.c.b16 %v3072, %v3071
        %v3166 = vpack.c.b16 %v3074, %v3073
        %v3167 = vpack.c.b16 %v3076, %v3075
        %v3168 = vpack.c.b16 %v3078, %v3077
        %v3169 = vpack.c.b16 %v3080, %v3079
        %v3170 = vpack.c.b16 %v3082, %v3081
        %v3171 = vpack.c.b16 %v3084, %v3083
        %v3172 = vpack.c.b16 %v3086, %v3085
        %v3173 = vpack.c.b16 %v3088, %v3087
        %v3174 = vpack.c.b16 %v3090, %v3089
        %v3175 = vpack.c.b16 %v3092, %v3091
        %v3176 = vpack.c.b16 %v3094, %v3093
        %v3177 = vpack.c.b16 %v3096, %v3095
        %v3178 = vpack.c.b16 %v3098, %v3097
        %v3179 = vpack.c.b16 %v3100, %v3099
        %v3180 = vpack.c.b16 %v3102, %v3101
        %v3181 = vpack.c.b16 %v3104, %v3103
        %v3182 = vpack.c.b16 %v3106, %v3105
        %v3183 = vpack.c.b16 %v3108, %v3107
        %v3184 = vpack.c.b16 %v3110, %v3109
        %v3185 = vpack.c.b16 %v3112, %v3111
        %v3186 = vpack.c.b16 %v3114, %v3113
        %3259 = vmatprep.subr.bf16.mxu0 0
        %3260 = vmatpush1.bf16.msra.mxu0 %v3115
        %3261 = vmatprep.subr.bf16.mxu0 0
        %3262 = vmatpush1.bf16.msra.mxu0 %v3116
        %3263 = vmatprep.subr.bf16.mxu0 0
        %3264 = vmatpush1.bf16.msra.mxu0 %v3117
        %3265 = vmatprep.subr.bf16.mxu0 0
        %3266 = vmatpush1.bf16.msra.mxu0 %v3118
        %3267 = vmatprep.subr.bf16.mxu0 0
        %3268 = vmatpush1.bf16.msra.mxu0 %v3119
        %3269 = vmatprep.subr.bf16.mxu0 0
        %3270 = vmatpush1.bf16.msra.mxu0 %v3120
        %3271 = vmatprep.subr.bf16.mxu0 0
        %3272 = vmatpush1.bf16.msra.mxu0 %v3121
        %3273 = vmatprep.subr.bf16.mxu0 0
        %3274 = vmatpush1.bf16.msra.mxu0 %v3122
        %3275 = vmatprep.subr.bf16.mxu0 0
        %3276 = vmatpush1.bf16.msra.mxu0 %v3123
        %3277 = vmatprep.subr.bf16.mxu0 0
        %3278 = vmatpush1.bf16.msra.mxu0 %v3124
        %3279 = vmatprep.subr.bf16.mxu0 0
        %3280 = vmatpush1.bf16.msra.mxu0 %v3125
        %3281 = vmatprep.subr.bf16.mxu0 0
        %3282 = vmatpush1.bf16.msra.mxu0 %v3126
        %3283 = vmatprep.subr.bf16.mxu0 0
        %3284 = vmatpush1.bf16.msra.mxu0 %v3127
        %3285 = vmatprep.subr.bf16.mxu0 0
        %3286 = vmatpush1.bf16.msra.mxu0 %v3128
        %3287 = vmatprep.subr.bf16.mxu0 0
        %3288 = vmatpush1.bf16.msra.mxu0 %v3129
        %3289 = vmatprep.subr.bf16.mxu0 0
        %3290 = vmatpush1.bf16.msra.mxu0 %v3130
        %3291 = vmatprep.mubr.bf16.mxu0 %v2511
        %3292 = vmatmul.mubr.bf16.gmra.mrb[0].mxu0 %v2509
        %v3293 = vpop.f32.mrb[0].mxu0
        %v3294 = vadd.f32 0.0, %v3293
        %v3295 = vpop.f32.mrb[0].mxu0
        %v3296 = vpop.f32.mrb[0].mxu0
        %v3297 = vadd.f32 0.0, %v3296
        %v3298 = vpop.f32.mrb[0].mxu0
        %3299 = vmatprep.mubr.bf16.mxu0 %v2535
        %3300 = vmatmul.mubr.bf16.gmra.mrb[0].mxu0 %v2533
        %v3301 = vpop.f32.mrb[0].mxu0
        %v3302 = vadd.f32 0.0, %v3301
        %v3303 = vpop.f32.mrb[0].mxu0
        %v3304 = vpop.f32.mrb[0].mxu0
        %v3305 = vadd.f32 0.0, %v3304
        %v3306 = vpop.f32.mrb[0].mxu0
        %3307 = vmatprep.mubr.bf16.mxu0 %v2559
        %3308 = vmatmul.mubr.bf16.gmra.mrb[0].mxu0 %v2557
        %v3309 = vpop.f32.mrb[0].mxu0
        %v3310 = vadd.f32 0.0, %v3309
        %v3311 = vpop.f32.mrb[0].mxu0
        %v3312 = vpop.f32.mrb[0].mxu0
        %v3313 = vadd.f32 0.0, %v3312
        %v3314 = vpop.f32.mrb[0].mxu0
        %3315 = vmatprep.mubr.bf16.mxu0 %v2583
        %3316 = vmatmul.mubr.bf16.gmra.mrb[0].mxu0 %v2581
        %v3317 = vpop.f32.mrb[0].mxu0
        %v3318 = vadd.f32 0.0, %v3317
        %v3319 = vpop.f32.mrb[0].mxu0
        %v3320 = vpop.f32.mrb[0].mxu0
        %v3321 = vadd.f32 0.0, %v3320
        %v3322 = vpop.f32.mrb[0].mxu0
        %3323 = vmatprep.mubr.bf16.mxu0 %v2519
        %3324 = vmatmul.mubr.bf16.gmra.mrb[0].mxu0 %v2517
        %v3325 = vpop.f32.mrb[0].mxu0
        %v3326 = vadd.f32 0.0, %v3325
        %v3327 = vpop.f32.mrb[0].mxu0
        %v3328 = vpop.f32.mrb[0].mxu0
        %v3329 = vadd.f32 0.0, %v3328
        %v3330 = vpop.f32.mrb[0].mxu0
        %3331 = vmatprep.mubr.bf16.mxu0 %v2543
        %3332 = vmatmul.mubr.bf16.gmra.mrb[0].mxu0 %v2541
        %v3333 = vpop.f32.mrb[0].mxu0
        %v3334 = vadd.f32 0.0, %v3333
        %v3335 = vpop.f32.mrb[0].mxu0
        %v3336 = vpop.f32.mrb[0].mxu0
        %v3337 = vadd.f32 0.0, %v3336
        %v3338 = vpop.f32.mrb[0].mxu0
        %3339 = vmatprep.mubr.bf16.mxu0 %v2567
        %3340 = vmatmul.mubr.bf16.gmra.mrb[0].mxu0 %v2565
        %v3341 = vpop.f32.mrb[0].mxu0
        %v3342 = vadd.f32 0.0, %v3341
        %v3343 = vpop.f32.mrb[0].mxu0
        %v3344 = vpop.f32.mrb[0].mxu0
        %v3345 = vadd.f32 0.0, %v3344
        %v3346 = vpop.f32.mrb[0].mxu0
        %3347 = vmatprep.mubr.bf16.mxu0 %v2591
        %3348 = vmatmul.mubr.bf16.gmra.mrb[0].mxu0 %v2589
        %v3349 = vpop.f32.mrb[0].mxu0
        %v3350 = vadd.f32 0.0, %v3349
        %v3351 = vpop.f32.mrb[0].mxu0
        %v3352 = vpop.f32.mrb[0].mxu0
        %v3353 = vadd.f32 0.0, %v3352
        %v3354 = vpop.f32.mrb[0].mxu0
        %3355 = vdwg.mxu0
        %3356 = vmatprep.subr.bf16.mxu0 0
        %3357 = vmatpush1.bf16.msra.mxu0 %v3131
        %3358 = vmatprep.subr.bf16.mxu0 0
        %3359 = vmatpush1.bf16.msra.mxu0 %v3132
        %3360 = vmatprep.subr.bf16.mxu0 0
        %3361 = vmatpush1.bf16.msra.mxu0 %v3133
        %3362 = vmatprep.subr.bf16.mxu0 0
        %3363 = vmatpush1.bf16.msra.mxu0 %v3134
        %3364 = vmatprep.subr.bf16.mxu0 0
        %3365 = vmatpush1.bf16.msra.mxu0 %v3135
        %3366 = vmatprep.subr.bf16.mxu0 0
        %3367 = vmatpush1.bf16.msra.mxu0 %v3136
        %3368 = vmatprep.subr.bf16.mxu0 0
        %3369 = vmatpush1.bf16.msra.mxu0 %v3137
        %3370 = vmatprep.subr.bf16.mxu0 0
        %3371 = vmatpush1.bf16.msra.mxu0 %v3138
        %3372 = vmatprep.subr.bf16.mxu0 0
        %3373 = vmatpush1.bf16.msra.mxu0 %v3139
        %3374 = vmatprep.subr.bf16.mxu0 0
        %3375 = vmatpush1.bf16.msra.mxu0 %v3140
        %3376 = vmatprep.subr.bf16.mxu0 0
        %3377 = vmatpush1.bf16.msra.mxu0 %v3141
        %3378 = vmatprep.subr.bf16.mxu0 0
        %3379 = vmatpush1.bf16.msra.mxu0 %v3142
        %3380 = vmatprep.subr.bf16.mxu0 0
        %3381 = vmatpush1.bf16.msra.mxu0 %v3143
        %3382 = vmatprep.subr.bf16.mxu0 0
        %3383 = vmatpush1.bf16.msra.mxu0 %v3144
        %3384 = vmatprep.subr.bf16.mxu0 0
        %3385 = vmatpush1.bf16.msra.mxu0 %v3145
        %3386 = vmatprep.subr.bf16.mxu0 0
        %3387 = vmatpush1.bf16.msra.mxu0 %v3146
        %3388 = vmatprep.mubr.bf16.mxu0 %v2517
        %3389 = vmatmul.mubr.bf16.gmra.mrb[0].mxu0 %v2514
        %v3390 = vpop.f32.mrb[0].mxu0
        %v3391 = vadd.f32 %v3294, %v3390
        %v3392 = vpop.f32.mrb[0].mxu0
        %v3393 = vpop.f32.mrb[0].mxu0
        %v3394 = vadd.f32 %v3297, %v3393
        %v3395 = vpop.f32.mrb[0].mxu0
        %3396 = vmatprep.mubr.bf16.mxu0 %v2541
        %3397 = vmatmul.mubr.bf16.gmra.mrb[0].mxu0 %v2538
        %v3398 = vpop.f32.mrb[0].mxu0
        %v3399 = vadd.f32 %v3302, %v3398
        %v3400 = vpop.f32.mrb[0].mxu0
        %v3401 = vpop.f32.mrb[0].mxu0
        %v3402 = vadd.f32 %v3305, %v3401
        %v3403 = vpop.f32.mrb[0].mxu0
        %3404 = vmatprep.mubr.bf16.mxu0 %v2565
        %3405 = vmatmul.mubr.bf16.gmra.mrb[0].mxu0 %v2562
        %v3406 = vpop.f32.mrb[0].mxu0
        %v3407 = vadd.f32 %v3310, %v3406
        %v3408 = vpop.f32.mrb[0].mxu0
        %v3409 = vpop.f32.mrb[0].mxu0
        %v3410 = vadd.f32 %v3313, %v3409
        %v3411 = vpop.f32.mrb[0].mxu0
        %3412 = vmatprep.mubr.bf16.mxu0 %v2589
        %3413 = vmatmul.mubr.bf16.gmra.mrb[0].mxu0 %v2586
        %v3414 = vpop.f32.mrb[0].mxu0
        %v3415 = vadd.f32 %v3318, %v3414
        %v3416 = vpop.f32.mrb[0].mxu0
        %v3417 = vpop.f32.mrb[0].mxu0
        %v3418 = vadd.f32 %v3321, %v3417
        %v3419 = vpop.f32.mrb[0].mxu0
        %3420 = vmatprep.mubr.bf16.mxu0 %v2525
        %3421 = vmatmul.mubr.bf16.gmra.mrb[0].mxu0 %v2522
        %v3422 = vpop.f32.mrb[0].mxu0
        %v3423 = vadd.f32 %v3326, %v3422
        %v3424 = vpop.f32.mrb[0].mxu0
        %v3425 = vpop.f32.mrb[0].mxu0
        %v3426 = vadd.f32 %v3329, %v3425
        %v3427 = vpop.f32.mrb[0].mxu0
        %3428 = vmatprep.mubr.bf16.mxu0 %v2549
        %3429 = vmatmul.mubr.bf16.gmra.mrb[0].mxu0 %v2546
        %v3430 = vpop.f32.mrb[0].mxu0
        %v3431 = vadd.f32 %v3334, %v3430
        %v3432 = vpop.f32.mrb[0].mxu0
        %v3433 = vpop.f32.mrb[0].mxu0
        %v3434 = vadd.f32 %v3337, %v3433
        %v3435 = vpop.f32.mrb[0].mxu0
        %3436 = vmatprep.mubr.bf16.mxu0 %v2573
        %3437 = vmatmul.mubr.bf16.gmra.mrb[0].mxu0 %v2570
        %v3438 = vpop.f32.mrb[0].mxu0
        %v3439 = vadd.f32 %v3342, %v3438
        %v3440 = vpop.f32.mrb[0].mxu0
        %v3441 = vpop.f32.mrb[0].mxu0
        %v3442 = vadd.f32 %v3345, %v3441
        %v3443 = vpop.f32.mrb[0].mxu0
        %3444 = vmatprep.mubr.bf16.mxu0 %v2597
        %3445 = vmatmul.mubr.bf16.gmra.mrb[0].mxu0 %v2594
        %v3446 = vpop.f32.mrb[0].mxu0
        %v3447 = vadd.f32 %v3350, %v3446
        %v3448 = vpop.f32.mrb[0].mxu0
        %v3449 = vpop.f32.mrb[0].mxu0
        %v3450 = vadd.f32 %v3353, %v3449
        %v3451 = vpop.f32.mrb[0].mxu0
        %3452 = vdwg.mxu0
        %3453 = vmatprep.subr.bf16.mxu0 0
        %3454 = vmatpush1.bf16.msra.mxu0 %v3147
        %3455 = vmatprep.subr.bf16.mxu0 0
        %3456 = vmatpush1.bf16.msra.mxu0 %v3148
        %3457 = vmatprep.subr.bf16.mxu0 0
        %3458 = vmatpush1.bf16.msra.mxu0 %v3149
        %3459 = vmatprep.subr.bf16.mxu0 0
        %3460 = vmatpush1.bf16.msra.mxu0 %v3150
        %3461 = vmatprep.subr.bf16.mxu0 0
        %3462 = vmatpush1.bf16.msra.mxu0 %v3151
        %3463 = vmatprep.subr.bf16.mxu0 0
        %3464 = vmatpush1.bf16.msra.mxu0 %v3152
        %3465 = vmatprep.subr.bf16.mxu0 0
        %3466 = vmatpush1.bf16.msra.mxu0 %v3153
        %3467 = vmatprep.subr.bf16.mxu0 0
        %3468 = vmatpush1.bf16.msra.mxu0 %v3154
        %3469 = vmatprep.subr.bf16.mxu0 0
        %3470 = vmatpush1.bf16.msra.mxu0 %v3155
        %3471 = vmatprep.subr.bf16.mxu0 0
        %3472 = vmatpush1.bf16.msra.mxu0 %v3156
        %3473 = vmatprep.subr.bf16.mxu0 0
        %3474 = vmatpush1.bf16.msra.mxu0 %v3157
        %3475 = vmatprep.subr.bf16.mxu0 0
        %3476 = vmatpush1.bf16.msra.mxu0 %v3158
        %3477 = vmatprep.subr.bf16.mxu0 0
        %3478 = vmatpush1.bf16.msra.mxu0 %v3159
        %3479 = vmatprep.subr.bf16.mxu0 0
        %3480 = vmatpush1.bf16.msra.mxu0 %v3160
        %3481 = vmatprep.subr.bf16.mxu0 0
        %3482 = vmatpush1.bf16.msra.mxu0 %v3161
        %3483 = vmatprep.subr.bf16.mxu0 0
        %3484 = vmatpush1.bf16.msra.mxu0 %v3162
        %3485 = vmatprep.mubr.bf16.mxu0 %v2522
        %3486 = vmatmul.mubr.bf16.gmra.mrb[0].mxu0 %v2519
        %v3487 = vpop.f32.mrb[0].mxu0
        %v3488 = vadd.f32 %v3391, %v3487
        %v3489 = vpop.f32.mrb[0].mxu0
        %v3490 = vpop.f32.mrb[0].mxu0
        %v3491 = vadd.f32 %v3394, %v3490
        %v3492 = vpop.f32.mrb[0].mxu0
        %3493 = vmatprep.mubr.bf16.mxu0 %v2546
        %3494 = vmatmul.mubr.bf16.gmra.mrb[0].mxu0 %v2543
        %v3495 = vpop.f32.mrb[0].mxu0
        %v3496 = vadd.f32 %v3399, %v3495
        %v3497 = vpop.f32.mrb[0].mxu0
        %v3498 = vpop.f32.mrb[0].mxu0
        %v3499 = vadd.f32 %v3402, %v3498
        %v3500 = vpop.f32.mrb[0].mxu0
        %3501 = vmatprep.mubr.bf16.mxu0 %v2570
        %3502 = vmatmul.mubr.bf16.gmra.mrb[0].mxu0 %v2567
        %v3503 = vpop.f32.mrb[0].mxu0
        %v3504 = vadd.f32 %v3407, %v3503
        %v3505 = vpop.f32.mrb[0].mxu0
        %v3506 = vpop.f32.mrb[0].mxu0
        %v3507 = vadd.f32 %v3410, %v3506
        %v3508 = vpop.f32.mrb[0].mxu0
        %3509 = vmatprep.mubr.bf16.mxu0 %v2594
        %3510 = vmatmul.mubr.bf16.gmra.mrb[0].mxu0 %v2591
        %v3511 = vpop.f32.mrb[0].mxu0
        %v3512 = vadd.f32 %v3415, %v3511
        %v3513 = vpop.f32.mrb[0].mxu0
        %v3514 = vpop.f32.mrb[0].mxu0
        %v3515 = vadd.f32 %v3418, %v3514
        %v3516 = vpop.f32.mrb[0].mxu0
        %3517 = vmatprep.mubr.bf16.mxu0 %v2530
        %3518 = vmatmul.mubr.bf16.gmra.mrb[0].mxu0 %v2527
        %v3519 = vpop.f32.mrb[0].mxu0
        %v3520 = vadd.f32 %v3423, %v3519
        %v3521 = vpop.f32.mrb[0].mxu0
        %v3522 = vpop.f32.mrb[0].mxu0
        %v3523 = vadd.f32 %v3426, %v3522
        %v3524 = vpop.f32.mrb[0].mxu0
        %3525 = vmatprep.mubr.bf16.mxu0 %v2554
        %3526 = vmatmul.mubr.bf16.gmra.mrb[0].mxu0 %v2551
        %v3527 = vpop.f32.mrb[0].mxu0
        %v3528 = vadd.f32 %v3431, %v3527
        %v3529 = vpop.f32.mrb[0].mxu0
        %v3530 = vpop.f32.mrb[0].mxu0
        %v3531 = vadd.f32 %v3434, %v3530
        %v3532 = vpop.f32.mrb[0].mxu0
        %3533 = vmatprep.mubr.bf16.mxu0 %v2578
        %3534 = vmatmul.mubr.bf16.gmra.mrb[0].mxu0 %v2575
        %v3535 = vpop.f32.mrb[0].mxu0
        %v3536 = vadd.f32 %v3439, %v3535
        %v3537 = vpop.f32.mrb[0].mxu0
        %v3538 = vpop.f32.mrb[0].mxu0
        %v3539 = vadd.f32 %v3442, %v3538
        %v3540 = vpop.f32.mrb[0].mxu0
        %3541 = vmatprep.mubr.bf16.mxu0 %v2602
        %3542 = vmatmul.mubr.bf16.gmra.mrb[0].mxu0 %v2599
        %v3543 = vpop.f32.mrb[0].mxu0
        %v3544 = vadd.f32 %v3447, %v3543
        %v3545 = vpop.f32.mrb[0].mxu0
        %v3546 = vpop.f32.mrb[0].mxu0
        %v3547 = vadd.f32 %v3450, %v3546
        %v3548 = vpop.f32.mrb[0].mxu0
        %3549 = vdwg.mxu0
        %3550 = vmatprep.subr.bf16.mxu0 0
        %3551 = vmatpush1.bf16.msra.mxu0 %v3163
        %3552 = vmatprep.subr.bf16.mxu0 0
        %3553 = vmatpush1.bf16.msra.mxu0 %v3164
        %3554 = vmatprep.subr.bf16.mxu0 0
        %3555 = vmatpush1.bf16.msra.mxu0 %v3165
        %3556 = vmatprep.subr.bf16.mxu0 0
        %3557 = vmatpush1.bf16.msra.mxu0 %v3166
        %3558 = vmatprep.subr.bf16.mxu0 0
        %3559 = vmatpush1.bf16.msra.mxu0 %v3167
        %3560 = vmatprep.subr.bf16.mxu0 0
        %3561 = vmatpush1.bf16.msra.mxu0 %v3168
        %3562 = vmatprep.subr.bf16.mxu0 0
        %3563 = vmatpush1.bf16.msra.mxu0 %v3169
        %3564 = vmatprep.subr.bf16.mxu0 0
        %3565 = vmatpush1.bf16.msra.mxu0 %v3170
        %3566 = vmatprep.subr.bf16.mxu0 0
        %3567 = vmatpush1.bf16.msra.mxu0 %v3171
        %3568 = vmatprep.subr.bf16.mxu0 0
        %3569 = vmatpush1.bf16.msra.mxu0 %v3172
        %3570 = vmatprep.subr.bf16.mxu0 0
        %3571 = vmatpush1.bf16.msra.mxu0 %v3173
        %3572 = vmatprep.subr.bf16.mxu0 0
        %3573 = vmatpush1.bf16.msra.mxu0 %v3174
        %3574 = vmatprep.subr.bf16.mxu0 0
        %3575 = vmatpush1.bf16.msra.mxu0 %v3175
        %3576 = vmatprep.subr.bf16.mxu0 0
        %3577 = vmatpush1.bf16.msra.mxu0 %v3176
        %3578 = vmatprep.subr.bf16.mxu0 0
        %3579 = vmatpush1.bf16.msra.mxu0 %v3177
        %3580 = vmatprep.subr.bf16.mxu0 0
        %3581 = vmatpush1.bf16.msra.mxu0 %v3178
        %3582 = vmatprep.mubr.bf16.mxu0 %v2527
        %3583 = vmatmul.mubr.bf16.gmra.mrb[0].mxu0 %v2525
        %v3584 = vpop.f32.mrb[0].mxu0
        %v3585 = vadd.f32 %v3488, %v3584
        %v3586 = vpop.f32.mrb[0].mxu0
        %v3587 = vpop.f32.mrb[0].mxu0
        %v3588 = vadd.f32 %v3491, %v3587
        %v3589 = vpop.f32.mrb[0].mxu0
        %3590 = vmatprep.mubr.bf16.mxu0 %v2551
        %3591 = vmatmul.mubr.bf16.gmra.mrb[0].mxu0 %v2549
        %v3592 = vpop.f32.mrb[0].mxu0
        %v3593 = vadd.f32 %v3496, %v3592
        %v3594 = vpop.f32.mrb[0].mxu0
        %v3595 = vpop.f32.mrb[0].mxu0
        %v3596 = vadd.f32 %v3499, %v3595
        %v3597 = vpop.f32.mrb[0].mxu0
        %3598 = vmatprep.mubr.bf16.mxu0 %v2575
        %3599 = vmatmul.mubr.bf16.gmra.mrb[0].mxu0 %v2573
        %v3600 = vpop.f32.mrb[0].mxu0
        %v3601 = vadd.f32 %v3504, %v3600
        %v3602 = vpop.f32.mrb[0].mxu0
        %v3603 = vpop.f32.mrb[0].mxu0
        %v3604 = vadd.f32 %v3507, %v3603
        %v3605 = vpop.f32.mrb[0].mxu0
        %3606 = vmatprep.mubr.bf16.mxu0 %v2599
        %3607 = vmatmul.mubr.bf16.gmra.mrb[0].mxu0 %v2597
        %v3608 = vpop.f32.mrb[0].mxu0
        %v3609 = vadd.f32 %v3512, %v3608
        %v3610 = vpop.f32.mrb[0].mxu0
        %v3611 = vpop.f32.mrb[0].mxu0
        %v3612 = vadd.f32 %v3515, %v3611
        %v3613 = vpop.f32.mrb[0].mxu0
        %3614 = vmatprep.mubr.bf16.mxu0 %v2607
        %3615 = vmatmul.mubr.bf16.gmra.mrb[0].mxu0 %v2605
        %v3616 = vpop.f32.mrb[0].mxu0
        %v3617 = vadd.f32 %v3520, %v3616
        %v3618 = vpop.f32.mrb[0].mxu0
        %v3619 = vpop.f32.mrb[0].mxu0
        %v3620 = vadd.f32 %v3523, %v3619
        %v3621 = vpop.f32.mrb[0].mxu0
        %3622 = vmatprep.mubr.bf16.mxu0 %v2615
        %3623 = vmatmul.mubr.bf16.gmra.mrb[0].mxu0 %v2613
        %v3624 = vpop.f32.mrb[0].mxu0
        %v3625 = vadd.f32 %v3528, %v3624
        %v3626 = vpop.f32.mrb[0].mxu0
        %v3627 = vpop.f32.mrb[0].mxu0
        %v3628 = vadd.f32 %v3531, %v3627
        %v3629 = vpop.f32.mrb[0].mxu0
        %3630 = vmatprep.mubr.bf16.mxu0 %v2623
        %3631 = vmatmul.mubr.bf16.gmra.mrb[0].mxu0 %v2621
        %v3632 = vpop.f32.mrb[0].mxu0
        %v3633 = vadd.f32 %v3536, %v3632
        %v3634 = vpop.f32.mrb[0].mxu0
        %v3635 = vpop.f32.mrb[0].mxu0
        %v3636 = vadd.f32 %v3539, %v3635
        %v3637 = vpop.f32.mrb[0].mxu0
        %3638 = vmatprep.mubr.bf16.mxu0 %v2631
        %3639 = vmatmul.mubr.bf16.gmra.mrb[0].mxu0 %v2629
        %v3640 = vpop.f32.mrb[0].mxu0
        %v3641 = vadd.f32 %v3544, %v3640
        %v3642 = vpop.f32.mrb[0].mxu0
        %v3643 = vpop.f32.mrb[0].mxu0
        %v3644 = vadd.f32 %v3547, %v3643
        %v3645 = vpop.f32.mrb[0].mxu0
        %3646 = vdwg.mxu0
        %3647 = vmatprep.subr.bf16.mxu0 0
        %3648 = vmatpush1.bf16.msra.mxu0 %v3179
        %3649 = vmatprep.subr.bf16.mxu0 0
        %3650 = vmatpush1.bf16.msra.mxu0 %v3180
        %3651 = vmatprep.subr.bf16.mxu0 0
        %3652 = vmatpush1.bf16.msra.mxu0 %v3181
        %3653 = vmatprep.subr.bf16.mxu0 0
        %3654 = vmatpush1.bf16.msra.mxu0 %v3182
        %3655 = vmatprep.subr.bf16.mxu0 0
        %3656 = vmatpush1.bf16.msra.mxu0 %v3183
        %3657 = vmatprep.subr.bf16.mxu0 0
        %3658 = vmatpush1.bf16.msra.mxu0 %v3184
        %3659 = vmatprep.subr.bf16.mxu0 0
        %3660 = vmatpush1.bf16.msra.mxu0 %v3185
        %3661 = vmatprep.subr.bf16.mxu0 0
        %3662 = vmatpush1.bf16.msra.mxu0 %v3186
        %3663 = vmatprep.subr.bf16.mxu0 0
        %3664 = vmatpush1.bf16.msra.mxu0 0
        %3665 = vmatprep.subr.bf16.mxu0 0
        %3666 = vmatpush1.bf16.msra.mxu0 0
        %3667 = vmatprep.subr.bf16.mxu0 0
        %3668 = vmatpush1.bf16.msra.mxu0 0
        %3669 = vmatprep.subr.bf16.mxu0 0
        %3670 = vmatpush1.bf16.msra.mxu0 0
        %3671 = vmatprep.subr.bf16.mxu0 0
        %3672 = vmatpush1.bf16.msra.mxu0 0
        %3673 = vmatprep.subr.bf16.mxu0 0
        %3674 = vmatpush1.bf16.msra.mxu0 0
        %3675 = vmatprep.subr.bf16.mxu0 0
        %3676 = vmatpush1.bf16.msra.mxu0 0
        %3677 = vmatprep.subr.bf16.mxu0 0
        %3678 = vmatpush1.bf16.msra.mxu0 0
        %3679 = vmatprep.mubr.bf16.mxu0 0
        %3680 = vmatmul.mubr.bf16.gmra.mrb[0].mxu0 %v2530
        %v3681 = vpop.f32.mrb[0].mxu0
        %v3682 = vadd.f32 %v3585, %v3681
        %v3683 = vpop.f32.mrb[0].mxu0
        %v3684 = vpop.f32.mrb[0].mxu0
        %v3685 = vadd.f32 %v3588, %v3684
        %v3686 = vpop.f32.mrb[0].mxu0
        %3687 = vmatprep.mubr.bf16.mxu0 0
        %3688 = vmatmul.mubr.bf16.gmra.mrb[0].mxu0 %v2554
        %v3689 = vpop.f32.mrb[0].mxu0
        %v3690 = vadd.f32 %v3593, %v3689
        %v3691 = vpop.f32.mrb[0].mxu0
        %v3692 = vpop.f32.mrb[0].mxu0
        %v3693 = vadd.f32 %v3596, %v3692
        %v3694 = vpop.f32.mrb[0].mxu0
        %3695 = vmatprep.mubr.bf16.mxu0 0
        %3696 = vmatmul.mubr.bf16.gmra.mrb[0].mxu0 %v2578
        %v3697 = vpop.f32.mrb[0].mxu0
        %v3698 = vadd.f32 %v3601, %v3697
        %v3699 = vpop.f32.mrb[0].mxu0
        %v3700 = vpop.f32.mrb[0].mxu0
        %v3701 = vadd.f32 %v3604, %v3700
        %v3702 = vpop.f32.mrb[0].mxu0
        %3703 = vmatprep.mubr.bf16.mxu0 0
        %3704 = vmatmul.mubr.bf16.gmra.mrb[0].mxu0 %v2602
        %v3705 = vpop.f32.mrb[0].mxu0
        %v3706 = vadd.f32 %v3609, %v3705
        %v3707 = vpop.f32.mrb[0].mxu0
        %v3708 = vpop.f32.mrb[0].mxu0
        %v3709 = vadd.f32 %v3612, %v3708
        %v3710 = vpop.f32.mrb[0].mxu0
        %3711 = vmatprep.mubr.bf16.mxu0 0
        %3712 = vmatmul.mubr.bf16.gmra.mrb[0].mxu0 %v2610
        %v3713 = vpop.f32.mrb[0].mxu0
        %v3714 = vadd.f32 %v3617, %v3713
        %v3715 = vpop.f32.mrb[0].mxu0
        %v3716 = vpop.f32.mrb[0].mxu0
        %v3717 = vadd.f32 %v3620, %v3716
        %v3718 = vpop.f32.mrb[0].mxu0
        %3719 = vmatprep.mubr.bf16.mxu0 0
        %3720 = vmatmul.mubr.bf16.gmra.mrb[0].mxu0 %v2618
        %v3721 = vpop.f32.mrb[0].mxu0
        %v3722 = vadd.f32 %v3625, %v3721
        %v3723 = vpop.f32.mrb[0].mxu0
        %v3724 = vpop.f32.mrb[0].mxu0
        %v3725 = vadd.f32 %v3628, %v3724
        %v3726 = vpop.f32.mrb[0].mxu0
        %3727 = vmatprep.mubr.bf16.mxu0 0
        %3728 = vmatmul.mubr.bf16.gmra.mrb[0].mxu0 %v2626
        %v3729 = vpop.f32.mrb[0].mxu0
        %v3730 = vadd.f32 %v3633, %v3729
        %v3731 = vpop.f32.mrb[0].mxu0
        %v3732 = vpop.f32.mrb[0].mxu0
        %v3733 = vadd.f32 %v3636, %v3732
        %v3734 = vpop.f32.mrb[0].mxu0
        %3735 = vmatprep.mubr.bf16.mxu0 0
        %3736 = vmatmul.mubr.bf16.gmra.mrb[0].mxu0 %v2634
        %v3737 = vpop.f32.mrb[0].mxu0
        %v3738 = vadd.f32 %v3641, %v3737
        %v3739 = vpop.f32.mrb[0].mxu0
        %v3740 = vpop.f32.mrb[0].mxu0
        %v3741 = vadd.f32 %v3644, %v3740
        %v3742 = vpop.f32.mrb[0].mxu0
        %3743 = vdwg.mxu0
        %v3744 = vmax.f32 %v3682, 0.0
        %v3745 = vmax.f32 %v3685, 0.0
        %v3746 = vmax.f32 %v3690, 0.0
        %v3747 = vmax.f32 %v3693, 0.0
        %v3748 = vmax.f32 %v3698, 0.0
        %v3749 = vmax.f32 %v3701, 0.0
        %v3750 = vmax.f32 %v3706, 0.0
        %v3751 = vmax.f32 %v3709, 0.0
        %v3752 = vmax.f32 %v3714, 0.0
        %v3753 = vmax.f32 %v3717, 0.0
        %v3754 = vmax.f32 %v3722, 0.0
        %v3755 = vmax.f32 %v3725, 0.0
        %v3756 = vmax.f32 %v3730, 0.0
        %v3757 = vmax.f32 %v3733, 0.0
        %v3758 = vmax.f32 %v3738, 0.0
        %v3759 = vmax.f32 %v3741, 0.0
        %v3760 = vpack.c.bf16 %v3745, %v3744
        %v3761 = vpack.c.bf16 %v3747, %v3746
        %v3762 = vpack.c.bf16 %v3749, %v3748
        %v3763 = vpack.c.bf16 %v3751, %v3750
        %v3764 = vpack.c.bf16 %v3753, %v3752
        %v3765 = vpack.c.bf16 %v3755, %v3754
        %v3766 = vpack.c.bf16 %v3757, %v3756
        %v3767 = vpack.c.bf16 %v3759, %v3758
        %v3768 = vld [vmem:[#allocation2] sm:$0xff]
        %v3769 = vld [vmem:[#allocation2 + $0x8] sm:$0xff]
        %v3770 = vld [vmem:[#allocation2 + $0x10] sm:$0xff]
        %v3771 = vld [vmem:[#allocation2 + $0x18] sm:$0xff]
        %v3772 = vld [vmem:[#allocation2 + $0x20] sm:$0xff]
        %v3773 = vld [vmem:[#allocation2 + $0x28] sm:$0xff]
        %v3774 = vld [vmem:[#allocation2 + $0x30] sm:$0xff]
        %v3775 = vld [vmem:[#allocation2 + $0x38] sm:$0xff]
        %v3776 = vld [vmem:[#allocation2 + $0x40] sm:$0xff]
        %v3777 = vld [vmem:[#allocation2 + $0x48] sm:$0xff]
        %v3778 = vld [vmem:[#allocation2 + $0x50] sm:$0xff]
        %v3779 = vld [vmem:[#allocation2 + $0x58] sm:$0xff]
        %v3780 = vld [vmem:[#allocation2 + $0x60] sm:$0xff]
        %v3781 = vld [vmem:[#allocation2 + $0x68] sm:$0xff]
        %v3782 = vld [vmem:[#allocation2 + $0x70] sm:$0xff]
        %v3783 = vld [vmem:[#allocation2 + $0x78] sm:$0xff]
        %s3784 = scalar_lea.vmem [#allocation12], 128
        %v3785 = vld [vmem:[%s3784] sm:$0xf]
        %v3786 = vld [vmem:[%s3784 + $0x4] sm:$0xf]
        %v3787 = vld [vmem:[%s3784 + $0x8] sm:$0xf]
        %v3788 = vld [vmem:[%s3784 + $0xc] sm:$0xf]
        %v3789 = vld [vmem:[%s3784 + $0x10] sm:$0xf]
        %v3790 = vld [vmem:[%s3784 + $0x14] sm:$0xf]
        %v3791 = vld [vmem:[%s3784 + $0x18] sm:$0xf]
        %v3792 = vld [vmem:[%s3784 + $0x1c] sm:$0xf]
        %v3793 = vld [vmem:[%s3784 + $0x20] sm:$0xf]
        %v3794 = vld [vmem:[%s3784 + $0x24] sm:$0xf]
        %v3795 = vld [vmem:[%s3784 + $0x28] sm:$0xf]
        %v3796 = vld [vmem:[%s3784 + $0x2c] sm:$0xf]
        %v3797 = vld [vmem:[%s3784 + $0x30] sm:$0xf]
        %v3798 = vld [vmem:[%s3784 + $0x34] sm:$0xf]
        %v3799 = vld [vmem:[%s3784 + $0x38] sm:$0xf]
        %v3800 = vld [vmem:[%s3784 + $0x3c] sm:$0xf]
        %v3817 = vunpack.c.l.b16 %v3785
        %v3818 = vunpack.c.l.b16 %v3786
        %v3819 = vunpack.c.l.b16 %v3787
        %v3820 = vunpack.c.l.b16 %v3788
        %v3821 = vunpack.c.l.b16 %v3789
        %v3822 = vunpack.c.l.b16 %v3790
        %v3823 = vunpack.c.l.b16 %v3791
        %v3824 = vunpack.c.l.b16 %v3792
        %v3825 = vunpack.c.l.b16 %v3793
        %v3826 = vunpack.c.l.b16 %v3794
        %v3827 = vunpack.c.l.b16 %v3795
        %v3828 = vunpack.c.l.b16 %v3796
        %v3829 = vunpack.c.l.b16 %v3797
        %v3830 = vunpack.c.l.b16 %v3798
        %v3831 = vunpack.c.l.b16 %v3799
        %v3832 = vunpack.c.l.b16 %v3800
        %v3833 = vpack.c.b16 %v3818, %v3817
        %v3834 = vpack.c.b16 %v3820, %v3819
        %v3835 = vpack.c.b16 %v3822, %v3821
        %v3836 = vpack.c.b16 %v3824, %v3823
        %v3837 = vpack.c.b16 %v3826, %v3825
        %v3838 = vpack.c.b16 %v3828, %v3827
        %v3839 = vpack.c.b16 %v3830, %v3829
        %v3840 = vpack.c.b16 %v3832, %v3831
        %3849 = vmatprep.subr.bf16.mxu0 0
        %3850 = vmatpush1.bf16.msra.mxu0 %v3833
        %3851 = vmatprep.subr.bf16.mxu0 0
        %3852 = vmatpush1.bf16.msra.mxu0 %v3834
        %3853 = vmatprep.subr.bf16.mxu0 0
        %3854 = vmatpush1.bf16.msra.mxu0 %v3835
        %3855 = vmatprep.subr.bf16.mxu0 0
        %3856 = vmatpush1.bf16.msra.mxu0 %v3836
        %3857 = vmatprep.subr.bf16.mxu0 0
        %3858 = vmatpush1.bf16.msra.mxu0 %v3837
        %3859 = vmatprep.subr.bf16.mxu0 0
        %3860 = vmatpush1.bf16.msra.mxu0 %v3838
        %3861 = vmatprep.subr.bf16.mxu0 0
        %3862 = vmatpush1.bf16.msra.mxu0 %v3839
        %3863 = vmatprep.subr.bf16.mxu0 0
        %3864 = vmatpush1.bf16.msra.mxu0 %v3840
        %3865 = vmatprep.subr.bf16.mxu0 0
        %3866 = vmatpush1.bf16.msra.mxu0 0
        %3867 = vmatprep.subr.bf16.mxu0 0
        %3868 = vmatpush1.bf16.msra.mxu0 0
        %3869 = vmatprep.subr.bf16.mxu0 0
        %3870 = vmatpush1.bf16.msra.mxu0 0
        %3871 = vmatprep.subr.bf16.mxu0 0
        %3872 = vmatpush1.bf16.msra.mxu0 0
        %3873 = vmatprep.subr.bf16.mxu0 0
        %3874 = vmatpush1.bf16.msra.mxu0 0
        %3875 = vmatprep.subr.bf16.mxu0 0
        %3876 = vmatpush1.bf16.msra.mxu0 0
        %3877 = vmatprep.subr.bf16.mxu0 0
        %3878 = vmatpush1.bf16.msra.mxu0 0
        %3879 = vmatprep.subr.bf16.mxu0 0
        %3880 = vmatpush1.bf16.msra.mxu0 0
        %3881 = vmatprep.mubr.bf16.mxu0 0
        %3882 = vmatmul.mubr.bf16.gmra.mrb[0].mxu0 %v3760
        %v3883 = vpop.f32.mrb[0].mxu0
        %v3884 = vadd.f32 0.0, %v3883
        %v3885 = vpop.f32.mrb[0].mxu0
        %v3886 = vpop.f32.mrb[0].mxu0
        %v3887 = vadd.f32 0.0, %v3886
        %v3888 = vpop.f32.mrb[0].mxu0
        %3889 = vmatprep.mubr.bf16.mxu0 0
        %3890 = vmatmul.mubr.bf16.gmra.mrb[0].mxu0 %v3761
        %v3891 = vpop.f32.mrb[0].mxu0
        %v3892 = vadd.f32 0.0, %v3891
        %v3893 = vpop.f32.mrb[0].mxu0
        %v3894 = vpop.f32.mrb[0].mxu0
        %v3895 = vadd.f32 0.0, %v3894
        %v3896 = vpop.f32.mrb[0].mxu0
        %3897 = vmatprep.mubr.bf16.mxu0 0
        %3898 = vmatmul.mubr.bf16.gmra.mrb[0].mxu0 %v3762
        %v3899 = vpop.f32.mrb[0].mxu0
        %v3900 = vadd.f32 0.0, %v3899
        %v3901 = vpop.f32.mrb[0].mxu0
        %v3902 = vpop.f32.mrb[0].mxu0
        %v3903 = vadd.f32 0.0, %v3902
        %v3904 = vpop.f32.mrb[0].mxu0
        %3905 = vmatprep.mubr.bf16.mxu0 0
        %3906 = vmatmul.mubr.bf16.gmra.mrb[0].mxu0 %v3763
        %v3907 = vpop.f32.mrb[0].mxu0
        %v3908 = vadd.f32 0.0, %v3907
        %v3909 = vpop.f32.mrb[0].mxu0
        %v3910 = vpop.f32.mrb[0].mxu0
        %v3911 = vadd.f32 0.0, %v3910
        %v3912 = vpop.f32.mrb[0].mxu0
        %3913 = vmatprep.mubr.bf16.mxu0 0
        %3914 = vmatmul.mubr.bf16.gmra.mrb[0].mxu0 %v3764
        %v3915 = vpop.f32.mrb[0].mxu0
        %v3916 = vadd.f32 0.0, %v3915
        %v3917 = vpop.f32.mrb[0].mxu0
        %v3918 = vpop.f32.mrb[0].mxu0
        %v3919 = vadd.f32 0.0, %v3918
        %v3920 = vpop.f32.mrb[0].mxu0
        %3921 = vmatprep.mubr.bf16.mxu0 0
        %3922 = vmatmul.mubr.bf16.gmra.mrb[0].mxu0 %v3765
        %v3923 = vpop.f32.mrb[0].mxu0
        %v3924 = vadd.f32 0.0, %v3923
        %v3925 = vpop.f32.mrb[0].mxu0
        %v3926 = vpop.f32.mrb[0].mxu0
        %v3927 = vadd.f32 0.0, %v3926
        %v3928 = vpop.f32.mrb[0].mxu0
        %3929 = vmatprep.mubr.bf16.mxu0 0
        %3930 = vmatmul.mubr.bf16.gmra.mrb[0].mxu0 %v3766
        %v3931 = vpop.f32.mrb[0].mxu0
        %v3932 = vadd.f32 0.0, %v3931
        %v3933 = vpop.f32.mrb[0].mxu0
        %v3934 = vpop.f32.mrb[0].mxu0
        %v3935 = vadd.f32 0.0, %v3934
        %v3936 = vpop.f32.mrb[0].mxu0
        %3937 = vmatprep.mubr.bf16.mxu0 0
        %3938 = vmatmul.mubr.bf16.gmra.mrb[0].mxu0 %v3767
        %v3939 = vpop.f32.mrb[0].mxu0
        %v3940 = vadd.f32 0.0, %v3939
        %v3941 = vpop.f32.mrb[0].mxu0
        %v3942 = vpop.f32.mrb[0].mxu0
        %v3943 = vadd.f32 0.0, %v3942
        %v3944 = vpop.f32.mrb[0].mxu0
        %3945 = vdwg.mxu0
        %v3946 = vadd.f32 %v3768, %v3884
        %v3947 = vadd.f32 %v3769, %v3887
        %v3948 = vadd.f32 %v3770, %v3892
        %v3949 = vadd.f32 %v3771, %v3895
        %v3950 = vadd.f32 %v3772, %v3900
        %v3951 = vadd.f32 %v3773, %v3903
        %v3952 = vadd.f32 %v3774, %v3908
        %v3953 = vadd.f32 %v3775, %v3911
        %v3954 = vadd.f32 %v3776, %v3916
        %v3955 = vadd.f32 %v3777, %v3919
        %v3956 = vadd.f32 %v3778, %v3924
        %v3957 = vadd.f32 %v3779, %v3927
        %v3958 = vadd.f32 %v3780, %v3932
        %v3959 = vadd.f32 %v3781, %v3935
        %v3960 = vadd.f32 %v3782, %v3940
        %v3961 = vadd.f32 %v3783, %v3943
        %3962 = vst [vmem:[#allocation2] sm:$0xff] %v3946
        %3963 = vst [vmem:[#allocation2 + $0x8] sm:$0xff] %v3947
        %3964 = vst [vmem:[#allocation2 + $0x10] sm:$0xff] %v3948
        %3965 = vst [vmem:[#allocation2 + $0x18] sm:$0xff] %v3949
        %3966 = vst [vmem:[#allocation2 + $0x20] sm:$0xff] %v3950
        %3967 = vst [vmem:[#allocation2 + $0x28] sm:$0xff] %v3951
        %3968 = vst [vmem:[#allocation2 + $0x30] sm:$0xff] %v3952
        %3969 = vst [vmem:[#allocation2 + $0x38] sm:$0xff] %v3953
        %3970 = vst [vmem:[#allocation2 + $0x40] sm:$0xff] %v3954
        %3971 = vst [vmem:[#allocation2 + $0x48] sm:$0xff] %v3955
        %3972 = vst [vmem:[#allocation2 + $0x50] sm:$0xff] %v3956
        %3973 = vst [vmem:[#allocation2 + $0x58] sm:$0xff] %v3957
        %3974 = vst [vmem:[#allocation2 + $0x60] sm:$0xff] %v3958
        %3975 = vst [vmem:[#allocation2 + $0x68] sm:$0xff] %v3959
        %3976 = vst [vmem:[#allocation2 + $0x70] sm:$0xff] %v3960
        %3977 = vst [vmem:[#allocation2 + $0x78] sm:$0xff] %v3961
        %v3986 = vunpack.c.l.b16 %v367
        %v3987 = vunpack.c.l.b16 %v368
        %v3988 = vunpack.c.l.b16 %v371
        %v3989 = vunpack.c.l.b16 %v372
        %v3990 = vunpack.c.l.b16 %v375
        %v3991 = vunpack.c.l.b16 %v376
        %v3992 = vunpack.c.l.b16 %v379
        %v3993 = vunpack.c.l.b16 %v380
        %v3994 = vpack.c.b16 %v3987, %v3986
        %v3995 = vpack.c.b16 %v3989, %v3988
        %v3996 = vpack.c.b16 %v3991, %v3990
        %v3997 = vpack.c.b16 %v3993, %v3992
        %v4010 = vunpack.c.l.b16 %v369
        %v4011 = vunpack.c.l.b16 %v373
        %v4012 = vunpack.c.l.b16 %v377
        %v4013 = vunpack.c.l.b16 %v381
        %v4014 = vpack.c.b16 %v4010, %v3987
        %v4015 = vpack.c.b16 %v4011, %v3989
        %v4016 = vpack.c.b16 %v4012, %v3991
        %v4017 = vpack.c.b16 %v4013, %v3993
        %v4030 = vunpack.c.l.b16 %v370
        %v4031 = vunpack.c.l.b16 %v374
        %v4032 = vunpack.c.l.b16 %v378
        %v4033 = vunpack.c.l.b16 %v382
        %v4034 = vpack.c.b16 %v4030, %v4010
        %v4035 = vpack.c.b16 %v4031, %v4011
        %v4036 = vpack.c.b16 %v4032, %v4012
        %v4037 = vpack.c.b16 %v4033, %v4013
        %v4038 = vpack.c.b16 %v2476, %v2462
        %v4039 = vpack.c.b16 %v2477, %v2465
        %v4040 = vpack.c.b16 %v931, %v887
        %v4041 = vpack.c.b16 %v932, %v890
        %v4058 = vpack.c.b16 %v933, %v496
        %v4059 = vpack.c.b16 %v934, %v498
        %v4060 = vpack.c.b16 %v935, %v500
        %v4061 = vpack.c.b16 %v936, %v502
        %v4062 = vpack.c.b16 %v937, %v504
        %v4063 = vpack.c.b16 %v938, %v506
        %v4064 = vpack.c.b16 %v984, %v508
        %v4065 = vpack.c.b16 %v985, %v510
        %v4082 = vunpack.c.l.b16 %v447
        %v4083 = vunpack.c.l.b16 %v448
        %v4084 = vunpack.c.l.b16 %v451
        %v4085 = vunpack.c.l.b16 %v452
        %v4086 = vunpack.c.l.b16 %v455
        %v4087 = vunpack.c.l.b16 %v456
        %v4088 = vunpack.c.l.b16 %v459
        %v4089 = vunpack.c.l.b16 %v460
        %v4090 = vpack.c.b16 %v4083, %v4082
        %v4091 = vpack.c.b16 %v4085, %v4084
        %v4092 = vpack.c.b16 %v4087, %v4086
        %v4093 = vpack.c.b16 %v4089, %v4088
        %v4106 = vunpack.c.l.b16 %v449
        %v4107 = vunpack.c.l.b16 %v453
        %v4108 = vunpack.c.l.b16 %v457
        %v4109 = vunpack.c.l.b16 %v461
        %v4110 = vpack.c.b16 %v4106, %v4083
        %v4111 = vpack.c.b16 %v4107, %v4085
        %v4112 = vpack.c.b16 %v4108, %v4087
        %v4113 = vpack.c.b16 %v4109, %v4089
        %v4126 = vunpack.c.l.b16 %v450
        %v4127 = vunpack.c.l.b16 %v454
        %v4128 = vunpack.c.l.b16 %v458
        %v4129 = vunpack.c.l.b16 %v462
        %v4130 = vpack.c.b16 %v1016, %v1002
        %v4131 = vpack.c.b16 %v1017, %v1005
        %v4132 = vpack.c.b16 %v2502, %v2488
        %v4133 = vpack.c.b16 %v2503, %v2491
        %v4134 = vpack.c.b16 %v4126, %v4106
        %v4135 = vpack.c.b16 %v4127, %v4107
        %v4136 = vpack.c.b16 %v4128, %v4108
        %v4137 = vpack.c.b16 %v4129, %v4109
        %v4146 = vld [vmem:[#allocation11] sm:$0xf]
        %v4147 = vld [vmem:[#allocation11 + $0x4] sm:$0xf]
        %v4148 = vld [vmem:[#allocation11 + $0x8] sm:$0xf]
        %v4149 = vld [vmem:[#allocation11 + $0xc] sm:$0xf]
        %v4150 = vld [vmem:[#allocation11 + $0x10] sm:$0xf]
        %v4151 = vld [vmem:[#allocation11 + $0x14] sm:$0xf]
        %v4152 = vld [vmem:[#allocation11 + $0x18] sm:$0xf]
        %v4153 = vld [vmem:[#allocation11 + $0x1c] sm:$0xf]
        %v4154 = vld [vmem:[#allocation11 + $0x20] sm:$0xf]
        %v4155 = vld [vmem:[#allocation11 + $0x24] sm:$0xf]
        %v4156 = vld [vmem:[#allocation11 + $0x28] sm:$0xf]
        %v4157 = vld [vmem:[#allocation11 + $0x2c] sm:$0xf]
        %v4158 = vld [vmem:[#allocation11 + $0x30] sm:$0xf]
        %v4159 = vld [vmem:[#allocation11 + $0x34] sm:$0xf]
        %v4160 = vld [vmem:[#allocation11 + $0x38] sm:$0xf]
        %v4161 = vld [vmem:[#allocation11 + $0x3c] sm:$0xf]
        %v4162 = vld [vmem:[#allocation11 + $0x40] sm:$0xf]
        %v4163 = vld [vmem:[#allocation11 + $0x44] sm:$0xf]
        %v4164 = vld [vmem:[#allocation11 + $0x48] sm:$0xf]
        %v4165 = vld [vmem:[#allocation11 + $0x4c] sm:$0xf]
        %v4166 = vld [vmem:[#allocation11 + $0x50] sm:$0xf]
        %v4167 = vld [vmem:[#allocation11 + $0x54] sm:$0xf]
        %v4168 = vld [vmem:[#allocation11 + $0x58] sm:$0xf]
        %v4169 = vld [vmem:[#allocation11 + $0x5c] sm:$0xf]
        %v4170 = vld [vmem:[#allocation11 + $0x60] sm:$0xf]
        %v4171 = vld [vmem:[#allocation11 + $0x64] sm:$0xf]
        %v4172 = vld [vmem:[#allocation11 + $0x68] sm:$0xf]
        %v4173 = vld [vmem:[#allocation11 + $0x6c] sm:$0xf]
        %v4174 = vld [vmem:[#allocation11 + $0x70] sm:$0xf]
        %v4175 = vld [vmem:[#allocation11 + $0x74] sm:$0xf]
        %v4176 = vld [vmem:[#allocation11 + $0x78] sm:$0xf]
        %v4177 = vld [vmem:[#allocation11 + $0x7c] sm:$0xf]
        %v4178 = vld [vmem:[#allocation11 + $0x80] sm:$0xf]
        %v4179 = vld [vmem:[#allocation11 + $0x84] sm:$0xf]
        %v4180 = vld [vmem:[#allocation11 + $0x88] sm:$0xf]
        %v4181 = vld [vmem:[#allocation11 + $0x8c] sm:$0xf]
        %v4182 = vld [vmem:[#allocation11 + $0x90] sm:$0xf]
        %v4183 = vld [vmem:[#allocation11 + $0x94] sm:$0xf]
        %v4184 = vld [vmem:[#allocation11 + $0x98] sm:$0xf]
        %v4185 = vld [vmem:[#allocation11 + $0x9c] sm:$0xf]
        %v4186 = vld [vmem:[#allocation11 + $0xa0] sm:$0xf]
        %v4187 = vld [vmem:[#allocation11 + $0xa4] sm:$0xf]
        %v4188 = vld [vmem:[#allocation11 + $0xa8] sm:$0xf]
        %v4189 = vld [vmem:[#allocation11 + $0xac] sm:$0xf]
        %v4190 = vld [vmem:[#allocation11 + $0xb0] sm:$0xf]
        %v4191 = vld [vmem:[#allocation11 + $0xb4] sm:$0xf]
        %v4192 = vld [vmem:[#allocation11 + $0xb8] sm:$0xf]
        %v4193 = vld [vmem:[#allocation11 + $0xbc] sm:$0xf]
        %v4194 = vld [vmem:[#allocation11 + $0xc0] sm:$0xf]
        %v4195 = vld [vmem:[#allocation11 + $0xc4] sm:$0xf]
        %v4196 = vld [vmem:[#allocation11 + $0xc8] sm:$0xf]
        %v4197 = vld [vmem:[#allocation11 + $0xcc] sm:$0xf]
        %v4198 = vld [vmem:[#allocation11 + $0xd0] sm:$0xf]
        %v4199 = vld [vmem:[#allocation11 + $0xd4] sm:$0xf]
        %v4200 = vld [vmem:[#allocation11 + $0xd8] sm:$0xf]
        %v4201 = vld [vmem:[#allocation11 + $0xdc] sm:$0xf]
        %v4202 = vld [vmem:[#allocation11 + $0xe0] sm:$0xf]
        %v4203 = vld [vmem:[#allocation11 + $0xe4] sm:$0xf]
        %v4204 = vld [vmem:[#allocation11 + $0xe8] sm:$0xf]
        %v4205 = vld [vmem:[#allocation11 + $0xec] sm:$0xf]
        %v4206 = vld [vmem:[#allocation11 + $0xf0] sm:$0xf]
        %v4207 = vld [vmem:[#allocation11 + $0xf4] sm:$0xf]
        %v4208 = vld [vmem:[#allocation11 + $0xf8] sm:$0xf]
        %v4209 = vld [vmem:[#allocation11 + $0xfc] sm:$0xf]
        %v4210 = vld [vmem:[#allocation11 + $0x100] sm:$0xf]
        %v4211 = vld [vmem:[#allocation11 + $0x104] sm:$0xf]
        %v4212 = vld [vmem:[#allocation11 + $0x108] sm:$0xf]
        %v4213 = vld [vmem:[#allocation11 + $0x10c] sm:$0xf]
        %v4214 = vld [vmem:[#allocation11 + $0x110] sm:$0xf]
        %v4215 = vld [vmem:[#allocation11 + $0x114] sm:$0xf]
        %v4216 = vld [vmem:[#allocation11 + $0x118] sm:$0xf]
        %v4217 = vld [vmem:[#allocation11 + $0x11c] sm:$0xf]
        %v4218 = vld [vmem:[#allocation11 + $0x120] sm:$0xf]
        %v4219 = vld [vmem:[#allocation11 + $0x124] sm:$0xf]
        %v4220 = vld [vmem:[#allocation11 + $0x128] sm:$0xf]
        %v4221 = vld [vmem:[#allocation11 + $0x12c] sm:$0xf]
        %v4222 = vld [vmem:[#allocation11 + $0x130] sm:$0xf]
        %v4223 = vld [vmem:[#allocation11 + $0x134] sm:$0xf]
        %v4224 = vld [vmem:[#allocation11 + $0x138] sm:$0xf]
        %v4225 = vld [vmem:[#allocation11 + $0x13c] sm:$0xf]
        %v4226 = vld [vmem:[#allocation11 + $0x140] sm:$0xf]
        %v4227 = vld [vmem:[#allocation11 + $0x144] sm:$0xf]
        %v4228 = vld [vmem:[#allocation11 + $0x148] sm:$0xf]
        %v4229 = vld [vmem:[#allocation11 + $0x14c] sm:$0xf]
        %v4230 = vld [vmem:[#allocation11 + $0x150] sm:$0xf]
        %v4231 = vld [vmem:[#allocation11 + $0x154] sm:$0xf]
        %v4232 = vld [vmem:[#allocation11 + $0x158] sm:$0xf]
        %v4233 = vld [vmem:[#allocation11 + $0x15c] sm:$0xf]
        %v4234 = vld [vmem:[#allocation11 + $0x160] sm:$0xf]
        %v4235 = vld [vmem:[#allocation11 + $0x164] sm:$0xf]
        %v4236 = vld [vmem:[#allocation11 + $0x168] sm:$0xf]
        %v4237 = vld [vmem:[#allocation11 + $0x16c] sm:$0xf]
        %v4238 = vld [vmem:[#allocation11 + $0x170] sm:$0xf]
        %v4239 = vld [vmem:[#allocation11 + $0x174] sm:$0xf]
        %v4240 = vld [vmem:[#allocation11 + $0x178] sm:$0xf]
        %v4241 = vld [vmem:[#allocation11 + $0x17c] sm:$0xf]
        %v4242 = vld [vmem:[#allocation11 + $0x180] sm:$0xf]
        %v4243 = vld [vmem:[#allocation11 + $0x184] sm:$0xf]
        %v4244 = vld [vmem:[#allocation11 + $0x188] sm:$0xf]
        %v4245 = vld [vmem:[#allocation11 + $0x18c] sm:$0xf]
        %v4246 = vld [vmem:[#allocation11 + $0x190] sm:$0xf]
        %v4247 = vld [vmem:[#allocation11 + $0x194] sm:$0xf]
        %v4248 = vld [vmem:[#allocation11 + $0x198] sm:$0xf]
        %v4249 = vld [vmem:[#allocation11 + $0x19c] sm:$0xf]
        %v4250 = vld [vmem:[#allocation11 + $0x1a0] sm:$0xf]
        %v4251 = vld [vmem:[#allocation11 + $0x1a4] sm:$0xf]
        %v4252 = vld [vmem:[#allocation11 + $0x1a8] sm:$0xf]
        %v4253 = vld [vmem:[#allocation11 + $0x1ac] sm:$0xf]
        %v4254 = vld [vmem:[#allocation11 + $0x1b0] sm:$0xf]
        %v4255 = vld [vmem:[#allocation11 + $0x1b4] sm:$0xf]
        %v4256 = vld [vmem:[#allocation11 + $0x1b8] sm:$0xf]
        %v4257 = vld [vmem:[#allocation11 + $0x1bc] sm:$0xf]
        %v4258 = vld [vmem:[#allocation11 + $0x1c0] sm:$0xf]
        %v4259 = vld [vmem:[#allocation11 + $0x1c4] sm:$0xf]
        %v4260 = vld [vmem:[#allocation11 + $0x1c8] sm:$0xf]
        %v4261 = vld [vmem:[#allocation11 + $0x1cc] sm:$0xf]
        %v4262 = vld [vmem:[#allocation11 + $0x1d0] sm:$0xf]
        %v4263 = vld [vmem:[#allocation11 + $0x1d4] sm:$0xf]
        %v4264 = vld [vmem:[#allocation11 + $0x1d8] sm:$0xf]
        %v4265 = vld [vmem:[#allocation11 + $0x1dc] sm:$0xf]
        %v4266 = vld [vmem:[#allocation11 + $0x1e0] sm:$0xf]
        %v4267 = vld [vmem:[#allocation11 + $0x1e4] sm:$0xf]
        %v4268 = vld [vmem:[#allocation11 + $0x1e8] sm:$0xf]
        %v4269 = vld [vmem:[#allocation11 + $0x1ec] sm:$0xf]
        %v4270 = vld [vmem:[#allocation11 + $0x1f0] sm:$0xf]
        %v4271 = vld [vmem:[#allocation11 + $0x1f4] sm:$0xf]
        %v4272 = vld [vmem:[#allocation11 + $0x1f8] sm:$0xf]
        %v4273 = vld [vmem:[#allocation11 + $0x1fc] sm:$0xf]
        %v4274 = vld [vmem:[#allocation11 + $0x200] sm:$0xf]
        %v4275 = vld [vmem:[#allocation11 + $0x204] sm:$0xf]
        %v4276 = vld [vmem:[#allocation11 + $0x208] sm:$0xf]
        %v4277 = vld [vmem:[#allocation11 + $0x20c] sm:$0xf]
        %v4278 = vld [vmem:[#allocation11 + $0x210] sm:$0xf]
        %v4279 = vld [vmem:[#allocation11 + $0x214] sm:$0xf]
        %v4280 = vld [vmem:[#allocation11 + $0x218] sm:$0xf]
        %v4281 = vld [vmem:[#allocation11 + $0x21c] sm:$0xf]
        %v4282 = vld [vmem:[#allocation11 + $0x220] sm:$0xf]
        %v4283 = vld [vmem:[#allocation11 + $0x224] sm:$0xf]
        %v4284 = vld [vmem:[#allocation11 + $0x228] sm:$0xf]
        %v4285 = vld [vmem:[#allocation11 + $0x22c] sm:$0xf]
        %v4286 = vld [vmem:[#allocation11 + $0x230] sm:$0xf]
        %v4287 = vld [vmem:[#allocation11 + $0x234] sm:$0xf]
        %v4288 = vld [vmem:[#allocation11 + $0x238] sm:$0xf]
        %v4289 = vld [vmem:[#allocation11 + $0x23c] sm:$0xf]
        %v4434 = vunpack.c.l.b16 %v4146
        %v4435 = vunpack.c.l.b16 %v4147
        %v4436 = vunpack.c.l.b16 %v4148
        %v4437 = vunpack.c.l.b16 %v4149
        %v4438 = vunpack.c.l.b16 %v4150
        %v4439 = vunpack.c.l.b16 %v4151
        %v4440 = vunpack.c.l.b16 %v4152
        %v4441 = vunpack.c.l.b16 %v4153
        %v4442 = vunpack.c.l.b16 %v4154
        %v4443 = vunpack.c.l.b16 %v4155
        %v4444 = vunpack.c.l.b16 %v4156
        %v4445 = vunpack.c.l.b16 %v4157
        %v4446 = vunpack.c.l.b16 %v4158
        %v4447 = vunpack.c.l.b16 %v4159
        %v4448 = vunpack.c.l.b16 %v4160
        %v4449 = vunpack.c.l.b16 %v4161
        %v4450 = vunpack.c.l.b16 %v4162
        %v4451 = vunpack.c.l.b16 %v4163
        %v4452 = vunpack.c.l.b16 %v4164
        %v4453 = vunpack.c.l.b16 %v4165
        %v4454 = vunpack.c.l.b16 %v4166
        %v4455 = vunpack.c.l.b16 %v4167
        %v4456 = vunpack.c.l.b16 %v4168
        %v4457 = vunpack.c.l.b16 %v4169
        %v4458 = vunpack.c.l.b16 %v4170
        %v4459 = vunpack.c.l.b16 %v4171
        %v4460 = vunpack.c.l.b16 %v4172
        %v4461 = vunpack.c.l.b16 %v4173
        %v4462 = vunpack.c.l.b16 %v4174
        %v4463 = vunpack.c.l.b16 %v4175
        %v4464 = vunpack.c.l.b16 %v4176
        %v4465 = vunpack.c.l.b16 %v4177
        %v4466 = vunpack.c.l.b16 %v4178
        %v4467 = vunpack.c.l.b16 %v4179
        %v4468 = vunpack.c.l.b16 %v4180
        %v4469 = vunpack.c.l.b16 %v4181
        %v4470 = vunpack.c.l.b16 %v4182
        %v4471 = vunpack.c.l.b16 %v4183
        %v4472 = vunpack.c.l.b16 %v4184
        %v4473 = vunpack.c.l.b16 %v4185
        %v4474 = vunpack.c.l.b16 %v4186
        %v4475 = vunpack.c.l.b16 %v4187
        %v4476 = vunpack.c.l.b16 %v4188
        %v4477 = vunpack.c.l.b16 %v4189
        %v4478 = vunpack.c.l.b16 %v4190
        %v4479 = vunpack.c.l.b16 %v4191
        %v4480 = vunpack.c.l.b16 %v4192
        %v4481 = vunpack.c.l.b16 %v4193
        %v4482 = vunpack.c.l.b16 %v4194
        %v4483 = vunpack.c.l.b16 %v4195
        %v4484 = vunpack.c.l.b16 %v4196
        %v4485 = vunpack.c.l.b16 %v4197
        %v4486 = vunpack.c.l.b16 %v4198
        %v4487 = vunpack.c.l.b16 %v4199
        %v4488 = vunpack.c.l.b16 %v4200
        %v4489 = vunpack.c.l.b16 %v4201
        %v4490 = vunpack.c.l.b16 %v4202
        %v4491 = vunpack.c.l.b16 %v4203
        %v4492 = vunpack.c.l.b16 %v4204
        %v4493 = vunpack.c.l.b16 %v4205
        %v4494 = vunpack.c.l.b16 %v4206
        %v4495 = vunpack.c.l.b16 %v4207
        %v4496 = vunpack.c.l.b16 %v4208
        %v4497 = vunpack.c.l.b16 %v4209
        %v4498 = vunpack.c.l.b16 %v4210
        %v4499 = vunpack.c.l.b16 %v4211
        %v4500 = vunpack.c.l.b16 %v4212
        %v4501 = vunpack.c.l.b16 %v4213
        %v4502 = vunpack.c.l.b16 %v4214
        %v4503 = vunpack.c.l.b16 %v4215
        %v4504 = vunpack.c.l.b16 %v4216
        %v4505 = vunpack.c.l.b16 %v4217
        %v4506 = vunpack.c.l.b16 %v4218
        %v4507 = vunpack.c.l.b16 %v4219
        %v4508 = vunpack.c.l.b16 %v4220
        %v4509 = vunpack.c.l.b16 %v4221
        %v4510 = vunpack.c.l.b16 %v4222
        %v4511 = vunpack.c.l.b16 %v4223
        %v4512 = vunpack.c.l.b16 %v4224
        %v4513 = vunpack.c.l.b16 %v4225
        %v4514 = vunpack.c.l.b16 %v4226
        %v4515 = vunpack.c.l.b16 %v4227
        %v4516 = vunpack.c.l.b16 %v4228
        %v4517 = vunpack.c.l.b16 %v4229
        %v4518 = vunpack.c.l.b16 %v4230
        %v4519 = vunpack.c.l.b16 %v4231
        %v4520 = vunpack.c.l.b16 %v4232
        %v4521 = vunpack.c.l.b16 %v4233
        %v4522 = vunpack.c.l.b16 %v4234
        %v4523 = vunpack.c.l.b16 %v4235
        %v4524 = vunpack.c.l.b16 %v4236
        %v4525 = vunpack.c.l.b16 %v4237
        %v4526 = vunpack.c.l.b16 %v4238
        %v4527 = vunpack.c.l.b16 %v4239
        %v4528 = vunpack.c.l.b16 %v4240
        %v4529 = vunpack.c.l.b16 %v4241
        %v4530 = vunpack.c.l.b16 %v4242
        %v4531 = vunpack.c.l.b16 %v4243
        %v4532 = vunpack.c.l.b16 %v4244
        %v4533 = vunpack.c.l.b16 %v4245
        %v4534 = vunpack.c.l.b16 %v4246
        %v4535 = vunpack.c.l.b16 %v4247
        %v4536 = vunpack.c.l.b16 %v4248
        %v4537 = vunpack.c.l.b16 %v4249
        %v4538 = vunpack.c.l.b16 %v4250
        %v4539 = vunpack.c.l.b16 %v4251
        %v4540 = vunpack.c.l.b16 %v4252
        %v4541 = vunpack.c.l.b16 %v4253
        %v4542 = vunpack.c.l.b16 %v4254
        %v4543 = vunpack.c.l.b16 %v4255
        %v4544 = vunpack.c.l.b16 %v4256
        %v4545 = vunpack.c.l.b16 %v4257
        %v4546 = vunpack.c.l.b16 %v4258
        %v4547 = vunpack.c.l.b16 %v4259
        %v4548 = vunpack.c.l.b16 %v4260
        %v4549 = vunpack.c.l.b16 %v4261
        %v4550 = vunpack.c.l.b16 %v4262
        %v4551 = vunpack.c.l.b16 %v4263
        %v4552 = vunpack.c.l.b16 %v4264
        %v4553 = vunpack.c.l.b16 %v4265
        %v4554 = vunpack.c.l.b16 %v4266
        %v4555 = vunpack.c.l.b16 %v4267
        %v4556 = vunpack.c.l.b16 %v4268
        %v4557 = vunpack.c.l.b16 %v4269
        %v4558 = vunpack.c.l.b16 %v4270
        %v4559 = vunpack.c.l.b16 %v4271
        %v4560 = vunpack.c.l.b16 %v4272
        %v4561 = vunpack.c.l.b16 %v4273
        %v4562 = vunpack.c.l.b16 %v4274
        %v4563 = vunpack.c.l.b16 %v4275
        %v4564 = vunpack.c.l.b16 %v4276
        %v4565 = vunpack.c.l.b16 %v4277
        %v4566 = vunpack.c.l.b16 %v4278
        %v4567 = vunpack.c.l.b16 %v4279
        %v4568 = vunpack.c.l.b16 %v4280
        %v4569 = vunpack.c.l.b16 %v4281
        %v4570 = vunpack.c.l.b16 %v4282
        %v4571 = vunpack.c.l.b16 %v4283
        %v4572 = vunpack.c.l.b16 %v4284
        %v4573 = vunpack.c.l.b16 %v4285
        %v4574 = vunpack.c.l.b16 %v4286
        %v4575 = vunpack.c.l.b16 %v4287
        %v4576 = vunpack.c.l.b16 %v4288
        %v4577 = vunpack.c.l.b16 %v4289
        %v4578 = vpack.c.b16 %v4435, %v4434
        %v4579 = vpack.c.b16 %v4437, %v4436
        %v4580 = vpack.c.b16 %v4439, %v4438
        %v4581 = vpack.c.b16 %v4441, %v4440
        %v4582 = vpack.c.b16 %v4443, %v4442
        %v4583 = vpack.c.b16 %v4445, %v4444
        %v4584 = vpack.c.b16 %v4447, %v4446
        %v4585 = vpack.c.b16 %v4449, %v4448
        %v4586 = vpack.c.b16 %v4451, %v4450
        %v4587 = vpack.c.b16 %v4453, %v4452
        %v4588 = vpack.c.b16 %v4455, %v4454
        %v4589 = vpack.c.b16 %v4457, %v4456
        %v4590 = vpack.c.b16 %v4459, %v4458
        %v4591 = vpack.c.b16 %v4461, %v4460
        %v4592 = vpack.c.b16 %v4463, %v4462
        %v4593 = vpack.c.b16 %v4465, %v4464
        %v4594 = vpack.c.b16 %v4467, %v4466
        %v4595 = vpack.c.b16 %v4469, %v4468
        %v4596 = vpack.c.b16 %v4471, %v4470
        %v4597 = vpack.c.b16 %v4473, %v4472
        %v4598 = vpack.c.b16 %v4475, %v4474
        %v4599 = vpack.c.b16 %v4477, %v4476
        %v4600 = vpack.c.b16 %v4479, %v4478
        %v4601 = vpack.c.b16 %v4481, %v4480
        %v4602 = vpack.c.b16 %v4483, %v4482
        %v4603 = vpack.c.b16 %v4485, %v4484
        %v4604 = vpack.c.b16 %v4487, %v4486
        %v4605 = vpack.c.b16 %v4489, %v4488
        %v4606 = vpack.c.b16 %v4491, %v4490
        %v4607 = vpack.c.b16 %v4493, %v4492
        %v4608 = vpack.c.b16 %v4495, %v4494
        %v4609 = vpack.c.b16 %v4497, %v4496
        %v4610 = vpack.c.b16 %v4499, %v4498
        %v4611 = vpack.c.b16 %v4501, %v4500
        %v4612 = vpack.c.b16 %v4503, %v4502
        %v4613 = vpack.c.b16 %v4505, %v4504
        %v4614 = vpack.c.b16 %v4507, %v4506
        %v4615 = vpack.c.b16 %v4509, %v4508
        %v4616 = vpack.c.b16 %v4511, %v4510
        %v4617 = vpack.c.b16 %v4513, %v4512
        %v4618 = vpack.c.b16 %v4515, %v4514
        %v4619 = vpack.c.b16 %v4517, %v4516
        %v4620 = vpack.c.b16 %v4519, %v4518
        %v4621 = vpack.c.b16 %v4521, %v4520
        %v4622 = vpack.c.b16 %v4523, %v4522
        %v4623 = vpack.c.b16 %v4525, %v4524
        %v4624 = vpack.c.b16 %v4527, %v4526
        %v4625 = vpack.c.b16 %v4529, %v4528
        %v4626 = vpack.c.b16 %v4531, %v4530
        %v4627 = vpack.c.b16 %v4533, %v4532
        %v4628 = vpack.c.b16 %v4535, %v4534
        %v4629 = vpack.c.b16 %v4537, %v4536
        %v4630 = vpack.c.b16 %v4539, %v4538
        %v4631 = vpack.c.b16 %v4541, %v4540
        %v4632 = vpack.c.b16 %v4543, %v4542
        %v4633 = vpack.c.b16 %v4545, %v4544
        %v4634 = vpack.c.b16 %v4547, %v4546
        %v4635 = vpack.c.b16 %v4549, %v4548
        %v4636 = vpack.c.b16 %v4551, %v4550
        %v4637 = vpack.c.b16 %v4553, %v4552
        %v4638 = vpack.c.b16 %v4555, %v4554
        %v4639 = vpack.c.b16 %v4557, %v4556
        %v4640 = vpack.c.b16 %v4559, %v4558
        %v4641 = vpack.c.b16 %v4561, %v4560
        %v4642 = vpack.c.b16 %v4563, %v4562
        %v4643 = vpack.c.b16 %v4565, %v4564
        %v4644 = vpack.c.b16 %v4567, %v4566
        %v4645 = vpack.c.b16 %v4569, %v4568
        %v4646 = vpack.c.b16 %v4571, %v4570
        %v4647 = vpack.c.b16 %v4573, %v4572
        %v4648 = vpack.c.b16 %v4575, %v4574
        %v4649 = vpack.c.b16 %v4577, %v4576
        %4722 = vmatprep.subr.bf16.mxu0 0
        %4723 = vmatpush1.bf16.msra.mxu0 %v4578
        %4724 = vmatprep.subr.bf16.mxu0 0
        %4725 = vmatpush1.bf16.msra.mxu0 %v4579
        %4726 = vmatprep.subr.bf16.mxu0 0
        %4727 = vmatpush1.bf16.msra.mxu0 %v4580
        %4728 = vmatprep.subr.bf16.mxu0 0
        %4729 = vmatpush1.bf16.msra.mxu0 %v4581
        %4730 = vmatprep.subr.bf16.mxu0 0
        %4731 = vmatpush1.bf16.msra.mxu0 %v4582
        %4732 = vmatprep.subr.bf16.mxu0 0
        %4733 = vmatpush1.bf16.msra.mxu0 %v4583
        %4734 = vmatprep.subr.bf16.mxu0 0
        %4735 = vmatpush1.bf16.msra.mxu0 %v4584
        %4736 = vmatprep.subr.bf16.mxu0 0
        %4737 = vmatpush1.bf16.msra.mxu0 %v4585
        %4738 = vmatprep.subr.bf16.mxu0 0
        %4739 = vmatpush1.bf16.msra.mxu0 %v4586
        %4740 = vmatprep.subr.bf16.mxu0 0
        %4741 = vmatpush1.bf16.msra.mxu0 %v4587
        %4742 = vmatprep.subr.bf16.mxu0 0
        %4743 = vmatpush1.bf16.msra.mxu0 %v4588
        %4744 = vmatprep.subr.bf16.mxu0 0
        %4745 = vmatpush1.bf16.msra.mxu0 %v4589
        %4746 = vmatprep.subr.bf16.mxu0 0
        %4747 = vmatpush1.bf16.msra.mxu0 %v4590
        %4748 = vmatprep.subr.bf16.mxu0 0
        %4749 = vmatpush1.bf16.msra.mxu0 %v4591
        %4750 = vmatprep.subr.bf16.mxu0 0
        %4751 = vmatpush1.bf16.msra.mxu0 %v4592
        %4752 = vmatprep.subr.bf16.mxu0 0
        %4753 = vmatpush1.bf16.msra.mxu0 %v4593
        %4754 = vmatprep.mubr.bf16.mxu0 %v4014
        %4755 = vmatmul.mubr.bf16.gmra.mrb[0].mxu0 %v3994
        %v4756 = vpop.f32.mrb[0].mxu0
        %v4757 = vadd.f32 0.0, %v4756
        %v4758 = vpop.f32.mrb[0].mxu0
        %v4759 = vpop.f32.mrb[0].mxu0
        %v4760 = vadd.f32 0.0, %v4759
        %v4761 = vpop.f32.mrb[0].mxu0
        %4762 = vmatprep.mubr.bf16.mxu0 %v4015
        %4763 = vmatmul.mubr.bf16.gmra.mrb[0].mxu0 %v3995
        %v4764 = vpop.f32.mrb[0].mxu0
        %v4765 = vadd.f32 0.0, %v4764
        %v4766 = vpop.f32.mrb[0].mxu0
        %v4767 = vpop.f32.mrb[0].mxu0
        %v4768 = vadd.f32 0.0, %v4767
        %v4769 = vpop.f32.mrb[0].mxu0
        %4770 = vmatprep.mubr.bf16.mxu0 %v4016
        %4771 = vmatmul.mubr.bf16.gmra.mrb[0].mxu0 %v3996
        %v4772 = vpop.f32.mrb[0].mxu0
        %v4773 = vadd.f32 0.0, %v4772
        %v4774 = vpop.f32.mrb[0].mxu0
        %v4775 = vpop.f32.mrb[0].mxu0
        %v4776 = vadd.f32 0.0, %v4775
        %v4777 = vpop.f32.mrb[0].mxu0
        %4778 = vmatprep.mubr.bf16.mxu0 %v4017
        %4779 = vmatmul.mubr.bf16.gmra.mrb[0].mxu0 %v3997
        %v4780 = vpop.f32.mrb[0].mxu0
        %v4781 = vadd.f32 0.0, %v4780
        %v4782 = vpop.f32.mrb[0].mxu0
        %v4783 = vpop.f32.mrb[0].mxu0
        %v4784 = vadd.f32 0.0, %v4783
        %v4785 = vpop.f32.mrb[0].mxu0
        %4786 = vmatprep.mubr.bf16.mxu0 %v2470
        %4787 = vmatmul.mubr.bf16.gmra.mrb[0].mxu0 %v2466
        %v4788 = vpop.f32.mrb[0].mxu0
        %v4789 = vadd.f32 0.0, %v4788
        %v4790 = vpop.f32.mrb[0].mxu0
        %v4791 = vpop.f32.mrb[0].mxu0
        %v4792 = vadd.f32 0.0, %v4791
        %v4793 = vpop.f32.mrb[0].mxu0
        %4794 = vmatprep.mubr.bf16.mxu0 %v2471
        %4795 = vmatmul.mubr.bf16.gmra.mrb[0].mxu0 %v2468
        %v4796 = vpop.f32.mrb[0].mxu0
        %v4797 = vadd.f32 0.0, %v4796
        %v4798 = vpop.f32.mrb[0].mxu0
        %v4799 = vpop.f32.mrb[0].mxu0
        %v4800 = vadd.f32 0.0, %v4799
        %v4801 = vpop.f32.mrb[0].mxu0
        %4802 = vmatprep.mubr.bf16.mxu0 %v913
        %4803 = vmatmul.mubr.bf16.gmra.mrb[0].mxu0 %v897
        %v4804 = vpop.f32.mrb[0].mxu0
        %v4805 = vadd.f32 0.0, %v4804
        %v4806 = vpop.f32.mrb[0].mxu0
        %v4807 = vpop.f32.mrb[0].mxu0
        %v4808 = vadd.f32 0.0, %v4807
        %v4809 = vpop.f32.mrb[0].mxu0
        %4810 = vmatprep.mubr.bf16.mxu0 %v914
        %4811 = vmatmul.mubr.bf16.gmra.mrb[0].mxu0 %v899
        %v4812 = vpop.f32.mrb[0].mxu0
        %v4813 = vadd.f32 0.0, %v4812
        %v4814 = vpop.f32.mrb[0].mxu0
        %v4815 = vpop.f32.mrb[0].mxu0
        %v4816 = vadd.f32 0.0, %v4815
        %v4817 = vpop.f32.mrb[0].mxu0
        %4818 = vdwg.mxu0
        %4819 = vmatprep.subr.bf16.mxu0 0
        %4820 = vmatpush1.bf16.msra.mxu0 %v4594
        %4821 = vmatprep.subr.bf16.mxu0 0
        %4822 = vmatpush1.bf16.msra.mxu0 %v4595
        %4823 = vmatprep.subr.bf16.mxu0 0
        %4824 = vmatpush1.bf16.msra.mxu0 %v4596
        %4825 = vmatprep.subr.bf16.mxu0 0
        %4826 = vmatpush1.bf16.msra.mxu0 %v4597
        %4827 = vmatprep.subr.bf16.mxu0 0
        %4828 = vmatpush1.bf16.msra.mxu0 %v4598
        %4829 = vmatprep.subr.bf16.mxu0 0
        %4830 = vmatpush1.bf16.msra.mxu0 %v4599
        %4831 = vmatprep.subr.bf16.mxu0 0
        %4832 = vmatpush1.bf16.msra.mxu0 %v4600
        %4833 = vmatprep.subr.bf16.mxu0 0
        %4834 = vmatpush1.bf16.msra.mxu0 %v4601
        %4835 = vmatprep.subr.bf16.mxu0 0
        %4836 = vmatpush1.bf16.msra.mxu0 %v4602
        %4837 = vmatprep.subr.bf16.mxu0 0
        %4838 = vmatpush1.bf16.msra.mxu0 %v4603
        %4839 = vmatprep.subr.bf16.mxu0 0
        %4840 = vmatpush1.bf16.msra.mxu0 %v4604
        %4841 = vmatprep.subr.bf16.mxu0 0
        %4842 = vmatpush1.bf16.msra.mxu0 %v4605
        %4843 = vmatprep.subr.bf16.mxu0 0
        %4844 = vmatpush1.bf16.msra.mxu0 %v4606
        %4845 = vmatprep.subr.bf16.mxu0 0
        %4846 = vmatpush1.bf16.msra.mxu0 %v4607
        %4847 = vmatprep.subr.bf16.mxu0 0
        %4848 = vmatpush1.bf16.msra.mxu0 %v4608
        %4849 = vmatprep.subr.bf16.mxu0 0
        %4850 = vmatpush1.bf16.msra.mxu0 %v4609
        %4851 = vmatprep.mubr.bf16.mxu0 %v901
        %4852 = vmatmul.mubr.bf16.gmra.mrb[0].mxu0 %v4034
        %v4853 = vpop.f32.mrb[0].mxu0
        %v4854 = vadd.f32 %v4757, %v4853
        %v4855 = vpop.f32.mrb[0].mxu0
        %v4856 = vpop.f32.mrb[0].mxu0
        %v4857 = vadd.f32 %v4760, %v4856
        %v4858 = vpop.f32.mrb[0].mxu0
        %4859 = vmatprep.mubr.bf16.mxu0 %v903
        %4860 = vmatmul.mubr.bf16.gmra.mrb[0].mxu0 %v4035
        %v4861 = vpop.f32.mrb[0].mxu0
        %v4862 = vadd.f32 %v4765, %v4861
        %v4863 = vpop.f32.mrb[0].mxu0
        %v4864 = vpop.f32.mrb[0].mxu0
        %v4865 = vadd.f32 %v4768, %v4864
        %v4866 = vpop.f32.mrb[0].mxu0
        %4867 = vmatprep.mubr.bf16.mxu0 %v905
        %4868 = vmatmul.mubr.bf16.gmra.mrb[0].mxu0 %v4036
        %v4869 = vpop.f32.mrb[0].mxu0
        %v4870 = vadd.f32 %v4773, %v4869
        %v4871 = vpop.f32.mrb[0].mxu0
        %v4872 = vpop.f32.mrb[0].mxu0
        %v4873 = vadd.f32 %v4776, %v4872
        %v4874 = vpop.f32.mrb[0].mxu0
        %4875 = vmatprep.mubr.bf16.mxu0 %v907
        %4876 = vmatmul.mubr.bf16.gmra.mrb[0].mxu0 %v4037
        %v4877 = vpop.f32.mrb[0].mxu0
        %v4878 = vadd.f32 %v4781, %v4877
        %v4879 = vpop.f32.mrb[0].mxu0
        %v4880 = vpop.f32.mrb[0].mxu0
        %v4881 = vadd.f32 %v4784, %v4880
        %v4882 = vpop.f32.mrb[0].mxu0
        %4883 = vmatprep.mubr.bf16.mxu0 %v909
        %4884 = vmatmul.mubr.bf16.gmra.mrb[0].mxu0 %v4038
        %v4885 = vpop.f32.mrb[0].mxu0
        %v4886 = vadd.f32 %v4789, %v4885
        %v4887 = vpop.f32.mrb[0].mxu0
        %v4888 = vpop.f32.mrb[0].mxu0
        %v4889 = vadd.f32 %v4792, %v4888
        %v4890 = vpop.f32.mrb[0].mxu0
        %4891 = vmatprep.mubr.bf16.mxu0 %v911
        %4892 = vmatmul.mubr.bf16.gmra.mrb[0].mxu0 %v4039
        %v4893 = vpop.f32.mrb[0].mxu0
        %v4894 = vadd.f32 %v4797, %v4893
        %v4895 = vpop.f32.mrb[0].mxu0
        %v4896 = vpop.f32.mrb[0].mxu0
        %v4897 = vadd.f32 %v4800, %v4896
        %v4898 = vpop.f32.mrb[0].mxu0
        %4899 = vmatprep.mubr.bf16.mxu0 %v976
        %4900 = vmatmul.mubr.bf16.gmra.mrb[0].mxu0 %v4040
        %v4901 = vpop.f32.mrb[0].mxu0
        %v4902 = vadd.f32 %v4805, %v4901
        %v4903 = vpop.f32.mrb[0].mxu0
        %v4904 = vpop.f32.mrb[0].mxu0
        %v4905 = vadd.f32 %v4808, %v4904
        %v4906 = vpop.f32.mrb[0].mxu0
        %4907 = vmatprep.mubr.bf16.mxu0 %v978
        %4908 = vmatmul.mubr.bf16.gmra.mrb[0].mxu0 %v4041
        %v4909 = vpop.f32.mrb[0].mxu0
        %v4910 = vadd.f32 %v4813, %v4909
        %v4911 = vpop.f32.mrb[0].mxu0
        %v4912 = vpop.f32.mrb[0].mxu0
        %v4913 = vadd.f32 %v4816, %v4912
        %v4914 = vpop.f32.mrb[0].mxu0
        %4915 = vdwg.mxu0
        %4916 = vmatprep.subr.bf16.mxu0 0
        %4917 = vmatpush1.bf16.msra.mxu0 %v4610
        %4918 = vmatprep.subr.bf16.mxu0 0
        %4919 = vmatpush1.bf16.msra.mxu0 %v4611
        %4920 = vmatprep.subr.bf16.mxu0 0
        %4921 = vmatpush1.bf16.msra.mxu0 %v4612
        %4922 = vmatprep.subr.bf16.mxu0 0
        %4923 = vmatpush1.bf16.msra.mxu0 %v4613
        %4924 = vmatprep.subr.bf16.mxu0 0
        %4925 = vmatpush1.bf16.msra.mxu0 %v4614
        %4926 = vmatprep.subr.bf16.mxu0 0
        %4927 = vmatpush1.bf16.msra.mxu0 %v4615
        %4928 = vmatprep.subr.bf16.mxu0 0
        %4929 = vmatpush1.bf16.msra.mxu0 %v4616
        %4930 = vmatprep.subr.bf16.mxu0 0
        %4931 = vmatpush1.bf16.msra.mxu0 %v4617
        %4932 = vmatprep.subr.bf16.mxu0 0
        %4933 = vmatpush1.bf16.msra.mxu0 %v4618
        %4934 = vmatprep.subr.bf16.mxu0 0
        %4935 = vmatpush1.bf16.msra.mxu0 %v4619
        %4936 = vmatprep.subr.bf16.mxu0 0
        %4937 = vmatpush1.bf16.msra.mxu0 %v4620
        %4938 = vmatprep.subr.bf16.mxu0 0
        %4939 = vmatpush1.bf16.msra.mxu0 %v4621
        %4940 = vmatprep.subr.bf16.mxu0 0
        %4941 = vmatpush1.bf16.msra.mxu0 %v4622
        %4942 = vmatprep.subr.bf16.mxu0 0
        %4943 = vmatpush1.bf16.msra.mxu0 %v4623
        %4944 = vmatprep.subr.bf16.mxu0 0
        %4945 = vmatpush1.bf16.msra.mxu0 %v4624
        %4946 = vmatprep.subr.bf16.mxu0 0
        %4947 = vmatpush1.bf16.msra.mxu0 %v4625
        %4948 = vmatprep.mubr.bf16.mxu0 %v4058
        %4949 = vmatmul.mubr.bf16.gmra.mrb[0].mxu0 %v511
        %v4950 = vpop.f32.mrb[0].mxu0
        %v4951 = vadd.f32 %v4854, %v4950
        %v4952 = vpop.f32.mrb[0].mxu0
        %v4953 = vpop.f32.mrb[0].mxu0
        %v4954 = vadd.f32 %v4857, %v4953
        %v4955 = vpop.f32.mrb[0].mxu0
        %4956 = vmatprep.mubr.bf16.mxu0 %v4059
        %4957 = vmatmul.mubr.bf16.gmra.mrb[0].mxu0 %v512
        %v4958 = vpop.f32.mrb[0].mxu0
        %v4959 = vadd.f32 %v4862, %v4958
        %v4960 = vpop.f32.mrb[0].mxu0
        %v4961 = vpop.f32.mrb[0].mxu0
        %v4962 = vadd.f32 %v4865, %v4961
        %v4963 = vpop.f32.mrb[0].mxu0
        %4964 = vmatprep.mubr.bf16.mxu0 %v4060
        %4965 = vmatmul.mubr.bf16.gmra.mrb[0].mxu0 %v513
        %v4966 = vpop.f32.mrb[0].mxu0
        %v4967 = vadd.f32 %v4870, %v4966
        %v4968 = vpop.f32.mrb[0].mxu0
        %v4969 = vpop.f32.mrb[0].mxu0
        %v4970 = vadd.f32 %v4873, %v4969
        %v4971 = vpop.f32.mrb[0].mxu0
        %4972 = vmatprep.mubr.bf16.mxu0 %v4061
        %4973 = vmatmul.mubr.bf16.gmra.mrb[0].mxu0 %v514
        %v4974 = vpop.f32.mrb[0].mxu0
        %v4975 = vadd.f32 %v4878, %v4974
        %v4976 = vpop.f32.mrb[0].mxu0
        %v4977 = vpop.f32.mrb[0].mxu0
        %v4978 = vadd.f32 %v4881, %v4977
        %v4979 = vpop.f32.mrb[0].mxu0
        %4980 = vmatprep.mubr.bf16.mxu0 %v4062
        %4981 = vmatmul.mubr.bf16.gmra.mrb[0].mxu0 %v515
        %v4982 = vpop.f32.mrb[0].mxu0
        %v4983 = vadd.f32 %v4886, %v4982
        %v4984 = vpop.f32.mrb[0].mxu0
        %v4985 = vpop.f32.mrb[0].mxu0
        %v4986 = vadd.f32 %v4889, %v4985
        %v4987 = vpop.f32.mrb[0].mxu0
        %4988 = vmatprep.mubr.bf16.mxu0 %v4063
        %4989 = vmatmul.mubr.bf16.gmra.mrb[0].mxu0 %v516
        %v4990 = vpop.f32.mrb[0].mxu0
        %v4991 = vadd.f32 %v4894, %v4990
        %v4992 = vpop.f32.mrb[0].mxu0
        %v4993 = vpop.f32.mrb[0].mxu0
        %v4994 = vadd.f32 %v4897, %v4993
        %v4995 = vpop.f32.mrb[0].mxu0
        %4996 = vmatprep.mubr.bf16.mxu0 %v4064
        %4997 = vmatmul.mubr.bf16.gmra.mrb[0].mxu0 %v517
        %v4998 = vpop.f32.mrb[0].mxu0
        %v4999 = vadd.f32 %v4902, %v4998
        %v5000 = vpop.f32.mrb[0].mxu0
        %v5001 = vpop.f32.mrb[0].mxu0
        %v5002 = vadd.f32 %v4905, %v5001
        %v5003 = vpop.f32.mrb[0].mxu0
        %5004 = vmatprep.mubr.bf16.mxu0 %v4065
        %5005 = vmatmul.mubr.bf16.gmra.mrb[0].mxu0 %v518
        %v5006 = vpop.f32.mrb[0].mxu0
        %v5007 = vadd.f32 %v4910, %v5006
        %v5008 = vpop.f32.mrb[0].mxu0
        %v5009 = vpop.f32.mrb[0].mxu0
        %v5010 = vadd.f32 %v4913, %v5009
        %v5011 = vpop.f32.mrb[0].mxu0
        %5012 = vdwg.mxu0
        %5013 = vmatprep.subr.bf16.mxu0 0
        %5014 = vmatpush1.bf16.msra.mxu0 %v4626
        %5015 = vmatprep.subr.bf16.mxu0 0
        %5016 = vmatpush1.bf16.msra.mxu0 %v4627
        %5017 = vmatprep.subr.bf16.mxu0 0
        %5018 = vmatpush1.bf16.msra.mxu0 %v4628
        %5019 = vmatprep.subr.bf16.mxu0 0
        %5020 = vmatpush1.bf16.msra.mxu0 %v4629
        %5021 = vmatprep.subr.bf16.mxu0 0
        %5022 = vmatpush1.bf16.msra.mxu0 %v4630
        %5023 = vmatprep.subr.bf16.mxu0 0
        %5024 = vmatpush1.bf16.msra.mxu0 %v4631
        %5025 = vmatprep.subr.bf16.mxu0 0
        %5026 = vmatpush1.bf16.msra.mxu0 %v4632
        %5027 = vmatprep.subr.bf16.mxu0 0
        %5028 = vmatpush1.bf16.msra.mxu0 %v4633
        %5029 = vmatprep.subr.bf16.mxu0 0
        %5030 = vmatpush1.bf16.msra.mxu0 %v4634
        %5031 = vmatprep.subr.bf16.mxu0 0
        %5032 = vmatpush1.bf16.msra.mxu0 %v4635
        %5033 = vmatprep.subr.bf16.mxu0 0
        %5034 = vmatpush1.bf16.msra.mxu0 %v4636
        %5035 = vmatprep.subr.bf16.mxu0 0
        %5036 = vmatpush1.bf16.msra.mxu0 %v4637
        %5037 = vmatprep.subr.bf16.mxu0 0
        %5038 = vmatpush1.bf16.msra.mxu0 %v4638
        %5039 = vmatprep.subr.bf16.mxu0 0
        %5040 = vmatpush1.bf16.msra.mxu0 %v4639
        %5041 = vmatprep.subr.bf16.mxu0 0
        %5042 = vmatpush1.bf16.msra.mxu0 %v4640
        %5043 = vmatprep.subr.bf16.mxu0 0
        %5044 = vmatpush1.bf16.msra.mxu0 %v4641
        %5045 = vmatprep.mubr.bf16.mxu0 %v1010
        %5046 = vmatmul.mubr.bf16.gmra.mrb[0].mxu0 %v1006
        %v5047 = vpop.f32.mrb[0].mxu0
        %v5048 = vadd.f32 %v4951, %v5047
        %v5049 = vpop.f32.mrb[0].mxu0
        %v5050 = vpop.f32.mrb[0].mxu0
        %v5051 = vadd.f32 %v4954, %v5050
        %v5052 = vpop.f32.mrb[0].mxu0
        %5053 = vmatprep.mubr.bf16.mxu0 %v1011
        %5054 = vmatmul.mubr.bf16.gmra.mrb[0].mxu0 %v1008
        %v5055 = vpop.f32.mrb[0].mxu0
        %v5056 = vadd.f32 %v4959, %v5055
        %v5057 = vpop.f32.mrb[0].mxu0
        %v5058 = vpop.f32.mrb[0].mxu0
        %v5059 = vadd.f32 %v4962, %v5058
        %v5060 = vpop.f32.mrb[0].mxu0
        %5061 = vmatprep.mubr.bf16.mxu0 %v2496
        %5062 = vmatmul.mubr.bf16.gmra.mrb[0].mxu0 %v2492
        %v5063 = vpop.f32.mrb[0].mxu0
        %v5064 = vadd.f32 %v4967, %v5063
        %v5065 = vpop.f32.mrb[0].mxu0
        %v5066 = vpop.f32.mrb[0].mxu0
        %v5067 = vadd.f32 %v4970, %v5066
        %v5068 = vpop.f32.mrb[0].mxu0
        %5069 = vmatprep.mubr.bf16.mxu0 %v2497
        %5070 = vmatmul.mubr.bf16.gmra.mrb[0].mxu0 %v2494
        %v5071 = vpop.f32.mrb[0].mxu0
        %v5072 = vadd.f32 %v4975, %v5071
        %v5073 = vpop.f32.mrb[0].mxu0
        %v5074 = vpop.f32.mrb[0].mxu0
        %v5075 = vadd.f32 %v4978, %v5074
        %v5076 = vpop.f32.mrb[0].mxu0
        %5077 = vmatprep.mubr.bf16.mxu0 %v4110
        %5078 = vmatmul.mubr.bf16.gmra.mrb[0].mxu0 %v4090
        %v5079 = vpop.f32.mrb[0].mxu0
        %v5080 = vadd.f32 %v4983, %v5079
        %v5081 = vpop.f32.mrb[0].mxu0
        %v5082 = vpop.f32.mrb[0].mxu0
        %v5083 = vadd.f32 %v4986, %v5082
        %v5084 = vpop.f32.mrb[0].mxu0
        %5085 = vmatprep.mubr.bf16.mxu0 %v4111
        %5086 = vmatmul.mubr.bf16.gmra.mrb[0].mxu0 %v4091
        %v5087 = vpop.f32.mrb[0].mxu0
        %v5088 = vadd.f32 %v4991, %v5087
        %v5089 = vpop.f32.mrb[0].mxu0
        %v5090 = vpop.f32.mrb[0].mxu0
        %v5091 = vadd.f32 %v4994, %v5090
        %v5092 = vpop.f32.mrb[0].mxu0
        %5093 = vmatprep.mubr.bf16.mxu0 %v4112
        %5094 = vmatmul.mubr.bf16.gmra.mrb[0].mxu0 %v4092
        %v5095 = vpop.f32.mrb[0].mxu0
        %v5096 = vadd.f32 %v4999, %v5095
        %v5097 = vpop.f32.mrb[0].mxu0
        %v5098 = vpop.f32.mrb[0].mxu0
        %v5099 = vadd.f32 %v5002, %v5098
        %v5100 = vpop.f32.mrb[0].mxu0
        %5101 = vmatprep.mubr.bf16.mxu0 %v4113
        %5102 = vmatmul.mubr.bf16.gmra.mrb[0].mxu0 %v4093
        %v5103 = vpop.f32.mrb[0].mxu0
        %v5104 = vadd.f32 %v5007, %v5103
        %v5105 = vpop.f32.mrb[0].mxu0
        %v5106 = vpop.f32.mrb[0].mxu0
        %v5107 = vadd.f32 %v5010, %v5106
        %v5108 = vpop.f32.mrb[0].mxu0
        %5109 = vdwg.mxu0
        %5110 = vmatprep.subr.bf16.mxu0 0
        %5111 = vmatpush1.bf16.msra.mxu0 %v4642
        %5112 = vmatprep.subr.bf16.mxu0 0
        %5113 = vmatpush1.bf16.msra.mxu0 %v4643
        %5114 = vmatprep.subr.bf16.mxu0 0
        %5115 = vmatpush1.bf16.msra.mxu0 %v4644
        %5116 = vmatprep.subr.bf16.mxu0 0
        %5117 = vmatpush1.bf16.msra.mxu0 %v4645
        %5118 = vmatprep.subr.bf16.mxu0 0
        %5119 = vmatpush1.bf16.msra.mxu0 %v4646
        %5120 = vmatprep.subr.bf16.mxu0 0
        %5121 = vmatpush1.bf16.msra.mxu0 %v4647
        %5122 = vmatprep.subr.bf16.mxu0 0
        %5123 = vmatpush1.bf16.msra.mxu0 %v4648
        %5124 = vmatprep.subr.bf16.mxu0 0
        %5125 = vmatpush1.bf16.msra.mxu0 %v4649
        %5126 = vmatprep.subr.bf16.mxu0 0
        %5127 = vmatpush1.bf16.msra.mxu0 0
        %5128 = vmatprep.subr.bf16.mxu0 0
        %5129 = vmatpush1.bf16.msra.mxu0 0
        %5130 = vmatprep.subr.bf16.mxu0 0
        %5131 = vmatpush1.bf16.msra.mxu0 0
        %5132 = vmatprep.subr.bf16.mxu0 0
        %5133 = vmatpush1.bf16.msra.mxu0 0
        %5134 = vmatprep.subr.bf16.mxu0 0
        %5135 = vmatpush1.bf16.msra.mxu0 0
        %5136 = vmatprep.subr.bf16.mxu0 0
        %5137 = vmatpush1.bf16.msra.mxu0 0
        %5138 = vmatprep.subr.bf16.mxu0 0
        %5139 = vmatpush1.bf16.msra.mxu0 0
        %5140 = vmatprep.subr.bf16.mxu0 0
        %5141 = vmatpush1.bf16.msra.mxu0 0
        %5142 = vmatprep.mubr.bf16.mxu0 0
        %5143 = vmatmul.mubr.bf16.gmra.mrb[0].mxu0 %v4130
        %v5144 = vpop.f32.mrb[0].mxu0
        %v5145 = vadd.f32 %v5048, %v5144
        %v5146 = vpop.f32.mrb[0].mxu0
        %v5147 = vpop.f32.mrb[0].mxu0
        %v5148 = vadd.f32 %v5051, %v5147
        %v5149 = vpop.f32.mrb[0].mxu0
        %5150 = vmatprep.mubr.bf16.mxu0 0
        %5151 = vmatmul.mubr.bf16.gmra.mrb[0].mxu0 %v4131
        %v5152 = vpop.f32.mrb[0].mxu0
        %v5153 = vadd.f32 %v5056, %v5152
        %v5154 = vpop.f32.mrb[0].mxu0
        %v5155 = vpop.f32.mrb[0].mxu0
        %v5156 = vadd.f32 %v5059, %v5155
        %v5157 = vpop.f32.mrb[0].mxu0
        %5158 = vmatprep.mubr.bf16.mxu0 0
        %5159 = vmatmul.mubr.bf16.gmra.mrb[0].mxu0 %v4132
        %v5160 = vpop.f32.mrb[0].mxu0
        %v5161 = vadd.f32 %v5064, %v5160
        %v5162 = vpop.f32.mrb[0].mxu0
        %v5163 = vpop.f32.mrb[0].mxu0
        %v5164 = vadd.f32 %v5067, %v5163
        %v5165 = vpop.f32.mrb[0].mxu0
        %5166 = vmatprep.mubr.bf16.mxu0 0
        %5167 = vmatmul.mubr.bf16.gmra.mrb[0].mxu0 %v4133
        %v5168 = vpop.f32.mrb[0].mxu0
        %v5169 = vadd.f32 %v5072, %v5168
        %v5170 = vpop.f32.mrb[0].mxu0
        %v5171 = vpop.f32.mrb[0].mxu0
        %v5172 = vadd.f32 %v5075, %v5171
        %v5173 = vpop.f32.mrb[0].mxu0
        %5174 = vmatprep.mubr.bf16.mxu0 0
        %5175 = vmatmul.mubr.bf16.gmra.mrb[0].mxu0 %v4134
        %v5176 = vpop.f32.mrb[0].mxu0
        %v5177 = vadd.f32 %v5080, %v5176
        %v5178 = vpop.f32.mrb[0].mxu0
        %v5179 = vpop.f32.mrb[0].mxu0
        %v5180 = vadd.f32 %v5083, %v5179
        %v5181 = vpop.f32.mrb[0].mxu0
        %5182 = vmatprep.mubr.bf16.mxu0 0
        %5183 = vmatmul.mubr.bf16.gmra.mrb[0].mxu0 %v4135
        %v5184 = vpop.f32.mrb[0].mxu0
        %v5185 = vadd.f32 %v5088, %v5184
        %v5186 = vpop.f32.mrb[0].mxu0
        %v5187 = vpop.f32.mrb[0].mxu0
        %v5188 = vadd.f32 %v5091, %v5187
        %v5189 = vpop.f32.mrb[0].mxu0
        %5190 = vmatprep.mubr.bf16.mxu0 0
        %5191 = vmatmul.mubr.bf16.gmra.mrb[0].mxu0 %v4136
        %v5192 = vpop.f32.mrb[0].mxu0
        %v5193 = vadd.f32 %v5096, %v5192
        %v5194 = vpop.f32.mrb[0].mxu0
        %v5195 = vpop.f32.mrb[0].mxu0
        %v5196 = vadd.f32 %v5099, %v5195
        %v5197 = vpop.f32.mrb[0].mxu0
        %5198 = vmatprep.mubr.bf16.mxu0 0
        %5199 = vmatmul.mubr.bf16.gmra.mrb[0].mxu0 %v4137
        %v5200 = vpop.f32.mrb[0].mxu0
        %v5201 = vadd.f32 %v5104, %v5200
        %v5202 = vpop.f32.mrb[0].mxu0
        %v5203 = vpop.f32.mrb[0].mxu0
        %v5204 = vadd.f32 %v5107, %v5203
        %v5205 = vpop.f32.mrb[0].mxu0
        %5206 = vdwg.mxu0
        %v5207 = vmax.f32 %v5145, 0.0
        %v5208 = vmax.f32 %v5148, 0.0
        %v5209 = vmax.f32 %v5153, 0.0
        %v5210 = vmax.f32 %v5156, 0.0
        %v5211 = vmax.f32 %v5161, 0.0
        %v5212 = vmax.f32 %v5164, 0.0
        %v5213 = vmax.f32 %v5169, 0.0
        %v5214 = vmax.f32 %v5172, 0.0
        %v5215 = vmax.f32 %v5177, 0.0
        %v5216 = vmax.f32 %v5180, 0.0
        %v5217 = vmax.f32 %v5185, 0.0
        %v5218 = vmax.f32 %v5188, 0.0
        %v5219 = vmax.f32 %v5193, 0.0
        %v5220 = vmax.f32 %v5196, 0.0
        %v5221 = vmax.f32 %v5201, 0.0
        %v5222 = vmax.f32 %v5204, 0.0
        %v5223 = vpack.c.bf16 %v5208, %v5207
        %v5224 = vpack.c.bf16 %v5210, %v5209
        %v5225 = vpack.c.bf16 %v5212, %v5211
        %v5226 = vpack.c.bf16 %v5214, %v5213
        %v5227 = vpack.c.bf16 %v5216, %v5215
        %v5228 = vpack.c.bf16 %v5218, %v5217
        %v5229 = vpack.c.bf16 %v5220, %v5219
        %v5230 = vpack.c.bf16 %v5222, %v5221
        %v5231 = vld [vmem:[#allocation2] sm:$0xff]
        %v5232 = vld [vmem:[#allocation2 + $0x8] sm:$0xff]
        %v5233 = vld [vmem:[#allocation2 + $0x10] sm:$0xff]
        %v5234 = vld [vmem:[#allocation2 + $0x18] sm:$0xff]
        %v5235 = vld [vmem:[#allocation2 + $0x20] sm:$0xff]
        %v5236 = vld [vmem:[#allocation2 + $0x28] sm:$0xff]
        %v5237 = vld [vmem:[#allocation2 + $0x30] sm:$0xff]
        %v5238 = vld [vmem:[#allocation2 + $0x38] sm:$0xff]
        %v5239 = vld [vmem:[#allocation2 + $0x40] sm:$0xff]
        %v5240 = vld [vmem:[#allocation2 + $0x48] sm:$0xff]
        %v5241 = vld [vmem:[#allocation2 + $0x50] sm:$0xff]
        %v5242 = vld [vmem:[#allocation2 + $0x58] sm:$0xff]
        %v5243 = vld [vmem:[#allocation2 + $0x60] sm:$0xff]
        %v5244 = vld [vmem:[#allocation2 + $0x68] sm:$0xff]
        %v5245 = vld [vmem:[#allocation2 + $0x70] sm:$0xff]
        %v5246 = vld [vmem:[#allocation2 + $0x78] sm:$0xff]
        %s5247 = scalar_lea.vmem [#allocation12], 192
        %v5248 = vld [vmem:[%s5247] sm:$0xf]
        %v5249 = vld [vmem:[%s5247 + $0x4] sm:$0xf]
        %v5250 = vld [vmem:[%s5247 + $0x8] sm:$0xf]
        %v5251 = vld [vmem:[%s5247 + $0xc] sm:$0xf]
        %v5252 = vld [vmem:[%s5247 + $0x10] sm:$0xf]
        %v5253 = vld [vmem:[%s5247 + $0x14] sm:$0xf]
        %v5254 = vld [vmem:[%s5247 + $0x18] sm:$0xf]
        %v5255 = vld [vmem:[%s5247 + $0x1c] sm:$0xf]
        %v5256 = vld [vmem:[%s5247 + $0x20] sm:$0xf]
        %v5257 = vld [vmem:[%s5247 + $0x24] sm:$0xf]
        %v5258 = vld [vmem:[%s5247 + $0x28] sm:$0xf]
        %v5259 = vld [vmem:[%s5247 + $0x2c] sm:$0xf]
        %v5260 = vld [vmem:[%s5247 + $0x30] sm:$0xf]
        %v5261 = vld [vmem:[%s5247 + $0x34] sm:$0xf]
        %v5262 = vld [vmem:[%s5247 + $0x38] sm:$0xf]
        %v5263 = vld [vmem:[%s5247 + $0x3c] sm:$0xf]
        %v5280 = vunpack.c.l.b16 %v5248
        %v5281 = vunpack.c.l.b16 %v5249
        %v5282 = vunpack.c.l.b16 %v5250
        %v5283 = vunpack.c.l.b16 %v5251
        %v5284 = vunpack.c.l.b16 %v5252
        %v5285 = vunpack.c.l.b16 %v5253
        %v5286 = vunpack.c.l.b16 %v5254
        %v5287 = vunpack.c.l.b16 %v5255
        %v5288 = vunpack.c.l.b16 %v5256
        %v5289 = vunpack.c.l.b16 %v5257
        %v5290 = vunpack.c.l.b16 %v5258
        %v5291 = vunpack.c.l.b16 %v5259
        %v5292 = vunpack.c.l.b16 %v5260
        %v5293 = vunpack.c.l.b16 %v5261
        %v5294 = vunpack.c.l.b16 %v5262
        %v5295 = vunpack.c.l.b16 %v5263
        %v5296 = vpack.c.b16 %v5281, %v5280
        %v5297 = vpack.c.b16 %v5283, %v5282
        %v5298 = vpack.c.b16 %v5285, %v5284
        %v5299 = vpack.c.b16 %v5287, %v5286
        %v5300 = vpack.c.b16 %v5289, %v5288
        %v5301 = vpack.c.b16 %v5291, %v5290
        %v5302 = vpack.c.b16 %v5293, %v5292
        %v5303 = vpack.c.b16 %v5295, %v5294
        %5312 = vmatprep.subr.bf16.mxu0 0
        %5313 = vmatpush1.bf16.msra.mxu0 %v5296
        %5314 = vmatprep.subr.bf16.mxu0 0
        %5315 = vmatpush1.bf16.msra.mxu0 %v5297
        %5316 = vmatprep.subr.bf16.mxu0 0
        %5317 = vmatpush1.bf16.msra.mxu0 %v5298
        %5318 = vmatprep.subr.bf16.mxu0 0
        %5319 = vmatpush1.bf16.msra.mxu0 %v5299
        %5320 = vmatprep.subr.bf16.mxu0 0
        %5321 = vmatpush1.bf16.msra.mxu0 %v5300
        %5322 = vmatprep.subr.bf16.mxu0 0
        %5323 = vmatpush1.bf16.msra.mxu0 %v5301
        %5324 = vmatprep.subr.bf16.mxu0 0
        %5325 = vmatpush1.bf16.msra.mxu0 %v5302
        %5326 = vmatprep.subr.bf16.mxu0 0
        %5327 = vmatpush1.bf16.msra.mxu0 %v5303
        %5328 = vmatprep.subr.bf16.mxu0 0
        %5329 = vmatpush1.bf16.msra.mxu0 0
        %5330 = vmatprep.subr.bf16.mxu0 0
        %5331 = vmatpush1.bf16.msra.mxu0 0
        %5332 = vmatprep.subr.bf16.mxu0 0
        %5333 = vmatpush1.bf16.msra.mxu0 0
        %5334 = vmatprep.subr.bf16.mxu0 0
        %5335 = vmatpush1.bf16.msra.mxu0 0
        %5336 = vmatprep.subr.bf16.mxu0 0
        %5337 = vmatpush1.bf16.msra.mxu0 0
        %5338 = vmatprep.subr.bf16.mxu0 0
        %5339 = vmatpush1.bf16.msra.mxu0 0
        %5340 = vmatprep.subr.bf16.mxu0 0
        %5341 = vmatpush1.bf16.msra.mxu0 0
        %5342 = vmatprep.subr.bf16.mxu0 0
        %5343 = vmatpush1.bf16.msra.mxu0 0
        %5344 = vmatprep.mubr.bf16.mxu0 0
        %5345 = vmatmul.mubr.bf16.gmra.mrb[0].mxu0 %v5223
        %v5346 = vpop.f32.mrb[0].mxu0
        %v5347 = vadd.f32 0.0, %v5346
        %v5348 = vpop.f32.mrb[0].mxu0
        %v5349 = vpop.f32.mrb[0].mxu0
        %v5350 = vadd.f32 0.0, %v5349
        %v5351 = vpop.f32.mrb[0].mxu0
        %5352 = vmatprep.mubr.bf16.mxu0 0
        %5353 = vmatmul.mubr.bf16.gmra.mrb[0].mxu0 %v5224
        %v5354 = vpop.f32.mrb[0].mxu0
        %v5355 = vadd.f32 0.0, %v5354
        %v5356 = vpop.f32.mrb[0].mxu0
        %v5357 = vpop.f32.mrb[0].mxu0
        %v5358 = vadd.f32 0.0, %v5357
        %v5359 = vpop.f32.mrb[0].mxu0
        %5360 = vmatprep.mubr.bf16.mxu0 0
        %5361 = vmatmul.mubr.bf16.gmra.mrb[0].mxu0 %v5225
        %v5362 = vpop.f32.mrb[0].mxu0
        %v5363 = vadd.f32 0.0, %v5362
        %v5364 = vpop.f32.mrb[0].mxu0
        %v5365 = vpop.f32.mrb[0].mxu0
        %v5366 = vadd.f32 0.0, %v5365
        %v5367 = vpop.f32.mrb[0].mxu0
        %5368 = vmatprep.mubr.bf16.mxu0 0
        %5369 = vmatmul.mubr.bf16.gmra.mrb[0].mxu0 %v5226
        %v5370 = vpop.f32.mrb[0].mxu0
        %v5371 = vadd.f32 0.0, %v5370
        %v5372 = vpop.f32.mrb[0].mxu0
        %v5373 = vpop.f32.mrb[0].mxu0
        %v5374 = vadd.f32 0.0, %v5373
        %v5375 = vpop.f32.mrb[0].mxu0
        %5376 = vmatprep.mubr.bf16.mxu0 0
        %5377 = vmatmul.mubr.bf16.gmra.mrb[0].mxu0 %v5227
        %v5378 = vpop.f32.mrb[0].mxu0
        %v5379 = vadd.f32 0.0, %v5378
        %v5380 = vpop.f32.mrb[0].mxu0
        %v5381 = vpop.f32.mrb[0].mxu0
        %v5382 = vadd.f32 0.0, %v5381
        %v5383 = vpop.f32.mrb[0].mxu0
        %5384 = vmatprep.mubr.bf16.mxu0 0
        %5385 = vmatmul.mubr.bf16.gmra.mrb[0].mxu0 %v5228
        %v5386 = vpop.f32.mrb[0].mxu0
        %v5387 = vadd.f32 0.0, %v5386
        %v5388 = vpop.f32.mrb[0].mxu0
        %v5389 = vpop.f32.mrb[0].mxu0
        %v5390 = vadd.f32 0.0, %v5389
        %v5391 = vpop.f32.mrb[0].mxu0
        %5392 = vmatprep.mubr.bf16.mxu0 0
        %5393 = vmatmul.mubr.bf16.gmra.mrb[0].mxu0 %v5229
        %v5394 = vpop.f32.mrb[0].mxu0
        %v5395 = vadd.f32 0.0, %v5394
        %v5396 = vpop.f32.mrb[0].mxu0
        %v5397 = vpop.f32.mrb[0].mxu0
        %v5398 = vadd.f32 0.0, %v5397
        %v5399 = vpop.f32.mrb[0].mxu0
        %5400 = vmatprep.mubr.bf16.mxu0 0
        %5401 = vmatmul.mubr.bf16.gmra.mrb[0].mxu0 %v5230
        %v5402 = vpop.f32.mrb[0].mxu0
        %v5403 = vadd.f32 0.0, %v5402
        %v5404 = vpop.f32.mrb[0].mxu0
        %v5405 = vpop.f32.mrb[0].mxu0
        %v5406 = vadd.f32 0.0, %v5405
        %v5407 = vpop.f32.mrb[0].mxu0
        %5408 = vdwg.mxu0
        %v5409 = vadd.f32 %v5231, %v5347
        %v5410 = vadd.f32 %v5232, %v5350
        %v5411 = vadd.f32 %v5233, %v5355
        %v5412 = vadd.f32 %v5234, %v5358
        %v5413 = vadd.f32 %v5235, %v5363
        %v5414 = vadd.f32 %v5236, %v5366
        %v5415 = vadd.f32 %v5237, %v5371
        %v5416 = vadd.f32 %v5238, %v5374
        %v5417 = vadd.f32 %v5239, %v5379
        %v5418 = vadd.f32 %v5240, %v5382
        %v5419 = vadd.f32 %v5241, %v5387
        %v5420 = vadd.f32 %v5242, %v5390
        %v5421 = vadd.f32 %v5243, %v5395
        %v5422 = vadd.f32 %v5244, %v5398
        %v5423 = vadd.f32 %v5245, %v5403
        %v5424 = vadd.f32 %v5246, %v5406
        %5425 = vst [vmem:[#allocation2] sm:$0xff] %v5409
        %5426 = vst [vmem:[#allocation2 + $0x8] sm:$0xff] %v5410
        %5427 = vst [vmem:[#allocation2 + $0x10] sm:$0xff] %v5411
        %5428 = vst [vmem:[#allocation2 + $0x18] sm:$0xff] %v5412
        %5429 = vst [vmem:[#allocation2 + $0x20] sm:$0xff] %v5413
        %5430 = vst [vmem:[#allocation2 + $0x28] sm:$0xff] %v5414
        %5431 = vst [vmem:[#allocation2 + $0x30] sm:$0xff] %v5415
        %5432 = vst [vmem:[#allocation2 + $0x38] sm:$0xff] %v5416
        %5433 = vst [vmem:[#allocation2 + $0x40] sm:$0xff] %v5417
        %5434 = vst [vmem:[#allocation2 + $0x48] sm:$0xff] %v5418
        %5435 = vst [vmem:[#allocation2 + $0x50] sm:$0xff] %v5419
        %5436 = vst [vmem:[#allocation2 + $0x58] sm:$0xff] %v5420
        %5437 = vst [vmem:[#allocation2 + $0x60] sm:$0xff] %v5421
        %5438 = vst [vmem:[#allocation2 + $0x68] sm:$0xff] %v5422
        %5439 = vst [vmem:[#allocation2 + $0x70] sm:$0xff] %v5423
        %5440 = vst [vmem:[#allocation2 + $0x78] sm:$0xff] %v5424
        %v5441 = vld [vmem:[#allocation2] sm:$0xff]
        %v5442 = vld [vmem:[#allocation2 + $0x8] sm:$0xff]
        %v5443 = vld [vmem:[#allocation2 + $0x10] sm:$0xff]
        %v5444 = vld [vmem:[#allocation2 + $0x18] sm:$0xff]
        %v5445 = vld [vmem:[#allocation2 + $0x20] sm:$0xff]
        %v5446 = vld [vmem:[#allocation2 + $0x28] sm:$0xff]
        %v5447 = vld [vmem:[#allocation2 + $0x30] sm:$0xff]
        %v5448 = vld [vmem:[#allocation2 + $0x38] sm:$0xff]
        %v5449 = vld [vmem:[#allocation2 + $0x40] sm:$0xff]
        %v5450 = vld [vmem:[#allocation2 + $0x48] sm:$0xff]
        %v5451 = vld [vmem:[#allocation2 + $0x50] sm:$0xff]
        %v5452 = vld [vmem:[#allocation2 + $0x58] sm:$0xff]
        %v5453 = vld [vmem:[#allocation2 + $0x60] sm:$0xff]
        %v5454 = vld [vmem:[#allocation2 + $0x68] sm:$0xff]
        %v5455 = vld [vmem:[#allocation2 + $0x70] sm:$0xff]
        %v5456 = vld [vmem:[#allocation2 + $0x78] sm:$0xff]
        %v5457 = vmax.f32 %v5441, 0.0
        %v5458 = vmax.f32 %v5442, 0.0
        %v5459 = vmax.f32 %v5443, 0.0
        %v5460 = vmax.f32 %v5444, 0.0
        %v5461 = vmax.f32 %v5445, 0.0
        %v5462 = vmax.f32 %v5446, 0.0
        %v5463 = vmax.f32 %v5447, 0.0
        %v5464 = vmax.f32 %v5448, 0.0
        %v5465 = vmax.f32 %v5449, 0.0
        %v5466 = vmax.f32 %v5450, 0.0
        %v5467 = vmax.f32 %v5451, 0.0
        %v5468 = vmax.f32 %v5452, 0.0
        %v5469 = vmax.f32 %v5453, 0.0
        %v5470 = vmax.f32 %v5454, 0.0
        %v5471 = vmax.f32 %v5455, 0.0
        %v5472 = vmax.f32 %v5456, 0.0
        %5473 = vst [vmem:[%s362] sm:$0xff] %v5457
        %5474 = vst [vmem:[%s362 + $0x8] sm:$0xff] %v5458
        %5475 = vst [vmem:[%s362 + $0x10] sm:$0xff] %v5459
        %5476 = vst [vmem:[%s362 + $0x18] sm:$0xff] %v5460
        %5477 = vst [vmem:[%s362 + $0x20] sm:$0xff] %v5461
        %5478 = vst [vmem:[%s362 + $0x28] sm:$0xff] %v5462
        %5479 = vst [vmem:[%s362 + $0x30] sm:$0xff] %v5463
        %5480 = vst [vmem:[%s362 + $0x38] sm:$0xff] %v5464
        %5481 = vst [vmem:[%s362 + $0x40] sm:$0xff] %v5465
        %5482 = vst [vmem:[%s362 + $0x48] sm:$0xff] %v5466
        %5483 = vst [vmem:[%s362 + $0x50] sm:$0xff] %v5467
        %5484 = vst [vmem:[%s362 + $0x58] sm:$0xff] %v5468
        %5485 = vst [vmem:[%s362 + $0x60] sm:$0xff] %v5469
        %5486 = vst [vmem:[%s362 + $0x68] sm:$0xff] %v5470
        %5487 = vst [vmem:[%s362 + $0x70] sm:$0xff] %v5471
        %5488 = vst [vmem:[%s362 + $0x78] sm:$0xff] %v5472
        %s5489 = sand.u32 %s183, 1
        %s5490 = scalar_lea.sflag [#allocation5], %s5489
        %s5491 = sand.u32 %s183, 1
        %s5492 = smul.addr %s5491, 128
        %s5493 = scalar_lea.vmem [#allocation14], %s5492
        // Predicated region
        $region69: #{aspp_forward.1} parent=43 // pred_check
          %p5494 = pneg %p193
        $region70: #{aspp_forward.1} parent=43 // pred_check_branch
          %5496 = sbr.rel (%p5494) target = $region72
        $region71: #{aspp_forward.1} parent=43 // pred_region
          %s5497 = smul.u32 8, %s31
          %s5499 = ssub.s32 2048, 2048
          %5500 = vsyncadd %s5490, %s5499
          %s5501 = smul.addr %s5497, 2
          %s5502 = smul.addr %s30, 32
          %s5503 = sadd.s32 %s5501, %s5502
          %s5504 = smul.addr %s5503, 128
          %s5505 = scalar_lea.hbm %s6, %s5504
          %s5506 = sshll.u32 %s5493, 4
          %s5507 = int_to_ptr.vmem [resolvable:$true] %s5506
          %5512 = dma.vmem_to_hbm [thread:$0]  %s5507, 2048, %s5505, %s5490, 128, 128, 8
        $region72: #{aspp_forward.1} parent=43 // pred_fallthru
          _
      $region44: #{aspp_forward.1} parent=5 // pred_fallthru
        _
      %p5513 = scmp.le.s32.totalorder 2, %s21
      // Predicated region
      $region73: #{aspp_forward.1} parent=5 // pred_check
        %p5514 = pneg %p5513
      $region74: #{aspp_forward.1} parent=5 // pred_check_branch
        %5516 = sbr.rel (%p5514) target = $region76
      $region75: #{aspp_forward.1} parent=5 // pred_region
        %s5517 = ssub.s32 %s21, 2
        // Predicated region
        $region77: #{aspp_forward.1} parent=75 // pred_check
          %p5518 = pneg %p199
        $region78: #{aspp_forward.1} parent=75 // pred_check_branch
          %5520 = sbr.rel (%p5518) target = $region80
        $region79: #{aspp_forward.1} parent=75 // pred_region
          %s5521 = sand.u32 %s184, 1
          %s5522 = scalar_lea.sflag [#allocation5], %s5521
          %s5523 = sand.u32 %s184, 1
          %s5524 = smul.addr %s5523, 128
          %s5525 = scalar_lea.vmem [#allocation14], %s5524
          %5526 = dma.done %s5522, 2048
        $region80: #{aspp_forward.1} parent=75 // pred_fallthru
          _
      $region76: #{aspp_forward.1} parent=5 // pred_fallthru
        _
    $region6: #{aspp_forward.1} parent=1 // loop_footer
      %s25 = sadd.s32 1, %s21
    $region7: #{aspp_forward.1} parent=1 // loop_footer_branch
      %20 = sbr.rel target = $region3
    $region8: #{aspp_forward.1} parent=1 // loop_exit
      _
    %5527 = vsyncpa [#allocation4], 1
    %s5528 = scalar_lea.sflag [#allocation4], 1
    %5529 = vsyncpa %s5528, 1
    %5530 = vsyncpa [#allocation7], 1
    %5531 = vsyncpa [#allocation10], 1
    %5532 = vsyncpa [#allocation13], 1
    %5533 = vsyncpa [#allocation5], 1
    %s5534 = scalar_lea.sflag [#allocation5], 1
    %5535 = vsyncpa %s5534, 1

</llo_original>
